<compile_context>
chip_gen: v7x
topology: tpu7x:2x2x1
jax: 0.10.0
libtpu: 0.0.40
codegen_flags: <defaults>
</compile_context>

<pallas_src>
import math
import numpy as np

import jax
import jax.numpy as jnp
from jax.experimental import pallas as pl
from jax.experimental.pallas import tpu as pltpu

F32 = jnp.float32
_LOG2 = math.log(2.0)

# ----------------- NequipDecoder default hyper-parameters -------------------
N_ELEMS = 100
HIDDEN = 32
LMAX = 1
CUTOFF = 1.5
NUM_BASIS = 8
POLY_P = 6
N_CONV = 3
INV_NEURONS = 64
AVG_NEIGH = 25

TILE_N = 256           # node row tile
TILE_E = 256           # edge row tile
VMEM_LIMIT = 32 * 1024 * 1024   # safe on v5e/v6e/v7x


def _cparams(*sem):
    return pltpu.CompilerParams(dimension_semantics=tuple(sem),
                                vmem_limit_bytes=VMEM_LIMIT)


def _round_up(x, m):
    return ((x + m - 1) // m) * m


# ----------------- activation normalization constants -----------------------
# TODO(synk): e3nn's normalize2mom uses an empirical 2nd moment with a fixed RNG;
#             here it is computed with Gauss-Hermite quadrature (differs by ~1e-3).
_gh_x, _gh_w = np.polynomial.hermite.hermgauss(200)


def _second_moment(f):
    xs = np.sqrt(2.0) * _gh_x
    return float(np.sum(_gh_w * f(xs) ** 2) / np.sqrt(np.pi))


def _np_ssp(x):
    return np.maximum(x, 0.0) + np.log1p(np.exp(-np.abs(x))) - _LOG2


SSP_C = 1.0 / math.sqrt(_second_moment(_np_ssp))
TANH_C = 1.0 / math.sqrt(_second_moment(np.tanh))


def _ssp(x):  # ShiftedSoftPlus, safe inside Pallas kernels
    return jnp.maximum(x, 0.0) + jnp.log1p(jnp.exp(-jnp.abs(x))) - _LOG2


# ----------------- small irreps algebra (l, p) -------------------------------
def ir_dim(l):
    return 2 * l + 1


def irreps_dim(irs):
    return sum(m * ir_dim(l) for m, l, p in irs)


def irreps_offsets(irs):
    offs, o = [], 0
    for m, l, p in irs:
        offs.append(o)
        o += m * ir_dim(l)
    return offs


def prod_irs(l1, p1, l2, p2):
    return [(l, p1 * p2) for l in range(abs(l1 - l2), l1 + l2 + 1)]


def path_exists(irs1, irs2, target):
    return any(target in prod_irs(l1, p1, l2, p2)
               for _, l1, p1 in irs1 for _, l2, p2 in irs2)


def irrep_sort_key(l, p):
    return (l, 0 if p == (-1) ** l else 1)  # e3nn order: 0e,0o,1o,1e,...


def simplify(irs):
    out = []
    for m, l, p in irs:
        if out and out[-1][1] == l and out[-1][2] == p:
            out[-1] = (out[-1][0] + m, l, p)
        else:
            out.append((m, l, p))
    return tuple(out)


# effective CG coefficients for the l<=1 paths used here (component norm, mul_in2=1)
_TP_COEFF = {
    (0, 0, 0): 1.0,
    (0, 1, 1): 1.0,
    (1, 0, 1): 1.0,
    (1, 1, 0): 1.0 / math.sqrt(3.0),
    (1, 1, 1): 1.0 / math.sqrt(2.0),
}
# TODO(synk): e3nn path-normalization constants are reproduced only for the l<=1
#             'uvu' paths with edge multiplicity 1 (the cases this decoder uses).


def build_uvu_tp(irreps_in1, irreps_edge, allowed_irreps):
    allowed = {(l, p) for _, l, p in allowed_irreps}
    raw = []
    for i, (mul, l1, p1) in enumerate(irreps_in1):
        for j, (_, l2, p2) in enumerate(irreps_edge):
            for lo, po in prod_irs(l1, p1, l2, p2):
                if (lo, po) in allowed:
                    raw.append((i, j, mul, l1, l2, lo, po))
    w_offs, w = [], 0
    for (_, _, mul, *_r) in raw:
        w_offs.append(w)
        w += mul  # 'uvu' with edge mul 1 -> mul weights per instruction
    order = sorted(range(len(raw)), key=lambda k: irrep_sort_key(raw[k][5], raw[k][6]))
    instrs, irreps_mid = [], []
    for k in order:
        i, j, mul, l1, l2, lo, po = raw[k]
        instrs.append(dict(i_in1=i, mul=mul, l1=l1, l2=l2, l_out=lo,
                           w_off=w_offs[k], coeff=_TP_COEFF[(l1, l2, lo)]))
        irreps_mid.append((mul, lo, po))
    return dict(irreps_in1=tuple(irreps_in1), instructions=tuple(instrs),
                irreps_mid=tuple(irreps_mid), weight_numel=w)


def build_conv_layer(prev, hidden, edge):
    scalars = [ir for ir in hidden if ir[1] == 0 and path_exists(prev, edge, (ir[1], ir[2]))]
    gated = [ir for ir in hidden if ir[1] > 0 and path_exists(prev, edge, (ir[1], ir[2]))]
    gate_p = 1 if path_exists(prev, edge, (0, 1)) else -1
    gates = [(m, 0, gate_p) for m, l, p in gated]
    conv_out = simplify(tuple(scalars) + tuple(gates) + tuple(gated))
    tp = build_uvu_tp(prev, edge, conv_out)
    out_irreps = simplify(tuple(scalars) + tuple(gated))
    gate_cfg = dict(se=sum(m for m, l, p in scalars if p == 1),
                    so=sum(m for m, l, p in scalars if p == -1),
                    ng=sum(m for m, l, p in gates),
                    gated=tuple((m, l) for m, l, p in gated))
    return dict(conv_out=conv_out, tp=tp, out_irreps=out_irreps, gate=gate_cfg)


# ----------------- deterministic parameter construction ----------------------
# Internal channel layout inside every irrep block is COMPONENT-MAJOR:
#   [comp0: u0..u_{mul-1}][comp1: ...]...  (lane-dense per-mul slices in-kernel)
def make_e3nn_linear(rng, irreps_in, irreps_out):
    """o3.Linear as one dense (dim_in, dim_out) matrix: kron(I_{2l+1}, W_path) blocks,
    fan-in normalization baked in (component-major layout)."""
    din, dout = irreps_dim(irreps_in), irreps_dim(irreps_out)
    W = np.zeros((din, dout), np.float32)
    in_offs, out_offs = irreps_offsets(irreps_in), irreps_offsets(irreps_out)
    for oi, (mo, lo, po) in enumerate(irreps_out):
        fan = sum(mi for mi, li, pi in irreps_in if (li, pi) == (lo, po))
        if fan == 0:
            continue
        alpha = 1.0 / math.sqrt(fan)
        d = ir_dim(lo)
        for ii, (mi, li, pi) in enumerate(irreps_in):
            if (li, pi) != (lo, po):
                continue
            w = rng.standard_normal((mi, mo)).astype(np.float32) * alpha
            W[in_offs[ii]:in_offs[ii] + mi * d,
              out_offs[oi]:out_offs[oi] + mo * d] = np.kron(np.eye(d, dtype=np.float32), w)
    return jnp.asarray(W)


def make_fctp_sc(rng, irreps_in, irreps_out, n_elems):
    """FullyConnectedTensorProduct(feat, 100x0e one-hot, out) == per-species linear map.
    Returns (n_elems, dim_in, dim_out), component-major layout."""
    din, dout = irreps_dim(irreps_in), irreps_dim(irreps_out)
    W = np.zeros((n_elems, din, dout), np.float32)
    in_offs, out_offs = irreps_offsets(irreps_in), irreps_offsets(irreps_out)
    for oi, (mo, lo, po) in enumerate(irreps_out):
        d = ir_dim(lo)
        for ii, (mi, li, pi) in enumerate(irreps_in):
            if (li, pi) != (lo, po):
                continue
            w = rng.standard_normal((mi, n_elems, mo)).astype(np.float32) / math.sqrt(mi * n_elems)
            blk = np.einsum('ab,uzv->zaubv', np.eye(d, dtype=np.float32), w)
            W[:, in_offs[ii]:in_offs[ii] + mi * d,
              out_offs[oi]:out_offs[oi] + mo * d] = blk.reshape(n_elems, mi * d, mo * d)
    return jnp.asarray(W)


# ----------------- grouping metadata (plain-JAX glue, scalar-prefetched) -----
def make_species_metadata(z_sorted, n_groups, tile_r):
    """Visit schedule for the grouped per-species matmul (nodes sorted by species)."""
    n_pad = z_sorted.shape[0]
    T = n_pad // tile_r
    cnt = jnp.bincount(z_sorted, length=n_groups)
    off = jnp.cumsum(cnt) - cnt
    nonempty = cnt > 0
    first_t = off // tile_r
    last_t = jnp.where(nonempty, (off + cnt - 1) // tile_r, first_t)
    ntiles = jnp.where(nonempty, last_t - first_t + 1, 0)
    cum = jnp.cumsum(ntiles)
    nvalid = cum[-1]
    S = T + n_groups - 1                       # static upper bound on #visits
    s_idx = jnp.arange(S, dtype=jnp.int32)
    g_raw = jnp.searchsorted(cum, s_idx, side='right')
    g_last = jnp.searchsorted(cum, nvalid - 1, side='right')
    valid = s_idx < nvalid
    g_ids = jnp.where(valid, jnp.minimum(g_raw, n_groups - 1), g_last).astype(jnp.int32)
    vstart = (cum - ntiles)[g_ids]
    t_raw = first_t[g_ids] + (s_idx - vstart)
    t_ids = jnp.where(valid, t_raw, T - 1).astype(jnp.int32)
    return g_ids, t_ids, jnp.reshape(nvalid, (1,)).astype(jnp.int32)


def make_agg_metadata(dst_sorted, n_pad, tile_n, e_pad, tile_e):
    """Visit schedule for the per-node-tile segment sum (edges sorted by dst)."""
    T_n = n_pad // tile_n
    T_e = e_pad // tile_e
    bounds = jnp.arange(T_n + 1, dtype=jnp.int32) * tile_n
    seg = jnp.searchsorted(dst_sorted, bounds, side='left')
    es, ee = seg[:-1], seg[1:]
    has = ee > es
    k_first = jnp.where(has, es // tile_e, 0)
    k_last = jnp.where(has, (ee - 1) // tile_e, 0)
    nvis = k_last - k_first + 1                # every node tile visited >= once
    cum = jnp.cumsum(nvis)
    nvalid = cum[-1]
    S = T_n + T_e - 1                          # static upper bound on #visits
    s_idx = jnp.arange(S, dtype=jnp.int32)
    t_raw = jnp.searchsorted(cum, s_idx, side='right')
    valid = s_idx < nvalid
    nt_ids = jnp.where(valid, jnp.minimum(t_raw, T_n - 1), T_n - 1).astype(jnp.int32)
    vstart = (cum - nvis)[nt_ids]
    et_raw = k_first[nt_ids] + (s_idx - vstart)
    et_ids = jnp.where(valid, et_raw, k_last[T_n - 1]).astype(jnp.int32)
    return nt_ids, et_ids, jnp.reshape(nvalid, (1,)).astype(jnp.int32)


# ----------------- Pallas kernels --------------------------------------------
def pallas_linear(x, w):
    """(N_pad, K) @ (K, M), node-row-tiled, full weight resident."""
    M, K = x.shape
    N = w.shape[1]

    def kernel(x_ref, w_ref, o_ref):
        o_ref[...] = jnp.dot(x_ref[...], w_ref[...], preferred_element_type=F32)

    return pl.pallas_call(
        kernel,
        out_shape=jax.ShapeDtypeStruct((M, N), F32),
        grid=(M // TILE_N,),
        in_specs=[pl.BlockSpec((TILE_N, K), lambda i: (i, 0)),
                  pl.BlockSpec((K, N), lambda i: (0, 0))],
        out_specs=pl.BlockSpec((TILE_N, N), lambda i: (i, 0)),
        compiler_params=_cparams("parallel"),
    )(x, w)


def pallas_edge_basis(dv):
    """distance vectors (E,3) -> spherical harmonics (E,4) [1, √3 y, √3 z, √3 x]
    and Bessel-basis * polynomial-cutoff radial embedding (E,8). One fused kernel."""
    e_pad = dv.shape[0]
    sqrt3 = math.sqrt(3.0)
    pref = 2.0 / CUTOFF
    p = POLY_P
    c1 = (p + 1.0) * (p + 2.0) / 2.0
    c2 = float(p * (p + 2.0))
    c3 = p * (p + 1.0) / 2.0

    def kernel(dv_ref, sh_ref, rbf_ref):
        v = dv_ref[...]
        r = jnp.sqrt(jnp.sum(v * v, axis=-1, keepdims=True))
        inv_r = 1.0 / jnp.maximum(r, 1e-9)
        n = v * inv_r
        sh_ref[...] = jnp.concatenate(
            [jnp.ones_like(r), sqrt3 * n[:, 1:2], sqrt3 * n[:, 2:3], sqrt3 * n[:, 0:1]],
            axis=1)
        freqs = (jax.lax.broadcasted_iota(jnp.int32, (1, NUM_BASIS), 1).astype(F32)
                 + 1.0) * (math.pi / CUTOFF)
        bess = pref * jnp.sin(r * freqs) * inv_r
        xr = r / CUTOFF
        cut = 1.0 - c1 * xr ** p + c2 * xr ** (p + 1) - c3 * xr ** (p + 2)
        cut = jnp.where(xr < 1.0, cut, 0.0)
        rbf_ref[...] = bess * cut

    return pl.pallas_call(
        kernel,
        out_shape=(jax.ShapeDtypeStruct((e_pad, 4), F32),
                   jax.ShapeDtypeStruct((e_pad, NUM_BASIS), F32)),
        grid=(e_pad // TILE_E,),
        in_specs=[pl.BlockSpec((TILE_E, 3), lambda i: (i, 0))],
        out_specs=(pl.BlockSpec((TILE_E, 4), lambda i: (i, 0)),
                   pl.BlockSpec((TILE_E, NUM_BASIS), lambda i: (i, 0))),
        compiler_params=_cparams("parallel"),
    )(dv)


def pallas_species_linear(z_sorted, x, w, meta):
    """Self-connection FCTP(feat, one_hot(z)) as an MoE-style grouped matmul over
    species-sorted node rows: one weight DMA per (species, tile-range) visit, full
    row tiles on the MXU, accumulation into the resident output block."""
    g_ids, t_ids, nvalid = meta
    n_pad, din = x.shape
    dout = w.shape[2]
    S = g_ids.shape[0]
    z2 = z_sorted.reshape(n_pad, 1)

    def kernel(g_ref, t_ref, nv_ref, z_ref, x_ref, w_ref, o_ref):
        s = pl.program_id(0)
        t_prev = t_ref[jnp.maximum(s - 1, 0)]
        is_first = jnp.logical_or(s == 0, t_ref[s] != t_prev)

        @pl.when(is_first)
        def _():
            o_ref[...] = jnp.zeros_like(o_ref)

        @pl.when(s < nv_ref[0])
        def _():
            mask = (z_ref[...] == g_ref[s]).astype(F32)          # (TILE_N, 1)
            o_ref[...] += jnp.dot(x_ref[...] * mask, w_ref[0],
                                  preferred_element_type=F32)

    return pl.pallas_call(
        kernel,
        out_shape=jax.ShapeDtypeStruct((n_pad, dout), F32),
        grid_spec=pltpu.PrefetchScalarGridSpec(
            num_scalar_prefetch=3,
            grid=(S,),
            in_specs=[pl.BlockSpec((TILE_N, 1), lambda s, g, t, nv: (t[s], 0)),
                      pl.BlockSpec((TILE_N, din), lambda s, g, t, nv: (t[s], 0)),
                      pl.BlockSpec((1, din, dout), lambda s, g, t, nv: (g[s], 0, 0))],
            out_specs=pl.BlockSpec((TILE_N, dout), lambda s, g, t, nv: (t[s], 0))),
        compiler_params=_cparams("arbitrary"),
    )(g_ids, t_ids, nvalid, z2, x, w)


def pallas_segment_sum(msg, dst_row, meta, n_pad, scale):
    """scatter-add of per-edge messages (sorted by dst) into per-node sums,
    O(E*D): per (node-tile, edge-tile) visit build a small one-hot and matmul."""
    nt_ids, et_ids, nvalid = meta
    e_pad, D = msg.shape
    S = nt_ids.shape[0]

    def kernel(nt_ref, et_ref, nv_ref, dst_ref, msg_ref, o_ref):
        s = pl.program_id(0)
        t_prev = nt_ref[jnp.maximum(s - 1, 0)]
        is_first = jnp.logical_or(s == 0, nt_ref[s] != t_prev)

        @pl.when(is_first)
        def _():
            o_ref[...] = jnp.zeros_like(o_ref)

        @pl.when(s < nv_ref[0])
        def _():
            rows = nt_ref[s] * TILE_N + jax.lax.broadcasted_iota(
                jnp.int32, (TILE_N, TILE_E), 0)
            onehot = (rows == dst_ref[...]).astype(F32)          # (TILE_N, TILE_E)
            o_ref[...] += scale * jnp.dot(onehot, msg_ref[...],
                                          preferred_element_type=F32)

    return pl.pallas_call(
        kernel,
        out_shape=jax.ShapeDtypeStruct((n_pad, D), F32),
        grid_spec=pltpu.PrefetchScalarGridSpec(
            num_scalar_prefetch=3,
            grid=(S,),
            in_specs=[pl.BlockSpec((1, TILE_E), lambda s, nt, et, nv: (0, et[s])),
                      pl.BlockSpec((TILE_E, D), lambda s, nt, et, nv: (et[s], 0))],
            out_specs=pl.BlockSpec((TILE_N, D), lambda s, nt, et, nv: (nt[s], 0))),
        compiler_params=_cparams("arbitrary"),
    )(nt_ids, et_ids, nvalid, dst_row, msg)


def pallas_edge_tp(tp_cfg, x, sh, rbf, fc_w, w_out=None):
    """Fused per-edge kernel: radial MLP (rbf -> per-edge TP weights) + weighted
    'uvu' TensorProduct(x, edge_sh) [+ optional trailing o3.Linear].  Lane-dense:
    one (TILE_E, dim_in) input block, one (TILE_E, dim_out) output block."""
    e_pad, din = x.shape
    w1, w2, w3 = fc_w
    wn = w3.shape[1]
    irs1 = tp_cfg['irreps_in1']
    instrs = tp_cfg['instructions']
    in_offs = irreps_offsets(irs1)
    dim_mid = irreps_dim(tp_cfg['irreps_mid'])
    dout = dim_mid if w_out is None else w_out.shape[1]
    s1 = 1.0 / math.sqrt(NUM_BASIS)
    s2 = 1.0 / math.sqrt(INV_NEURONS)
    s3 = 1.0 / math.sqrt(INV_NEURONS)
    has_wout = w_out is not None

    def kernel(rbf_ref, sh_ref, x_ref, w1_ref, w2_ref, w3_ref, *rest):
        if has_wout:
            wout_ref, o_ref = rest
        else:
            (o_ref,) = rest
        # radial network (e3nn FullyConnectedNet, ShiftedSoftPlus, no biases)
        a = SSP_C * _ssp(jnp.dot(rbf_ref[...], w1_ref[...],
                                 preferred_element_type=F32) * s1)
        b = SSP_C * _ssp(jnp.dot(a, w2_ref[...],
                                 preferred_element_type=F32) * s2)
        ew = jnp.dot(b, w3_ref[...], preferred_element_type=F32) * s3   # (T, wn)
        shv = sh_ref[...]
        sh0 = shv[:, 0:1]
        shy = shv[:, 1:2]
        shz = shv[:, 2:3]
        shx = shv[:, 3:4]
        xv = x_ref[...]
        chunks = []
        for ins in instrs:
            m = ins['mul']
            off = in_offs[ins['i_in1']]
            wv = ew[:, ins['w_off']:ins['w_off'] + m]
            c = ins['coeff']
            key = (ins['l1'], ins['l2'], ins['l_out'])
            if ins['l1'] == 0:
                x0 = xv[:, off:off + m]
            else:
                xy = xv[:, off:off + m]
                xz = xv[:, off + m:off + 2 * m]
                xx = xv[:, off + 2 * m:off + 3 * m]
            if key == (0, 0, 0):
                chunks.append(c * x0 * sh0 * wv)
            elif key == (0, 1, 1):
                t = (c * x0) * wv
                chunks += [t * shy, t * shz, t * shx]
            elif key == (1, 0, 1):
                t = (c * sh0) * wv
                chunks += [xy * t, xz * t, xx * t]
            elif key == (1, 1, 0):
                chunks.append(c * (xy * shy + xz * shz + xx * shx) * wv)
            else:  # (1, 1, 1): cross product in the e3nn (y, z, x) component order
                cy = xz * shx - xx * shz
                cz = xx * shy - xy * shx
                cx = xy * shz - xz * shy
                t = c * wv
                chunks += [cy * t, cz * t, cx * t]
        mid = jnp.concatenate(chunks, axis=1)
        if has_wout:
            o_ref[...] = jnp.dot(mid, wout_ref[...], preferred_element_type=F32)
        else:
            o_ref[...] = mid

    in_specs = [pl.BlockSpec((TILE_E, NUM_BASIS), lambda i: (i, 0)),
                pl.BlockSpec((TILE_E, 4), lambda i: (i, 0)),
                pl.BlockSpec((TILE_E, din), lambda i: (i, 0)),
                pl.BlockSpec((NUM_BASIS, INV_NEURONS), lambda i: (0, 0)),
                pl.BlockSpec((INV_NEURONS, INV_NEURONS), lambda i: (0, 0)),
                pl.BlockSpec((INV_NEURONS, wn), lambda i: (0, 0))]
    args = [rbf, sh, x, w1, w2, w3]
    if has_wout:
        in_specs.append(pl.BlockSpec((dim_mid, dout), lambda i: (0, 0)))
        args.append(w_out)
    return pl.pallas_call(
        kernel,
        out_shape=jax.ShapeDtypeStruct((e_pad, dout), F32),
        grid=(e_pad // TILE_E,),
        in_specs=in_specs,
        out_specs=pl.BlockSpec((TILE_E, dout), lambda i: (i, 0)),
        compiler_params=_cparams("parallel"),
    )(*args)


def pallas_lin2_sc_gate(gcfg, agg, sc, w_lin2, gamma=None, beta=None,
                        apply_ln=False, eps=1e-5):
    """Fused per-layer tail: linear_2 matmul + self-connection add + e3nn Gate,
    optionally followed by LayerNorm (last layer).  Lane-dense 2-D blocks."""
    # TODO(synk): nequip ConvNetLayer's even-gate/scalar activation assumed to be
    #             ShiftedSoftPlus (matches nonlinearity_scalars['e']='ssp').
    n_pad, dmid = agg.shape
    dconv = w_lin2.shape[1]
    se, so, ng = gcfg['se'], gcfg['so'], gcfg['ng']
    gated = gcfg['gated']
    dout = se + so + sum(m * ir_dim(l) for m, l in gated)

    def kernel(agg_ref, sc_ref, w_ref, *rest):
        if apply_ln:
            g_ref, b_ref, o_ref = rest
        else:
            (o_ref,) = rest
        x = jnp.dot(agg_ref[...], w_ref[...],
                    preferred_element_type=F32) + sc_ref[...]
        pieces = []
        if se > 0:
            pieces.append(SSP_C * _ssp(x[:, :se]))
        if so > 0:
            pieces.append(TANH_C * jnp.tanh(x[:, se:se + so]))
        gate = SSP_C * _ssp(x[:, se + so:se + so + ng])
        off = se + so + ng
        goff = 0
        for m, l in gated:
            gu = gate[:, goff:goff + m]
            for comp in range(ir_dim(l)):
                pieces.append(x[:, off + comp * m: off + (comp + 1) * m] * gu)
            off += m * ir_dim(l)
            goff += m
        h = jnp.concatenate(pieces, axis=1)
        if apply_ln:
            mu = jnp.mean(h, axis=-1, keepdims=True)
            hc = h - mu
            var = jnp.mean(hc * hc, axis=-1, keepdims=True)
            h = hc * jax.lax.rsqrt(var + eps) * g_ref[...] + b_ref[...]
        o_ref[...] = h

    in_specs = [pl.BlockSpec((TILE_N, dmid), lambda i: (i, 0)),
                pl.BlockSpec((TILE_N, dconv), lambda i: (i, 0)),
                pl.BlockSpec((dmid, dconv), lambda i: (0, 0))]
    args = [agg, sc, w_lin2]
    if apply_ln:
        in_specs += [pl.BlockSpec((1, dout), lambda i: (0, 0)),
                     pl.BlockSpec((1, dout), lambda i: (0, 0))]
        args += [gamma, beta]
    return pl.pallas_call(
        kernel,
        out_shape=jax.ShapeDtypeStruct((n_pad, dout), F32),
        grid=(n_pad // TILE_N,),
        in_specs=in_specs,
        out_specs=pl.BlockSpec((TILE_N, dout), lambda i: (i, 0)),
        compiler_params=_cparams("parallel"),
    )(*args)


# ----------------- model build + forward -------------------------------------
def build_model(seed=0):
    rng = np.random.default_rng(seed)
    node_attr_irreps = ((N_ELEMS, 0, 1),)
    node_feat_irreps = ((HIDDEN, 0, 1),)
    hidden_irreps = tuple((HIDDEN, l, p) for p in (1, -1) for l in range(LMAX + 1))
    edge_irreps = ((1, 0, 1), (1, 1, -1))

    layers_cfg, layers_params = [], []
    prev = node_feat_irreps
    for _ in range(N_CONV):
        lcfg = build_conv_layer(prev, hidden_irreps, edge_irreps)
        lp = dict(
            w_lin1=make_e3nn_linear(rng, prev, prev),
            fc=(jnp.asarray(rng.standard_normal((NUM_BASIS, INV_NEURONS)).astype(np.float32)),
                jnp.asarray(rng.standard_normal((INV_NEURONS, INV_NEURONS)).astype(np.float32)),
                jnp.asarray(rng.standard_normal((INV_NEURONS, lcfg['tp']['weight_numel'])).astype(np.float32))),
            w_lin2=make_e3nn_linear(rng, lcfg['tp']['irreps_mid'], lcfg['conv_out']),
            w_sc=make_fctp_sc(rng, prev, lcfg['conv_out'], N_ELEMS),
        )
        layers_cfg.append(lcfg)
        layers_params.append(lp)
        prev = lcfg['out_irreps']

    last_dim = irreps_dim(prev)
    final_tp = build_uvu_tp(prev, edge_irreps, edge_irreps)
    params = dict(
        w_embed=make_e3nn_linear(rng, node_attr_irreps, node_feat_irreps),
        layers=layers_params,
        ln_gamma=jnp.ones((1, last_dim), F32),
        ln_beta=jnp.zeros((1, last_dim), F32),
        final_fc=(jnp.asarray(rng.standard_normal((NUM_BASIS, INV_NEURONS)).astype(np.float32)),
                  jnp.asarray(rng.standard_normal((INV_NEURONS, INV_NEURONS)).astype(np.float32)),
                  jnp.asarray(rng.standard_normal((INV_NEURONS, final_tp['weight_numel'])).astype(np.float32))),
        w_lin_out=make_e3nn_linear(rng, final_tp['irreps_mid'], node_feat_irreps),
    )
    cfg = dict(layers=layers_cfg, final_tp=final_tp, last_dim=last_dim)
    return cfg, params


def forward(cfg, params, z, edge_index, distance_vectors):
    z = jnp.asarray(z).astype(jnp.int32).reshape(-1)        # z.long().squeeze(-1)
    dv = jnp.asarray(distance_vectors).astype(F32)
    n, e = z.shape[0], dv.shape[0]
    n_pad = _round_up(max(n, 1), TILE_N)
    e_pad = _round_up(max(e, 1), TILE_E)

    z_p = jnp.concatenate([z, jnp.zeros((n_pad - n,), jnp.int32)]) if n_pad > n else z
    dv_p = jnp.concatenate([dv, jnp.zeros((e_pad - e, 3), F32)], axis=0) if e_pad > e else dv
    src = edge_index[0].astype(jnp.int32)
    dst = edge_index[1].astype(jnp.int32)
    src_p = jnp.concatenate([src, jnp.zeros((e_pad - e,), jnp.int32)]) if e_pad > e else src
    dst_p = jnp.concatenate([dst, jnp.zeros((e_pad - e,), jnp.int32)]) if e_pad > e else dst

    # sort nodes by species once (grouped self-connection matmul); all node arrays
    # stay in sorted order for the whole forward (edges are re-indexed accordingly).
    node_perm = jnp.argsort(z_p)
    z_s = z_p[node_perm]
    inv_node = jnp.argsort(node_perm)                        # old node id -> new row

    edge_is_real = jnp.arange(e_pad) < e
    src_n = inv_node[src_p]
    dst_n = jnp.where(edge_is_real, inv_node[dst_p], n_pad)  # padded edges -> sentinel

    # sort edges by destination once (segment-sum aggregation); undo at the very end
    edge_perm = jnp.argsort(dst_n)
    inv_edge = jnp.argsort(edge_perm)
    dst_e = dst_n[edge_perm]
    src_e = src_n[edge_perm]
    dv_e = dv_p[edge_perm]
    dst_gather = jnp.minimum(dst_e, n_pad - 1)
    dst_row = dst_e.reshape(1, e_pad)

    sp_meta = make_species_metadata(z_s, N_ELEMS, TILE_N)
    ag_meta = make_agg_metadata(dst_e, n_pad, TILE_N, e_pad, TILE_E)

    # OneHotAtomEncoding + AtomwiseLinear == embedding-table row lookup
    h = jnp.take(params['w_embed'], z_s, axis=0)             # (N_pad, 32)

    # SphericalHarmonicEdgeAttrs + RadialBasisEdgeEncoding (fused kernel)
    edge_sh, edge_rbf = pallas_edge_basis(dv_e)              # (E_pad,4), (E_pad,8)

    scale = 1.0 / math.sqrt(AVG_NEIGH)
    n_layers = len(cfg['layers'])
    for li, (lcfg, lp) in enumerate(zip(cfg['layers'], params['layers'])):
        sc = pallas_species_linear(z_s, h, lp['w_sc'], sp_meta)    # self-connection
        h1 = pallas_linear(h, lp['w_lin1'])                        # linear_1
        # TODO(synk): the per-edge source-row gather is plain-JAX glue; fusing it
        #             into the TP kernel would save one (E, dim) HBM round trip.
        h1_src = jnp.take(h1, src_e, axis=0)
        msg = pallas_edge_tp(lcfg['tp'], h1_src, edge_sh, edge_rbf, lp['fc'])
        agg = pallas_segment_sum(msg, dst_row, ag_meta, n_pad, scale)
        last = li == n_layers - 1
        h = pallas_lin2_sc_gate(lcfg['gate'], agg, sc, lp['w_lin2'],
                                gamma=params['ln_gamma'] if last else None,
                                beta=params['ln_beta'] if last else None,
                                apply_ln=last)                     # Gate (+ LayerNorm)

    # output block: radial MLP + weighted uvu TP(h[i], edge_sh) + o3.Linear, fused
    h_dst = jnp.take(h, dst_gather, axis=0)
    ef_sorted = pallas_edge_tp(cfg['final_tp'], h_dst, edge_sh, edge_rbf,
                               params['final_fc'], w_out=params['w_lin_out'])
    return jnp.take(ef_sorted, inv_edge, axis=0)[:e]         # back to input edge order


if __name__ == "__main__":
    cfg, params = build_model(seed=0)

    key = jax.random.PRNGKey(0)
    k1, k2, k3, k4 = jax.random.split(key, 4)
    N, E = 8, 16
    z = jax.random.randint(k1, (N, 1), 1, 10, dtype=jnp.int32)
    src = jax.random.randint(k2, (E,), 0, N, dtype=jnp.int32)
    dst = jax.random.randint(k3, (E,), 0, N, dtype=jnp.int32)
    edge_index = jnp.stack([src, dst], axis=0)
    distance_vectors = 0.5 * jax.random.normal(k4, (E, 3), dtype=jnp.float32)

    out = forward(cfg, params, z, edge_index, distance_vectors)
    out = jax.block_until_ready(out)
    assert out.shape == (E, HIDDEN), out.shape
    assert bool(jnp.all(jnp.isfinite(out)))
    print("KERNEL_OK")
</pallas_src>

<mosaic_0001>
module attributes {stable_mosaic.version = 11 : i64} {
  func.func @kernel(%arg0: i32, %arg1: memref<256x3xf32, #tpu.memory_space<vmem>>, %arg2: memref<256x4xf32, #tpu.memory_space<vmem>>, %arg3: memref<256x8xf32, #tpu.memory_space<vmem>>) attributes {dimension_semantics = [#tpu.dimension_semantics<parallel>], iteration_bounds = array<i64: 1>, scalar_prefetch = 0 : i64, scratch_operands = 0 : i64, tpu.core_type = #tpu.core_type<tc>, window_params = [{transform_indices = @transform_0, window_bounds = array<i64: 256, 3>}, {transform_indices = @transform_1, window_bounds = array<i64: 256, 4>}, {transform_indices = @transform_2, window_bounds = array<i64: 256, 8>}]} {
    %c0 = arith.constant 0 : index
    %c0_0 = arith.constant 0 : index
    %0 = vector.load %arg1[%c0, %c0_0] : memref<256x3xf32, #tpu.memory_space<vmem>>, vector<256x3xf32>
    %1 = arith.mulf %0, %0 : vector<256x3xf32>
    %cst = arith.constant dense<0.000000e+00> : vector<256xf32>
    %2 = vector.multi_reduction <add>, %1, %cst [1] : vector<256x3xf32> to vector<256xf32>
    %3 = vector.shape_cast %2 : vector<256xf32> to vector<256x1xf32>
    %4 = math.sqrt %3 : vector<256x1xf32>
    %cst_1 = arith.constant 9.99999971E-10 : f32
    %5 = vector.broadcast %cst_1 : f32 to vector<256x1xf32>
    %6 = arith.maximumf %4, %5 : vector<256x1xf32>
    %cst_2 = arith.constant 1.000000e+00 : f32
    %7 = vector.broadcast %cst_2 : f32 to vector<256x1xf32>
    %8 = arith.divf %7, %6 : vector<256x1xf32>
    %9 = vector.broadcast %8 : vector<256x1xf32> to vector<256x3xf32>
    %10 = arith.mulf %0, %9 : vector<256x3xf32>
    %cst_3 = arith.constant 1.000000e+00 : f32
    %11 = vector.broadcast %cst_3 : f32 to vector<256x1xf32>
    %12 = vector.extract_strided_slice %10 {offsets = [0, 1], sizes = [256, 1], strides = [1, 1]} : vector<256x3xf32> to vector<256x1xf32>
    %cst_4 = arith.constant 1.73205078 : f32
    %13 = vector.broadcast %cst_4 : f32 to vector<256x1xf32>
    %14 = arith.mulf %13, %12 : vector<256x1xf32>
    %15 = vector.extract_strided_slice %10 {offsets = [0, 2], sizes = [256, 1], strides = [1, 1]} : vector<256x3xf32> to vector<256x1xf32>
    %cst_5 = arith.constant 1.73205078 : f32
    %16 = vector.broadcast %cst_5 : f32 to vector<256x1xf32>
    %17 = arith.mulf %16, %15 : vector<256x1xf32>
    %18 = vector.extract_strided_slice %10 {offsets = [0, 0], sizes = [256, 1], strides = [1, 1]} : vector<256x3xf32> to vector<256x1xf32>
    %cst_6 = arith.constant 1.73205078 : f32
    %19 = vector.broadcast %cst_6 : f32 to vector<256x1xf32>
    %20 = arith.mulf %19, %18 : vector<256x1xf32>
    %21 = tpu.concatenate %11, %14, %17, %20 in 1 : vector<256x1xf32>, vector<256x1xf32>, vector<256x1xf32>, vector<256x1xf32> -> vector<256x4xf32>
    %c0_7 = arith.constant 0 : index
    %c0_8 = arith.constant 0 : index
    %22 = vector.load %arg2[%c0_7, %c0_8] : memref<256x4xf32, #tpu.memory_space<vmem>>, vector<256x4xf32>
    tpu.vector_store %arg2[%c0_7, %c0_8], %21 {strides = array<i32>} : memref<256x4xf32, #tpu.memory_space<vmem>>, vector<256x4xf32>,
    %23 = tpu.iota {dimensions = array<i32: 1>} : vector<1x8xi32>
    %24 = arith.sitofp %23 : vector<1x8xi32> to vector<1x8xf32>
    %cst_9 = arith.constant 1.000000e+00 : f32
    %25 = vector.broadcast %cst_9 : f32 to vector<1x8xf32>
    %26 = arith.addf %24, %25 : vector<1x8xf32>
    %cst_10 = arith.constant 2.09439516 : f32
    %27 = vector.broadcast %cst_10 : f32 to vector<1x8xf32>
    %28 = arith.mulf %26, %27 : vector<1x8xf32>
    %29 = vector.broadcast %4 : vector<256x1xf32> to vector<256x8xf32>
    %30 = vector.broadcast %28 : vector<1x8xf32> to vector<256x8xf32>
    %31 = arith.mulf %29, %30 : vector<256x8xf32>
    %32 = math.sin %31 : vector<256x8xf32>
    %cst_11 = arith.constant 1.33333337 : f32
    %33 = vector.broadcast %cst_11 : f32 to vector<256x8xf32>
    %34 = arith.mulf %33, %32 : vector<256x8xf32>
    %35 = vector.broadcast %8 : vector<256x1xf32> to vector<256x8xf32>
    %36 = arith.mulf %34, %35 : vector<256x8xf32>
    %cst_12 = arith.constant 1.500000e+00 : f32
    %37 = vector.broadcast %cst_12 : f32 to vector<256x1xf32>
    %38 = arith.divf %4, %37 : vector<256x1xf32>
    %39 = arith.mulf %38, %38 : vector<256x1xf32>
    %40 = arith.mulf %39, %39 : vector<256x1xf32>
    %41 = arith.mulf %39, %40 : vector<256x1xf32>
    %cst_13 = arith.constant 2.800000e+01 : f32
    %42 = vector.broadcast %cst_13 : f32 to vector<256x1xf32>
    %43 = arith.mulf %42, %41 : vector<256x1xf32>
    %cst_14 = arith.constant 1.000000e+00 : f32
    %44 = vector.broadcast %cst_14 : f32 to vector<256x1xf32>
    %45 = arith.subf %44, %43 : vector<256x1xf32>
    %46 = arith.mulf %38, %38 : vector<256x1xf32>
    %47 = arith.mulf %38, %46 : vector<256x1xf32>
    %48 = arith.mulf %46, %46 : vector<256x1xf32>
    %49 = arith.mulf %47, %48 : vector<256x1xf32>
    %cst_15 = arith.constant 4.800000e+01 : f32
    %50 = vector.broadcast %cst_15 : f32 to vector<256x1xf32>
    %51 = arith.mulf %50, %49 : vector<256x1xf32>
    %52 = arith.addf %45, %51 : vector<256x1xf32>
    %53 = arith.mulf %38, %38 : vector<256x1xf32>
    %54 = arith.mulf %53, %53 : vector<256x1xf32>
    %55 = arith.mulf %54, %54 : vector<256x1xf32>
    %cst_16 = arith.constant 2.100000e+01 : f32
    %56 = vector.broadcast %cst_16 : f32 to vector<256x1xf32>
    %57 = arith.mulf %56, %55 : vector<256x1xf32>
    %58 = arith.subf %52, %57 : vector<256x1xf32>
    %cst_17 = arith.constant 1.000000e+00 : f32
    %59 = vector.broadcast %cst_17 : f32 to vector<256x1xf32>
    %60 = arith.cmpf olt, %38, %59 : vector<256x1xf32>
    %cst_18 = arith.constant 0.000000e+00 : f32
    %61 = vector.broadcast %cst_18 : f32 to vector<256x1xf32>
    %62 = arith.select %60, %58, %61 : vector<256x1xi1>, vector<256x1xf32>
    %63 = vector.broadcast %62 : vector<256x1xf32> to vector<256x8xf32>
    %64 = arith.mulf %36, %63 : vector<256x8xf32>
    %c0_19 = arith.constant 0 : index
    %c0_20 = arith.constant 0 : index
    %65 = vector.load %arg3[%c0_19, %c0_20] : memref<256x8xf32, #tpu.memory_space<vmem>>, vector<256x8xf32>
    tpu.vector_store %arg3[%c0_19, %c0_20], %64 {strides = array<i32>} : memref<256x8xf32, #tpu.memory_space<vmem>>, vector<256x8xf32>,
    return
  }
  func.func @transform_0(%arg0: i32) -> (i32, i32) {
    %c0_i32 = arith.constant 0 : i32
    %c0_i32_0 = arith.constant 0 : i32
    return %arg0, %c0_i32 : i32, i32
  }
  func.func @transform_1(%arg0: i32) -> (i32, i32) {
    %c0_i32 = arith.constant 0 : i32
    %c0_i32_0 = arith.constant 0 : i32
    return %arg0, %c0_i32 : i32, i32
  }
  func.func @transform_2(%arg0: i32) -> (i32, i32) {
    %c0_i32 = arith.constant 0 : i32
    %c0_i32_0 = arith.constant 0 : i32
    return %arg0, %c0_i32 : i32, i32
  }
}

</mosaic_0001>

<llo_original>
// kernel: tpu_custom_call.1
$region0: #{tpu_custom_call.1}
  #allocation0 [shape = 'u32[]', space=smem, size = 0x4, offset = 0x4, fixed_abs, tag = 'smem constant byte address 0x4 - core index']
  #allocation1 [shape = 'u32[144,128]{1,0:T(1,128)}', space=vmem, size = 0x12000, scoped, tag = 'internal scratch']
  %s0 = inlined_call_operand.vmem [shape: f32[256,3], index: 0, kind: input, shape index: {}]
  %s1 = inlined_call_operand.vmem [shape: f32[256,4], index: 1, kind: output, shape index: {0}]
  %s2 = inlined_call_operand.vmem [shape: f32[256,8], index: 2, kind: output, shape index: {1}]
  %3 = xla_tuple %s1, %s2
  %s4 = sld [smem:[#allocation0]]
  $region22: #{tpu_custom_call.1} parent=0
    _
  %s6 = ssub.s32 1, %s4
  %s7 = scalar_select 0, %s6, %s4
  // Predicated region
  $region2: #{tpu_custom_call.1} parent=0 // pred_check
    _
  $region3: #{tpu_custom_call.1} parent=0 // pred_check_branch
    %9 = sbr.rel (0) target = $region5
  $region4: #{tpu_custom_call.1} parent=0 // pred_region
    _
  $region5: #{tpu_custom_call.1} parent=0 // pred_fallthru
    _
  %v10 = vld [vmem:[%s0] sm:$0xff]
  %v11 = vld [vmem:[%s0 + $0x8] sm:$0xff]
  %v12 = vld [vmem:[%s0 + $0x10] sm:$0xff]
  %v13 = vld [vmem:[%s0 + $0x18] sm:$0xff]
  %v14 = vld [vmem:[%s0 + $0x20] sm:$0xff]
  %v15 = vld [vmem:[%s0 + $0x28] sm:$0xff]
  %v16 = vld [vmem:[%s0 + $0x30] sm:$0xff]
  %v17 = vld [vmem:[%s0 + $0x38] sm:$0xff]
  %v18 = vld [vmem:[%s0 + $0x40] sm:$0xff]
  %v19 = vld [vmem:[%s0 + $0x48] sm:$0xff]
  %v20 = vld [vmem:[%s0 + $0x50] sm:$0xff]
  %v21 = vld [vmem:[%s0 + $0x58] sm:$0xff]
  %v22 = vld [vmem:[%s0 + $0x60] sm:$0xff]
  %v23 = vld [vmem:[%s0 + $0x68] sm:$0xff]
  %v24 = vld [vmem:[%s0 + $0x70] sm:$0xff]
  %v25 = vld [vmem:[%s0 + $0x78] sm:$0xff]
  %v26 = vld [vmem:[%s0 + $0x80] sm:$0xff]
  %v27 = vld [vmem:[%s0 + $0x88] sm:$0xff]
  %v28 = vld [vmem:[%s0 + $0x90] sm:$0xff]
  %v29 = vld [vmem:[%s0 + $0x98] sm:$0xff]
  %v30 = vld [vmem:[%s0 + $0xa0] sm:$0xff]
  %v31 = vld [vmem:[%s0 + $0xa8] sm:$0xff]
  %v32 = vld [vmem:[%s0 + $0xb0] sm:$0xff]
  %v33 = vld [vmem:[%s0 + $0xb8] sm:$0xff]
  %v34 = vld [vmem:[%s0 + $0xc0] sm:$0xff]
  %v35 = vld [vmem:[%s0 + $0xc8] sm:$0xff]
  %v36 = vld [vmem:[%s0 + $0xd0] sm:$0xff]
  %v37 = vld [vmem:[%s0 + $0xd8] sm:$0xff]
  %v38 = vld [vmem:[%s0 + $0xe0] sm:$0xff]
  %v39 = vld [vmem:[%s0 + $0xe8] sm:$0xff]
  %v40 = vld [vmem:[%s0 + $0xf0] sm:$0xff]
  %v41 = vld [vmem:[%s0 + $0xf8] sm:$0xff]
  %v42 = vmul.f32 %v10, %v10
  %v43 = vmul.f32 %v11, %v11
  %v44 = vmul.f32 %v12, %v12
  %v45 = vmul.f32 %v13, %v13
  %v46 = vmul.f32 %v14, %v14
  %v47 = vmul.f32 %v15, %v15
  %v48 = vmul.f32 %v16, %v16
  %v49 = vmul.f32 %v17, %v17
  %v50 = vmul.f32 %v18, %v18
  %v51 = vmul.f32 %v19, %v19
  %v52 = vmul.f32 %v20, %v20
  %v53 = vmul.f32 %v21, %v21
  %v54 = vmul.f32 %v22, %v22
  %v55 = vmul.f32 %v23, %v23
  %v56 = vmul.f32 %v24, %v24
  %v57 = vmul.f32 %v25, %v25
  %v58 = vmul.f32 %v26, %v26
  %v59 = vmul.f32 %v27, %v27
  %v60 = vmul.f32 %v28, %v28
  %v61 = vmul.f32 %v29, %v29
  %v62 = vmul.f32 %v30, %v30
  %v63 = vmul.f32 %v31, %v31
  %v64 = vmul.f32 %v32, %v32
  %v65 = vmul.f32 %v33, %v33
  %v66 = vmul.f32 %v34, %v34
  %v67 = vmul.f32 %v35, %v35
  %v68 = vmul.f32 %v36, %v36
  %v69 = vmul.f32 %v37, %v37
  %v70 = vmul.f32 %v38, %v38
  %v71 = vmul.f32 %v39, %v39
  %v72 = vmul.f32 %v40, %v40
  %v73 = vmul.f32 %v41, %v41
  %vm74 = vcmask 23552
  %v75 = vsel %vm74, %v42, 0.0
  %76 = vadd.xlane.f32.xlu0 %v75
  %v77 = vpop.xlane.xlu0 %76
  %v78 = vsel %vm74, %v43, 0.0
  %79 = vadd.xlane.f32.xlu0 %v78
  %v80 = vpop.xlane.xlu0 %79
  %v81 = vsel %vm74, %v44, 0.0
  %82 = vadd.xlane.f32.xlu0 %v81
  %v83 = vpop.xlane.xlu0 %82
  %v84 = vsel %vm74, %v45, 0.0
  %85 = vadd.xlane.f32.xlu0 %v84
  %v86 = vpop.xlane.xlu0 %85
  %v87 = vsel %vm74, %v46, 0.0
  %88 = vadd.xlane.f32.xlu0 %v87
  %v89 = vpop.xlane.xlu0 %88
  %v90 = vsel %vm74, %v47, 0.0
  %91 = vadd.xlane.f32.xlu0 %v90
  %v92 = vpop.xlane.xlu0 %91
  %v93 = vsel %vm74, %v48, 0.0
  %94 = vadd.xlane.f32.xlu0 %v93
  %v95 = vpop.xlane.xlu0 %94
  %v96 = vsel %vm74, %v49, 0.0
  %97 = vadd.xlane.f32.xlu0 %v96
  %v98 = vpop.xlane.xlu0 %97
  %v99 = vsel %vm74, %v50, 0.0
  %100 = vadd.xlane.f32.xlu0 %v99
  %v101 = vpop.xlane.xlu0 %100
  %v102 = vsel %vm74, %v51, 0.0
  %103 = vadd.xlane.f32.xlu0 %v102
  %v104 = vpop.xlane.xlu0 %103
  %v105 = vsel %vm74, %v52, 0.0
  %106 = vadd.xlane.f32.xlu0 %v105
  %v107 = vpop.xlane.xlu0 %106
  %v108 = vsel %vm74, %v53, 0.0
  %109 = vadd.xlane.f32.xlu0 %v108
  %v110 = vpop.xlane.xlu0 %109
  %v111 = vsel %vm74, %v54, 0.0
  %112 = vadd.xlane.f32.xlu0 %v111
  %v113 = vpop.xlane.xlu0 %112
  %v114 = vsel %vm74, %v55, 0.0
  %115 = vadd.xlane.f32.xlu0 %v114
  %v116 = vpop.xlane.xlu0 %115
  %v117 = vsel %vm74, %v56, 0.0
  %118 = vadd.xlane.f32.xlu0 %v117
  %v119 = vpop.xlane.xlu0 %118
  %v120 = vsel %vm74, %v57, 0.0
  %121 = vadd.xlane.f32.xlu0 %v120
  %v122 = vpop.xlane.xlu0 %121
  %v123 = vsel %vm74, %v58, 0.0
  %124 = vadd.xlane.f32.xlu0 %v123
  %v125 = vpop.xlane.xlu0 %124
  %v126 = vsel %vm74, %v59, 0.0
  %127 = vadd.xlane.f32.xlu0 %v126
  %v128 = vpop.xlane.xlu0 %127
  %v129 = vsel %vm74, %v60, 0.0
  %130 = vadd.xlane.f32.xlu0 %v129
  %v131 = vpop.xlane.xlu0 %130
  %v132 = vsel %vm74, %v61, 0.0
  %133 = vadd.xlane.f32.xlu0 %v132
  %v134 = vpop.xlane.xlu0 %133
  %v135 = vsel %vm74, %v62, 0.0
  %136 = vadd.xlane.f32.xlu0 %v135
  %v137 = vpop.xlane.xlu0 %136
  %v138 = vsel %vm74, %v63, 0.0
  %139 = vadd.xlane.f32.xlu0 %v138
  %v140 = vpop.xlane.xlu0 %139
  %v141 = vsel %vm74, %v64, 0.0
  %142 = vadd.xlane.f32.xlu0 %v141
  %v143 = vpop.xlane.xlu0 %142
  %v144 = vsel %vm74, %v65, 0.0
  %145 = vadd.xlane.f32.xlu0 %v144
  %v146 = vpop.xlane.xlu0 %145
  %v147 = vsel %vm74, %v66, 0.0
  %148 = vadd.xlane.f32.xlu0 %v147
  %v149 = vpop.xlane.xlu0 %148
  %v150 = vsel %vm74, %v67, 0.0
  %151 = vadd.xlane.f32.xlu0 %v150
  %v152 = vpop.xlane.xlu0 %151
  %v153 = vsel %vm74, %v68, 0.0
  %154 = vadd.xlane.f32.xlu0 %v153
  %v155 = vpop.xlane.xlu0 %154
  %v156 = vsel %vm74, %v69, 0.0
  %157 = vadd.xlane.f32.xlu0 %v156
  %v158 = vpop.xlane.xlu0 %157
  %v159 = vsel %vm74, %v70, 0.0
  %160 = vadd.xlane.f32.xlu0 %v159
  %v161 = vpop.xlane.xlu0 %160
  %v162 = vsel %vm74, %v71, 0.0
  %163 = vadd.xlane.f32.xlu0 %v162
  %v164 = vpop.xlane.xlu0 %163
  %v165 = vsel %vm74, %v72, 0.0
  %166 = vadd.xlane.f32.xlu0 %v165
  %v167 = vpop.xlane.xlu0 %166
  %v168 = vsel %vm74, %v73, 0.0
  %169 = vadd.xlane.f32.xlu0 %v168
  %v170 = vpop.xlane.xlu0 %169
  %v171 = vrsqrt.pop %v77
  %v172 = vmul.f32 %v77, %v171
  %vm173 = vcmp.eq.f32.partialorder %v77, inf
  %v174 = vsel %vm173, %v77, %v172
  %vm175 = vcmp.eq.f32.partialorder %v77, 0.0
  %v176 = vand.u32 %v77, 2147483648
  %v177 = vsel %vm175, %v176, %v174
  %v178 = vrsqrt.pop %v80
  %v179 = vmul.f32 %v80, %v178
  %vm180 = vcmp.eq.f32.partialorder %v80, inf
  %v181 = vsel %vm180, %v80, %v179
  %vm182 = vcmp.eq.f32.partialorder %v80, 0.0
  %v183 = vand.u32 %v80, 2147483648
  %v184 = vsel %vm182, %v183, %v181
  %v185 = vrsqrt.pop %v83
  %v186 = vmul.f32 %v83, %v185
  %vm187 = vcmp.eq.f32.partialorder %v83, inf
  %v188 = vsel %vm187, %v83, %v186
  %vm189 = vcmp.eq.f32.partialorder %v83, 0.0
  %v190 = vand.u32 %v83, 2147483648
  %v191 = vsel %vm189, %v190, %v188
  %v192 = vrsqrt.pop %v86
  %v193 = vmul.f32 %v86, %v192
  %vm194 = vcmp.eq.f32.partialorder %v86, inf
  %v195 = vsel %vm194, %v86, %v193
  %vm196 = vcmp.eq.f32.partialorder %v86, 0.0
  %v197 = vand.u32 %v86, 2147483648
  %v198 = vsel %vm196, %v197, %v195
  %v199 = vrsqrt.pop %v89
  %v200 = vmul.f32 %v89, %v199
  %vm201 = vcmp.eq.f32.partialorder %v89, inf
  %v202 = vsel %vm201, %v89, %v200
  %vm203 = vcmp.eq.f32.partialorder %v89, 0.0
  %v204 = vand.u32 %v89, 2147483648
  %v205 = vsel %vm203, %v204, %v202
  %v206 = vrsqrt.pop %v92
  %v207 = vmul.f32 %v92, %v206
  %vm208 = vcmp.eq.f32.partialorder %v92, inf
  %v209 = vsel %vm208, %v92, %v207
  %vm210 = vcmp.eq.f32.partialorder %v92, 0.0
  %v211 = vand.u32 %v92, 2147483648
  %v212 = vsel %vm210, %v211, %v209
  %v213 = vrsqrt.pop %v95
  %v214 = vmul.f32 %v95, %v213
  %vm215 = vcmp.eq.f32.partialorder %v95, inf
  %v216 = vsel %vm215, %v95, %v214
  %vm217 = vcmp.eq.f32.partialorder %v95, 0.0
  %v218 = vand.u32 %v95, 2147483648
  %v219 = vsel %vm217, %v218, %v216
  %v220 = vrsqrt.pop %v98
  %v221 = vmul.f32 %v98, %v220
  %vm222 = vcmp.eq.f32.partialorder %v98, inf
  %v223 = vsel %vm222, %v98, %v221
  %vm224 = vcmp.eq.f32.partialorder %v98, 0.0
  %v225 = vand.u32 %v98, 2147483648
  %v226 = vsel %vm224, %v225, %v223
  %v227 = vrsqrt.pop %v101
  %v228 = vmul.f32 %v101, %v227
  %vm229 = vcmp.eq.f32.partialorder %v101, inf
  %v230 = vsel %vm229, %v101, %v228
  %vm231 = vcmp.eq.f32.partialorder %v101, 0.0
  %v232 = vand.u32 %v101, 2147483648
  %v233 = vsel %vm231, %v232, %v230
  %v234 = vrsqrt.pop %v104
  %v235 = vmul.f32 %v104, %v234
  %vm236 = vcmp.eq.f32.partialorder %v104, inf
  %v237 = vsel %vm236, %v104, %v235
  %vm238 = vcmp.eq.f32.partialorder %v104, 0.0
  %v239 = vand.u32 %v104, 2147483648
  %v240 = vsel %vm238, %v239, %v237
  %v241 = vrsqrt.pop %v107
  %v242 = vmul.f32 %v107, %v241
  %vm243 = vcmp.eq.f32.partialorder %v107, inf
  %v244 = vsel %vm243, %v107, %v242
  %vm245 = vcmp.eq.f32.partialorder %v107, 0.0
  %v246 = vand.u32 %v107, 2147483648
  %v247 = vsel %vm245, %v246, %v244
  %v248 = vrsqrt.pop %v110
  %v249 = vmul.f32 %v110, %v248
  %vm250 = vcmp.eq.f32.partialorder %v110, inf
  %v251 = vsel %vm250, %v110, %v249
  %vm252 = vcmp.eq.f32.partialorder %v110, 0.0
  %v253 = vand.u32 %v110, 2147483648
  %v254 = vsel %vm252, %v253, %v251
  %v255 = vrsqrt.pop %v113
  %v256 = vmul.f32 %v113, %v255
  %vm257 = vcmp.eq.f32.partialorder %v113, inf
  %v258 = vsel %vm257, %v113, %v256
  %vm259 = vcmp.eq.f32.partialorder %v113, 0.0
  %v260 = vand.u32 %v113, 2147483648
  %v261 = vsel %vm259, %v260, %v258
  %v262 = vrsqrt.pop %v116
  %v263 = vmul.f32 %v116, %v262
  %vm264 = vcmp.eq.f32.partialorder %v116, inf
  %v265 = vsel %vm264, %v116, %v263
  %vm266 = vcmp.eq.f32.partialorder %v116, 0.0
  %v267 = vand.u32 %v116, 2147483648
  %v268 = vsel %vm266, %v267, %v265
  %v269 = vrsqrt.pop %v119
  %v270 = vmul.f32 %v119, %v269
  %vm271 = vcmp.eq.f32.partialorder %v119, inf
  %v272 = vsel %vm271, %v119, %v270
  %vm273 = vcmp.eq.f32.partialorder %v119, 0.0
  %v274 = vand.u32 %v119, 2147483648
  %v275 = vsel %vm273, %v274, %v272
  %v276 = vrsqrt.pop %v122
  %v277 = vmul.f32 %v122, %v276
  %vm278 = vcmp.eq.f32.partialorder %v122, inf
  %v279 = vsel %vm278, %v122, %v277
  %vm280 = vcmp.eq.f32.partialorder %v122, 0.0
  %v281 = vand.u32 %v122, 2147483648
  %v282 = vsel %vm280, %v281, %v279
  %v283 = vrsqrt.pop %v125
  %v284 = vmul.f32 %v125, %v283
  %vm285 = vcmp.eq.f32.partialorder %v125, inf
  %v286 = vsel %vm285, %v125, %v284
  %vm287 = vcmp.eq.f32.partialorder %v125, 0.0
  %v288 = vand.u32 %v125, 2147483648
  %v289 = vsel %vm287, %v288, %v286
  %v290 = vrsqrt.pop %v128
  %v291 = vmul.f32 %v128, %v290
  %vm292 = vcmp.eq.f32.partialorder %v128, inf
  %v293 = vsel %vm292, %v128, %v291
  %vm294 = vcmp.eq.f32.partialorder %v128, 0.0
  %v295 = vand.u32 %v128, 2147483648
  %v296 = vsel %vm294, %v295, %v293
  %v297 = vrsqrt.pop %v131
  %v298 = vmul.f32 %v131, %v297
  %vm299 = vcmp.eq.f32.partialorder %v131, inf
  %v300 = vsel %vm299, %v131, %v298
  %vm301 = vcmp.eq.f32.partialorder %v131, 0.0
  %v302 = vand.u32 %v131, 2147483648
  %v303 = vsel %vm301, %v302, %v300
  %v304 = vrsqrt.pop %v134
  %v305 = vmul.f32 %v134, %v304
  %vm306 = vcmp.eq.f32.partialorder %v134, inf
  %v307 = vsel %vm306, %v134, %v305
  %vm308 = vcmp.eq.f32.partialorder %v134, 0.0
  %v309 = vand.u32 %v134, 2147483648
  %v310 = vsel %vm308, %v309, %v307
  %v311 = vrsqrt.pop %v137
  %v312 = vmul.f32 %v137, %v311
  %vm313 = vcmp.eq.f32.partialorder %v137, inf
  %v314 = vsel %vm313, %v137, %v312
  %vm315 = vcmp.eq.f32.partialorder %v137, 0.0
  %v316 = vand.u32 %v137, 2147483648
  %v317 = vsel %vm315, %v316, %v314
  %v318 = vrsqrt.pop %v140
  %v319 = vmul.f32 %v140, %v318
  %vm320 = vcmp.eq.f32.partialorder %v140, inf
  %v321 = vsel %vm320, %v140, %v319
  %vm322 = vcmp.eq.f32.partialorder %v140, 0.0
  %v323 = vand.u32 %v140, 2147483648
  %v324 = vsel %vm322, %v323, %v321
  %v325 = vrsqrt.pop %v143
  %v326 = vmul.f32 %v143, %v325
  %vm327 = vcmp.eq.f32.partialorder %v143, inf
  %v328 = vsel %vm327, %v143, %v326
  %vm329 = vcmp.eq.f32.partialorder %v143, 0.0
  %v330 = vand.u32 %v143, 2147483648
  %v331 = vsel %vm329, %v330, %v328
  %v332 = vrsqrt.pop %v146
  %v333 = vmul.f32 %v146, %v332
  %vm334 = vcmp.eq.f32.partialorder %v146, inf
  %v335 = vsel %vm334, %v146, %v333
  %vm336 = vcmp.eq.f32.partialorder %v146, 0.0
  %v337 = vand.u32 %v146, 2147483648
  %v338 = vsel %vm336, %v337, %v335
  %v339 = vrsqrt.pop %v149
  %v340 = vmul.f32 %v149, %v339
  %vm341 = vcmp.eq.f32.partialorder %v149, inf
  %v342 = vsel %vm341, %v149, %v340
  %vm343 = vcmp.eq.f32.partialorder %v149, 0.0
  %v344 = vand.u32 %v149, 2147483648
  %v345 = vsel %vm343, %v344, %v342
  %v346 = vrsqrt.pop %v152
  %v347 = vmul.f32 %v152, %v346
  %vm348 = vcmp.eq.f32.partialorder %v152, inf
  %v349 = vsel %vm348, %v152, %v347
  %vm350 = vcmp.eq.f32.partialorder %v152, 0.0
  %v351 = vand.u32 %v152, 2147483648
  %v352 = vsel %vm350, %v351, %v349
  %v353 = vrsqrt.pop %v155
  %v354 = vmul.f32 %v155, %v353
  %vm355 = vcmp.eq.f32.partialorder %v155, inf
  %v356 = vsel %vm355, %v155, %v354
  %vm357 = vcmp.eq.f32.partialorder %v155, 0.0
  %v358 = vand.u32 %v155, 2147483648
  %v359 = vsel %vm357, %v358, %v356
  %v360 = vrsqrt.pop %v158
  %v361 = vmul.f32 %v158, %v360
  %vm362 = vcmp.eq.f32.partialorder %v158, inf
  %v363 = vsel %vm362, %v158, %v361
  %vm364 = vcmp.eq.f32.partialorder %v158, 0.0
  %v365 = vand.u32 %v158, 2147483648
  %v366 = vsel %vm364, %v365, %v363
  %v367 = vrsqrt.pop %v161
  %v368 = vmul.f32 %v161, %v367
  %vm369 = vcmp.eq.f32.partialorder %v161, inf
  %v370 = vsel %vm369, %v161, %v368
  %vm371 = vcmp.eq.f32.partialorder %v161, 0.0
  %v372 = vand.u32 %v161, 2147483648
  %v373 = vsel %vm371, %v372, %v370
  %v374 = vrsqrt.pop %v164
  %v375 = vmul.f32 %v164, %v374
  %vm376 = vcmp.eq.f32.partialorder %v164, inf
  %v377 = vsel %vm376, %v164, %v375
  %vm378 = vcmp.eq.f32.partialorder %v164, 0.0
  %v379 = vand.u32 %v164, 2147483648
  %v380 = vsel %vm378, %v379, %v377
  %v381 = vrsqrt.pop %v167
  %v382 = vmul.f32 %v167, %v381
  %vm383 = vcmp.eq.f32.partialorder %v167, inf
  %v384 = vsel %vm383, %v167, %v382
  %vm385 = vcmp.eq.f32.partialorder %v167, 0.0
  %v386 = vand.u32 %v167, 2147483648
  %v387 = vsel %vm385, %v386, %v384
  %v388 = vrsqrt.pop %v170
  %v389 = vmul.f32 %v170, %v388
  %vm390 = vcmp.eq.f32.partialorder %v170, inf
  %v391 = vsel %vm390, %v170, %v389
  %vm392 = vcmp.eq.f32.partialorder %v170, 0.0
  %v393 = vand.u32 %v170, 2147483648
  %v394 = vsel %vm392, %v393, %v391
  %v395 = vmax.f32 %v177, 1e-09
  %v396 = vmax.f32 %v184, 1e-09
  %v397 = vmax.f32 %v191, 1e-09
  %v398 = vmax.f32 %v198, 1e-09
  %v399 = vmax.f32 %v205, 1e-09
  %v400 = vmax.f32 %v212, 1e-09
  %v401 = vmax.f32 %v219, 1e-09
  %v402 = vmax.f32 %v226, 1e-09
  %v403 = vmax.f32 %v233, 1e-09
  %v404 = vmax.f32 %v240, 1e-09
  %v405 = vmax.f32 %v247, 1e-09
  %v406 = vmax.f32 %v254, 1e-09
  %v407 = vmax.f32 %v261, 1e-09
  %v408 = vmax.f32 %v268, 1e-09
  %v409 = vmax.f32 %v275, 1e-09
  %v410 = vmax.f32 %v282, 1e-09
  %v411 = vmax.f32 %v289, 1e-09
  %v412 = vmax.f32 %v296, 1e-09
  %v413 = vmax.f32 %v303, 1e-09
  %v414 = vmax.f32 %v310, 1e-09
  %v415 = vmax.f32 %v317, 1e-09
  %v416 = vmax.f32 %v324, 1e-09
  %v417 = vmax.f32 %v331, 1e-09
  %v418 = vmax.f32 %v338, 1e-09
  %v419 = vmax.f32 %v345, 1e-09
  %v420 = vmax.f32 %v352, 1e-09
  %v421 = vmax.f32 %v359, 1e-09
  %v422 = vmax.f32 %v366, 1e-09
  %v423 = vmax.f32 %v373, 1e-09
  %v424 = vmax.f32 %v380, 1e-09
  %v425 = vmax.f32 %v387, 1e-09
  %v426 = vmax.f32 %v394, 1e-09
  %v427 = vrcp.pop %v395
  %v428 = vmul.f32 1.0, %v427
  %v429 = vrcp.pop %v396
  %v430 = vmul.f32 1.0, %v429
  %v431 = vrcp.pop %v397
  %v432 = vmul.f32 1.0, %v431
  %v433 = vrcp.pop %v398
  %v434 = vmul.f32 1.0, %v433
  %v435 = vrcp.pop %v399
  %v436 = vmul.f32 1.0, %v435
  %v437 = vrcp.pop %v400
  %v438 = vmul.f32 1.0, %v437
  %v439 = vrcp.pop %v401
  %v440 = vmul.f32 1.0, %v439
  %v441 = vrcp.pop %v402
  %v442 = vmul.f32 1.0, %v441
  %v443 = vrcp.pop %v403
  %v444 = vmul.f32 1.0, %v443
  %v445 = vrcp.pop %v404
  %v446 = vmul.f32 1.0, %v445
  %v447 = vrcp.pop %v405
  %v448 = vmul.f32 1.0, %v447
  %v449 = vrcp.pop %v406
  %v450 = vmul.f32 1.0, %v449
  %v451 = vrcp.pop %v407
  %v452 = vmul.f32 1.0, %v451
  %v453 = vrcp.pop %v408
  %v454 = vmul.f32 1.0, %v453
  %v455 = vrcp.pop %v409
  %v456 = vmul.f32 1.0, %v455
  %v457 = vrcp.pop %v410
  %v458 = vmul.f32 1.0, %v457
  %v459 = vrcp.pop %v411
  %v460 = vmul.f32 1.0, %v459
  %v461 = vrcp.pop %v412
  %v462 = vmul.f32 1.0, %v461
  %v463 = vrcp.pop %v413
  %v464 = vmul.f32 1.0, %v463
  %v465 = vrcp.pop %v414
  %v466 = vmul.f32 1.0, %v465
  %v467 = vrcp.pop %v415
  %v468 = vmul.f32 1.0, %v467
  %v469 = vrcp.pop %v416
  %v470 = vmul.f32 1.0, %v469
  %v471 = vrcp.pop %v417
  %v472 = vmul.f32 1.0, %v471
  %v473 = vrcp.pop %v418
  %v474 = vmul.f32 1.0, %v473
  %v475 = vrcp.pop %v419
  %v476 = vmul.f32 1.0, %v475
  %v477 = vrcp.pop %v420
  %v478 = vmul.f32 1.0, %v477
  %v479 = vrcp.pop %v421
  %v480 = vmul.f32 1.0, %v479
  %v481 = vrcp.pop %v422
  %v482 = vmul.f32 1.0, %v481
  %v483 = vrcp.pop %v423
  %v484 = vmul.f32 1.0, %v483
  %v485 = vrcp.pop %v424
  %v486 = vmul.f32 1.0, %v485
  %v487 = vrcp.pop %v425
  %v488 = vmul.f32 1.0, %v487
  %v489 = vrcp.pop %v426
  %v490 = vmul.f32 1.0, %v489
  %v491 = vmul.f32 %v10, %v428
  %v492 = vmul.f32 %v11, %v430
  %v493 = vmul.f32 %v12, %v432
  %v494 = vmul.f32 %v13, %v434
  %v495 = vmul.f32 %v14, %v436
  %v496 = vmul.f32 %v15, %v438
  %v497 = vmul.f32 %v16, %v440
  %v498 = vmul.f32 %v17, %v442
  %v499 = vmul.f32 %v18, %v444
  %v500 = vmul.f32 %v19, %v446
  %v501 = vmul.f32 %v20, %v448
  %v502 = vmul.f32 %v21, %v450
  %v503 = vmul.f32 %v22, %v452
  %v504 = vmul.f32 %v23, %v454
  %v505 = vmul.f32 %v24, %v456
  %v506 = vmul.f32 %v25, %v458
  %v507 = vmul.f32 %v26, %v460
  %v508 = vmul.f32 %v27, %v462
  %v509 = vmul.f32 %v28, %v464
  %v510 = vmul.f32 %v29, %v466
  %v511 = vmul.f32 %v30, %v468
  %v512 = vmul.f32 %v31, %v470
  %v513 = vmul.f32 %v32, %v472
  %v514 = vmul.f32 %v33, %v474
  %v515 = vmul.f32 %v34, %v476
  %v516 = vmul.f32 %v35, %v478
  %v517 = vmul.f32 %v36, %v480
  %v518 = vmul.f32 %v37, %v482
  %v519 = vmul.f32 %v38, %v484
  %v520 = vmul.f32 %v39, %v486
  %v521 = vmul.f32 %v40, %v488
  %v522 = vmul.f32 %v41, %v490
  %v523 = vmul.f32 %v491, 1.7320508
  %v524 = vmul.f32 %v492, 1.7320508
  %v525 = vmul.f32 %v493, 1.7320508
  %v526 = vmul.f32 %v494, 1.7320508
  %v527 = vmul.f32 %v495, 1.7320508
  %v528 = vmul.f32 %v496, 1.7320508
  %v529 = vmul.f32 %v497, 1.7320508
  %v530 = vmul.f32 %v498, 1.7320508
  %v531 = vmul.f32 %v499, 1.7320508
  %v532 = vmul.f32 %v500, 1.7320508
  %v533 = vmul.f32 %v501, 1.7320508
  %v534 = vmul.f32 %v502, 1.7320508
  %v535 = vmul.f32 %v503, 1.7320508
  %v536 = vmul.f32 %v504, 1.7320508
  %v537 = vmul.f32 %v505, 1.7320508
  %v538 = vmul.f32 %v506, 1.7320508
  %v539 = vmul.f32 %v507, 1.7320508
  %v540 = vmul.f32 %v508, 1.7320508
  %v541 = vmul.f32 %v509, 1.7320508
  %v542 = vmul.f32 %v510, 1.7320508
  %v543 = vmul.f32 %v511, 1.7320508
  %v544 = vmul.f32 %v512, 1.7320508
  %v545 = vmul.f32 %v513, 1.7320508
  %v546 = vmul.f32 %v514, 1.7320508
  %v547 = vmul.f32 %v515, 1.7320508
  %v548 = vmul.f32 %v516, 1.7320508
  %v549 = vmul.f32 %v517, 1.7320508
  %v550 = vmul.f32 %v518, 1.7320508
  %v551 = vmul.f32 %v519, 1.7320508
  %v552 = vmul.f32 %v520, 1.7320508
  %v553 = vmul.f32 %v521, 1.7320508
  %v554 = vmul.f32 %v522, 1.7320508
  %587 = vrot.lane.b32.xlu0 %v523, 3
  %v588 = vpop.permute.xlu0 %587
  %589 = vrot.lane.b32.xlu0 %v524, 3
  %v590 = vpop.permute.xlu0 %589
  %591 = vrot.lane.b32.xlu0 %v525, 3
  %v592 = vpop.permute.xlu0 %591
  %593 = vrot.lane.b32.xlu0 %v526, 3
  %v594 = vpop.permute.xlu0 %593
  %595 = vrot.lane.b32.xlu0 %v527, 3
  %v596 = vpop.permute.xlu0 %595
  %597 = vrot.lane.b32.xlu0 %v528, 3
  %v598 = vpop.permute.xlu0 %597
  %599 = vrot.lane.b32.xlu0 %v529, 3
  %v600 = vpop.permute.xlu0 %599
  %601 = vrot.lane.b32.xlu0 %v530, 3
  %v602 = vpop.permute.xlu0 %601
  %603 = vrot.lane.b32.xlu0 %v531, 3
  %v604 = vpop.permute.xlu0 %603
  %605 = vrot.lane.b32.xlu0 %v532, 3
  %v606 = vpop.permute.xlu0 %605
  %607 = vrot.lane.b32.xlu0 %v533, 3
  %v608 = vpop.permute.xlu0 %607
  %609 = vrot.lane.b32.xlu0 %v534, 3
  %v610 = vpop.permute.xlu0 %609
  %611 = vrot.lane.b32.xlu0 %v535, 3
  %v612 = vpop.permute.xlu0 %611
  %613 = vrot.lane.b32.xlu0 %v536, 3
  %v614 = vpop.permute.xlu0 %613
  %615 = vrot.lane.b32.xlu0 %v537, 3
  %v616 = vpop.permute.xlu0 %615
  %617 = vrot.lane.b32.xlu0 %v538, 3
  %v618 = vpop.permute.xlu0 %617
  %619 = vrot.lane.b32.xlu0 %v539, 3
  %v620 = vpop.permute.xlu0 %619
  %621 = vrot.lane.b32.xlu0 %v540, 3
  %v622 = vpop.permute.xlu0 %621
  %623 = vrot.lane.b32.xlu0 %v541, 3
  %v624 = vpop.permute.xlu0 %623
  %625 = vrot.lane.b32.xlu0 %v542, 3
  %v626 = vpop.permute.xlu0 %625
  %627 = vrot.lane.b32.xlu0 %v543, 3
  %v628 = vpop.permute.xlu0 %627
  %629 = vrot.lane.b32.xlu0 %v544, 3
  %v630 = vpop.permute.xlu0 %629
  %631 = vrot.lane.b32.xlu0 %v545, 3
  %v632 = vpop.permute.xlu0 %631
  %633 = vrot.lane.b32.xlu0 %v546, 3
  %v634 = vpop.permute.xlu0 %633
  %635 = vrot.lane.b32.xlu0 %v547, 3
  %v636 = vpop.permute.xlu0 %635
  %637 = vrot.lane.b32.xlu0 %v548, 3
  %v638 = vpop.permute.xlu0 %637
  %639 = vrot.lane.b32.xlu0 %v549, 3
  %v640 = vpop.permute.xlu0 %639
  %641 = vrot.lane.b32.xlu0 %v550, 3
  %v642 = vpop.permute.xlu0 %641
  %643 = vrot.lane.b32.xlu0 %v551, 3
  %v644 = vpop.permute.xlu0 %643
  %645 = vrot.lane.b32.xlu0 %v552, 3
  %v646 = vpop.permute.xlu0 %645
  %647 = vrot.lane.b32.xlu0 %v553, 3
  %v648 = vpop.permute.xlu0 %647
  %649 = vrot.lane.b32.xlu0 %v554, 3
  %v650 = vpop.permute.xlu0 %649
  %vm683 = vcmask 7168
  %v684 = vsel %vm683, 1.0, %v523
  %v685 = vsel %vm683, 1.0, %v524
  %v686 = vsel %vm683, 1.0, %v525
  %v687 = vsel %vm683, 1.0, %v526
  %v688 = vsel %vm683, 1.0, %v527
  %v689 = vsel %vm683, 1.0, %v528
  %v690 = vsel %vm683, 1.0, %v529
  %v691 = vsel %vm683, 1.0, %v530
  %v692 = vsel %vm683, 1.0, %v531
  %v693 = vsel %vm683, 1.0, %v532
  %v694 = vsel %vm683, 1.0, %v533
  %v695 = vsel %vm683, 1.0, %v534
  %v696 = vsel %vm683, 1.0, %v535
  %v697 = vsel %vm683, 1.0, %v536
  %v698 = vsel %vm683, 1.0, %v537
  %v699 = vsel %vm683, 1.0, %v538
  %v700 = vsel %vm683, 1.0, %v539
  %v701 = vsel %vm683, 1.0, %v540
  %v702 = vsel %vm683, 1.0, %v541
  %v703 = vsel %vm683, 1.0, %v542
  %v704 = vsel %vm683, 1.0, %v543
  %v705 = vsel %vm683, 1.0, %v544
  %v706 = vsel %vm683, 1.0, %v545
  %v707 = vsel %vm683, 1.0, %v546
  %v708 = vsel %vm683, 1.0, %v547
  %v709 = vsel %vm683, 1.0, %v548
  %v710 = vsel %vm683, 1.0, %v549
  %v711 = vsel %vm683, 1.0, %v550
  %v712 = vsel %vm683, 1.0, %v551
  %v713 = vsel %vm683, 1.0, %v552
  %v714 = vsel %vm683, 1.0, %v553
  %v715 = vsel %vm683, 1.0, %v554
  %vm716 = vcmask 15360
  %v717 = vsel %vm716, %v684, %v523
  %v718 = vsel %vm716, %v685, %v524
  %v719 = vsel %vm716, %v686, %v525
  %v720 = vsel %vm716, %v687, %v526
  %v721 = vsel %vm716, %v688, %v527
  %v722 = vsel %vm716, %v689, %v528
  %v723 = vsel %vm716, %v690, %v529
  %v724 = vsel %vm716, %v691, %v530
  %v725 = vsel %vm716, %v692, %v531
  %v726 = vsel %vm716, %v693, %v532
  %v727 = vsel %vm716, %v694, %v533
  %v728 = vsel %vm716, %v695, %v534
  %v729 = vsel %vm716, %v696, %v535
  %v730 = vsel %vm716, %v697, %v536
  %v731 = vsel %vm716, %v698, %v537
  %v732 = vsel %vm716, %v699, %v538
  %v733 = vsel %vm716, %v700, %v539
  %v734 = vsel %vm716, %v701, %v540
  %v735 = vsel %vm716, %v702, %v541
  %v736 = vsel %vm716, %v703, %v542
  %v737 = vsel %vm716, %v704, %v543
  %v738 = vsel %vm716, %v705, %v544
  %v739 = vsel %vm716, %v706, %v545
  %v740 = vsel %vm716, %v707, %v546
  %v741 = vsel %vm716, %v708, %v547
  %v742 = vsel %vm716, %v709, %v548
  %v743 = vsel %vm716, %v710, %v549
  %v744 = vsel %vm716, %v711, %v550
  %v745 = vsel %vm716, %v712, %v551
  %v746 = vsel %vm716, %v713, %v552
  %v747 = vsel %vm716, %v714, %v553
  %v748 = vsel %vm716, %v715, %v554
  %v749 = vsel %vm74, %v717, %v588
  %v750 = vsel %vm74, %v718, %v590
  %v751 = vsel %vm74, %v719, %v592
  %v752 = vsel %vm74, %v720, %v594
  %v753 = vsel %vm74, %v721, %v596
  %v754 = vsel %vm74, %v722, %v598
  %v755 = vsel %vm74, %v723, %v600
  %v756 = vsel %vm74, %v724, %v602
  %v757 = vsel %vm74, %v725, %v604
  %v758 = vsel %vm74, %v726, %v606
  %v759 = vsel %vm74, %v727, %v608
  %v760 = vsel %vm74, %v728, %v610
  %v761 = vsel %vm74, %v729, %v612
  %v762 = vsel %vm74, %v730, %v614
  %v763 = vsel %vm74, %v731, %v616
  %v764 = vsel %vm74, %v732, %v618
  %v765 = vsel %vm74, %v733, %v620
  %v766 = vsel %vm74, %v734, %v622
  %v767 = vsel %vm74, %v735, %v624
  %v768 = vsel %vm74, %v736, %v626
  %v769 = vsel %vm74, %v737, %v628
  %v770 = vsel %vm74, %v738, %v630
  %v771 = vsel %vm74, %v739, %v632
  %v772 = vsel %vm74, %v740, %v634
  %v773 = vsel %vm74, %v741, %v636
  %v774 = vsel %vm74, %v742, %v638
  %v775 = vsel %vm74, %v743, %v640
  %v776 = vsel %vm74, %v744, %v642
  %v777 = vsel %vm74, %v745, %v644
  %v778 = vsel %vm74, %v746, %v646
  %v779 = vsel %vm74, %v747, %v648
  %v780 = vsel %vm74, %v748, %v650
  %vm781 = vcmask 31744
  %782 = vst.msk [vmem:[%s1] sm:$0xff] %vm781, %v749
  %783 = vst.msk [vmem:[%s1 + $0x8] sm:$0xff] %vm781, %v750
  %784 = vst.msk [vmem:[%s1 + $0x10] sm:$0xff] %vm781, %v751
  %785 = vst.msk [vmem:[%s1 + $0x18] sm:$0xff] %vm781, %v752
  %786 = vst.msk [vmem:[%s1 + $0x20] sm:$0xff] %vm781, %v753
  %787 = vst.msk [vmem:[%s1 + $0x28] sm:$0xff] %vm781, %v754
  %788 = vst.msk [vmem:[%s1 + $0x30] sm:$0xff] %vm781, %v755
  %789 = vst.msk [vmem:[%s1 + $0x38] sm:$0xff] %vm781, %v756
  %790 = vst.msk [vmem:[%s1 + $0x40] sm:$0xff] %vm781, %v757
  %791 = vst.msk [vmem:[%s1 + $0x48] sm:$0xff] %vm781, %v758
  %792 = vst.msk [vmem:[%s1 + $0x50] sm:$0xff] %vm781, %v759
  %793 = vst.msk [vmem:[%s1 + $0x58] sm:$0xff] %vm781, %v760
  %794 = vst.msk [vmem:[%s1 + $0x60] sm:$0xff] %vm781, %v761
  %795 = vst.msk [vmem:[%s1 + $0x68] sm:$0xff] %vm781, %v762
  %796 = vst.msk [vmem:[%s1 + $0x70] sm:$0xff] %vm781, %v763
  %797 = vst.msk [vmem:[%s1 + $0x78] sm:$0xff] %vm781, %v764
  %798 = vst.msk [vmem:[%s1 + $0x80] sm:$0xff] %vm781, %v765
  %799 = vst.msk [vmem:[%s1 + $0x88] sm:$0xff] %vm781, %v766
  %800 = vst.msk [vmem:[%s1 + $0x90] sm:$0xff] %vm781, %v767
  %801 = vst.msk [vmem:[%s1 + $0x98] sm:$0xff] %vm781, %v768
  %802 = vst.msk [vmem:[%s1 + $0xa0] sm:$0xff] %vm781, %v769
  %803 = vst.msk [vmem:[%s1 + $0xa8] sm:$0xff] %vm781, %v770
  %804 = vst.msk [vmem:[%s1 + $0xb0] sm:$0xff] %vm781, %v771
  %805 = vst.msk [vmem:[%s1 + $0xb8] sm:$0xff] %vm781, %v772
  %806 = vst.msk [vmem:[%s1 + $0xc0] sm:$0xff] %vm781, %v773
  %807 = vst.msk [vmem:[%s1 + $0xc8] sm:$0xff] %vm781, %v774
  %808 = vst.msk [vmem:[%s1 + $0xd0] sm:$0xff] %vm781, %v775
  %809 = vst.msk [vmem:[%s1 + $0xd8] sm:$0xff] %vm781, %v776
  %810 = vst.msk [vmem:[%s1 + $0xe0] sm:$0xff] %vm781, %v777
  %811 = vst.msk [vmem:[%s1 + $0xe8] sm:$0xff] %vm781, %v778
  %812 = vst.msk [vmem:[%s1 + $0xf0] sm:$0xff] %vm781, %v779
  %813 = vst.msk [vmem:[%s1 + $0xf8] sm:$0xff] %vm781, %v780
  %v814 = vlaneseq
  %v815 = vand.u32 %v814, 127
  %v816 = vcvt.s32.f32 %v815
  %v817 = vadd.f32 %v816, 1.0
  %v818 = vmul.f32 %v817, 2.0943952
  %v819 = vmul.f32 %v177, %v818
  %v820 = vmul.f32 %v184, %v818
  %v821 = vmul.f32 %v191, %v818
  %v822 = vmul.f32 %v198, %v818
  %v823 = vmul.f32 %v205, %v818
  %v824 = vmul.f32 %v212, %v818
  %v825 = vmul.f32 %v219, %v818
  %v826 = vmul.f32 %v226, %v818
  %v827 = vmul.f32 %v233, %v818
  %v828 = vmul.f32 %v240, %v818
  %v829 = vmul.f32 %v247, %v818
  %v830 = vmul.f32 %v254, %v818
  %v831 = vmul.f32 %v261, %v818
  %v832 = vmul.f32 %v268, %v818
  %v833 = vmul.f32 %v275, %v818
  %v834 = vmul.f32 %v282, %v818
  %v835 = vmul.f32 %v289, %v818
  %v836 = vmul.f32 %v296, %v818
  %v837 = vmul.f32 %v303, %v818
  %v838 = vmul.f32 %v310, %v818
  %v839 = vmul.f32 %v317, %v818
  %v840 = vmul.f32 %v324, %v818
  %v841 = vmul.f32 %v331, %v818
  %v842 = vmul.f32 %v338, %v818
  %v843 = vmul.f32 %v345, %v818
  %v844 = vmul.f32 %v352, %v818
  %v845 = vmul.f32 %v359, %v818
  %v846 = vmul.f32 %v366, %v818
  %v847 = vmul.f32 %v373, %v818
  %v848 = vmul.f32 %v380, %v818
  %v849 = vmul.f32 %v387, %v818
  %v850 = vmul.f32 %v394, %v818
  %v851 = vand.u32 2147483647, %v819
  %vm852 = vcmp.le.f32.partialorder %v851, 0.7853982
  %vm853 = vcmp.lt.s32.totalorder %v819, 0
  %v854 = vand.u32 %v819, 2139095040
  %v855 = vshrl.u32 %v854, 23
  %v856 = vsub.s32 %v855, 127
  %v857 = vand.u32 2147483647, %v819
  %v858 = vand.u32 %v857, 8388607
  %v859 = vor.u32 %v858, 8388608
  %v860 = vsub.s32 0, %v859
  %v861 = vadd.s32 %v856, 1
  %vm862 = vcmp.gt.s32.totalorder %v861, 0
  %v863 = vsel %vm862, %v861, 0
  %v864 = vshrl.u32 %v863, 5
  %v865 = vand.u32 %v863, 31
  %v866 = vsub.s32 32, %v865
  %v867 = vshrl.u32 683565275, %v866
  %v868 = vshll.u32 683565275, %v865
  %v869 = vshrl.u32 2475754826, %v866
  %v870 = vor.u32 %v868, %v869
  %v871 = vshll.u32 2475754826, %v865
  %v872 = vshrl.u32 2131351028, %v866
  %v873 = vor.u32 %v871, %v872
  %v874 = vshll.u32 2131351028, %v865
  %v875 = vshrl.u32 2102212464, %v866
  %v876 = vor.u32 %v874, %v875
  %v877 = vshll.u32 2102212464, %v865
  %v878 = vshrl.u32 920167782, %v866
  %v879 = vor.u32 %v877, %v878
  %v880 = vshll.u32 920167782, %v865
  %v881 = vshrl.u32 1326507024, %v866
  %v882 = vor.u32 %v880, %v881
  %vm883 = vcmp.lt.s32.totalorder %v864, 1
  %vm884 = vcmp.lt.s32.totalorder %v864, 2
  %vm885 = vcmp.lt.s32.totalorder %v864, 3
  %vm886 = vcmp.lt.s32.totalorder %v864, 4
  %v887 = vsel %vm883, %v867, %v870
  %v888 = vsel %vm886, %v876, 2102212464
  %v889 = vsel %vm885, %v873, %v888
  %v890 = vsel %vm884, %v887, %v889
  %v891 = vsel %vm883, %v870, %v873
  %v892 = vsel %vm886, %v879, 920167782
  %v893 = vsel %vm885, %v876, %v892
  %v894 = vsel %vm884, %v891, %v893
  %v895 = vsel %vm883, %v873, %v876
  %v896 = vsel %vm886, %v882, 1326507024
  %v897 = vsel %vm885, %v879, %v896
  %v898 = vsel %vm884, %v895, %v897
  %v899 = vshll.u32 %v859, 8
  %v900 = vmul.u32.u64.compose %v899, %v898
  %v901 = vextract.low.u32 %v900
  %v902 = vextract.high.u32 %v900
  %v903 = vmul.u32.u64.compose %v899, %v894
  %v904 = vextract.low.u32 %v903
  %v905 = vextract.high.u32 %v903
  %v906 = vmul.u32 %v899, %v890
  %v907 = vadd.s32 %v902, %v904
  %vm908 = vc.u32 %v902, %v904
  %v909 = vadd.s32 %v905, 1
  %v910 = vsel %vm908, %v909, %v905
  %v911 = vadd.s32 %v906, %v910
  %v912 = vadd.s32 %v911, 536870912
  %v913 = vshrl.u32 %v912, 30
  %v914 = vshll.u32 %v913, 30
  %v915 = vsub.s32 %v911, %v914
  %vm916 = vcmp.lt.s32.totalorder %v915, 0
  %v917 = vsub.s32 0, %v915
  %v918 = vsel %vm916, %v917, %v915
  %v919 = vclz %v918
  %v920 = vsub.s32 %v919, 2
  %vm921 = vcmp.gt.s32.totalorder 0, %v920
  %v922 = vsel %vm921, 0, %v920
  %v923 = vsub.s32 32, %v922
  %v924 = vshll.u32 %v915, %v922
  %v925 = vshrl.u32 %v907, %v923
  %v926 = vor.u32 %v924, %v925
  %v927 = vsub.s32 4294967266, %v922
  %v928 = vadd.s32 %v927, 127
  %v929 = vshll.u32 %v928, 23
  %v930 = vor.u32 4788187, %v929
  %v931 = vand.u32 2147483647, %v930
  %v933 = vcvt.s32.f32 %v926
  %v934 = vmul.f32 %v933, %v931
  %v935 = vxor.u32 %v934, 2147483648
  %v936 = vsel %vm853, %v935, %v934
  %v937 = vsub.s32 4, %v913
  %v938 = vsel %vm853, %v937, %v913
  %v939 = vsel %vm852, %v819, %v936
  %v940 = vsel %vm852, 0, %v938
  %v941 = vcosq.f32.pop %v939
  %v942 = vsinq.f32.pop %v939
  %vm943 = vweird.f32 %v819
  %v944 = vadd.s32 %v940, 3
  %v945 = vand.u32 %v944, 3
  %vm946 = vcmp.lt.s32.totalorder %v945, 2
  %vm947 = vcmp.eq.s32.totalorder %v945, 0
  %v948 = vxor.u32 %v942, 2147483648
  %v949 = vsel %vm947, %v941, %v948
  %vm950 = vcmp.eq.s32.totalorder %v945, 2
  %v951 = vxor.u32 %v941, 2147483648
  %v952 = vsel %vm950, %v951, %v942
  %v953 = vsel %vm946, %v949, %v952
  %v954 = vsel %vm943, nan, %v953
  %v955 = vand.u32 2147483647, %v820
  %vm956 = vcmp.le.f32.partialorder %v955, 0.7853982
  %vm957 = vcmp.lt.s32.totalorder %v820, 0
  %v958 = vand.u32 %v820, 2139095040
  %v959 = vshrl.u32 %v958, 23
  %v960 = vsub.s32 %v959, 127
  %v961 = vand.u32 2147483647, %v820
  %v962 = vand.u32 %v961, 8388607
  %v963 = vor.u32 %v962, 8388608
  %v964 = vsub.s32 0, %v963
  %v965 = vadd.s32 %v960, 1
  %vm966 = vcmp.gt.s32.totalorder %v965, 0
  %v967 = vsel %vm966, %v965, 0
  %v968 = vshrl.u32 %v967, 5
  %v969 = vand.u32 %v967, 31
  %v970 = vsub.s32 32, %v969
  %v971 = vshrl.u32 683565275, %v970
  %v972 = vshll.u32 683565275, %v969
  %v973 = vshrl.u32 2475754826, %v970
  %v974 = vor.u32 %v972, %v973
  %v975 = vshll.u32 2475754826, %v969
  %v976 = vshrl.u32 2131351028, %v970
  %v977 = vor.u32 %v975, %v976
  %v978 = vshll.u32 2131351028, %v969
  %v979 = vshrl.u32 2102212464, %v970
  %v980 = vor.u32 %v978, %v979
  %v981 = vshll.u32 2102212464, %v969
  %v982 = vshrl.u32 920167782, %v970
  %v983 = vor.u32 %v981, %v982
  %v984 = vshll.u32 920167782, %v969
  %v985 = vshrl.u32 1326507024, %v970
  %v986 = vor.u32 %v984, %v985
  %vm987 = vcmp.lt.s32.totalorder %v968, 1
  %vm988 = vcmp.lt.s32.totalorder %v968, 2
  %vm989 = vcmp.lt.s32.totalorder %v968, 3
  %vm990 = vcmp.lt.s32.totalorder %v968, 4
  %v991 = vsel %vm987, %v971, %v974
  %v992 = vsel %vm990, %v980, 2102212464
  %v993 = vsel %vm989, %v977, %v992
  %v994 = vsel %vm988, %v991, %v993
  %v995 = vsel %vm987, %v974, %v977
  %v996 = vsel %vm990, %v983, 920167782
  %v997 = vsel %vm989, %v980, %v996
  %v998 = vsel %vm988, %v995, %v997
  %v999 = vsel %vm987, %v977, %v980
  %v1000 = vsel %vm990, %v986, 1326507024
  %v1001 = vsel %vm989, %v983, %v1000
  %v1002 = vsel %vm988, %v999, %v1001
  %v1003 = vshll.u32 %v963, 8
  %v1004 = vmul.u32.u64.compose %v1003, %v1002
  %v1005 = vextract.low.u32 %v1004
  %v1006 = vextract.high.u32 %v1004
  %v1007 = vmul.u32.u64.compose %v1003, %v998
  %v1008 = vextract.low.u32 %v1007
  %v1009 = vextract.high.u32 %v1007
  %v1010 = vmul.u32 %v1003, %v994
  %v1011 = vadd.s32 %v1006, %v1008
  %vm1012 = vc.u32 %v1006, %v1008
  %v1013 = vadd.s32 %v1009, 1
  %v1014 = vsel %vm1012, %v1013, %v1009
  %v1015 = vadd.s32 %v1010, %v1014
  %v1016 = vadd.s32 %v1015, 536870912
  %v1017 = vshrl.u32 %v1016, 30
  %v1018 = vshll.u32 %v1017, 30
  %v1019 = vsub.s32 %v1015, %v1018
  %vm1020 = vcmp.lt.s32.totalorder %v1019, 0
  %v1021 = vsub.s32 0, %v1019
  %v1022 = vsel %vm1020, %v1021, %v1019
  %v1023 = vclz %v1022
  %v1024 = vsub.s32 %v1023, 2
  %vm1025 = vcmp.gt.s32.totalorder 0, %v1024
  %v1026 = vsel %vm1025, 0, %v1024
  %v1027 = vsub.s32 32, %v1026
  %v1028 = vshll.u32 %v1019, %v1026
  %v1029 = vshrl.u32 %v1011, %v1027
  %v1030 = vor.u32 %v1028, %v1029
  %v1031 = vsub.s32 4294967266, %v1026
  %v1032 = vadd.s32 %v1031, 127
  %v1033 = vshll.u32 %v1032, 23
  %v1034 = vor.u32 4788187, %v1033
  %v1035 = vand.u32 2147483647, %v1034
  %v1037 = vcvt.s32.f32 %v1030
  %v1038 = vmul.f32 %v1037, %v1035
  %v1039 = vxor.u32 %v1038, 2147483648
  %v1040 = vsel %vm957, %v1039, %v1038
  %v1041 = vsub.s32 4, %v1017
  %v1042 = vsel %vm957, %v1041, %v1017
  %v1043 = vsel %vm956, %v820, %v1040
  %v1044 = vsel %vm956, 0, %v1042
  %v1045 = vcosq.f32.pop %v1043
  %v1046 = vsinq.f32.pop %v1043
  %vm1047 = vweird.f32 %v820
  %v1048 = vadd.s32 %v1044, 3
  %v1049 = vand.u32 %v1048, 3
  %vm1050 = vcmp.lt.s32.totalorder %v1049, 2
  %vm1051 = vcmp.eq.s32.totalorder %v1049, 0
  %v1052 = vxor.u32 %v1046, 2147483648
  %v1053 = vsel %vm1051, %v1045, %v1052
  %vm1054 = vcmp.eq.s32.totalorder %v1049, 2
  %v1055 = vxor.u32 %v1045, 2147483648
  %v1056 = vsel %vm1054, %v1055, %v1046
  %v1057 = vsel %vm1050, %v1053, %v1056
  %v1058 = vsel %vm1047, nan, %v1057
  %v1059 = vand.u32 2147483647, %v821
  %vm1060 = vcmp.le.f32.partialorder %v1059, 0.7853982
  %vm1061 = vcmp.lt.s32.totalorder %v821, 0
  %v1062 = vand.u32 %v821, 2139095040
  %v1063 = vshrl.u32 %v1062, 23
  %v1064 = vsub.s32 %v1063, 127
  %v1065 = vand.u32 2147483647, %v821
  %v1066 = vand.u32 %v1065, 8388607
  %v1067 = vor.u32 %v1066, 8388608
  %v1068 = vsub.s32 0, %v1067
  %v1069 = vadd.s32 %v1064, 1
  %vm1070 = vcmp.gt.s32.totalorder %v1069, 0
  %v1071 = vsel %vm1070, %v1069, 0
  %v1072 = vshrl.u32 %v1071, 5
  %v1073 = vand.u32 %v1071, 31
  %v1074 = vsub.s32 32, %v1073
  %v1075 = vshrl.u32 683565275, %v1074
  %v1076 = vshll.u32 683565275, %v1073
  %v1077 = vshrl.u32 2475754826, %v1074
  %v1078 = vor.u32 %v1076, %v1077
  %v1079 = vshll.u32 2475754826, %v1073
  %v1080 = vshrl.u32 2131351028, %v1074
  %v1081 = vor.u32 %v1079, %v1080
  %v1082 = vshll.u32 2131351028, %v1073
  %v1083 = vshrl.u32 2102212464, %v1074
  %v1084 = vor.u32 %v1082, %v1083
  %v1085 = vshll.u32 2102212464, %v1073
  %v1086 = vshrl.u32 920167782, %v1074
  %v1087 = vor.u32 %v1085, %v1086
  %v1088 = vshll.u32 920167782, %v1073
  %v1089 = vshrl.u32 1326507024, %v1074
  %v1090 = vor.u32 %v1088, %v1089
  %vm1091 = vcmp.lt.s32.totalorder %v1072, 1
  %vm1092 = vcmp.lt.s32.totalorder %v1072, 2
  %vm1093 = vcmp.lt.s32.totalorder %v1072, 3
  %vm1094 = vcmp.lt.s32.totalorder %v1072, 4
  %v1095 = vsel %vm1091, %v1075, %v1078
  %v1096 = vsel %vm1094, %v1084, 2102212464
  %v1097 = vsel %vm1093, %v1081, %v1096
  %v1098 = vsel %vm1092, %v1095, %v1097
  %v1099 = vsel %vm1091, %v1078, %v1081
  %v1100 = vsel %vm1094, %v1087, 920167782
  %v1101 = vsel %vm1093, %v1084, %v1100
  %v1102 = vsel %vm1092, %v1099, %v1101
  %v1103 = vsel %vm1091, %v1081, %v1084
  %v1104 = vsel %vm1094, %v1090, 1326507024
  %v1105 = vsel %vm1093, %v1087, %v1104
  %v1106 = vsel %vm1092, %v1103, %v1105
  %v1107 = vshll.u32 %v1067, 8
  %v1108 = vmul.u32.u64.compose %v1107, %v1106
  %v1109 = vextract.low.u32 %v1108
  %v1110 = vextract.high.u32 %v1108
  %v1111 = vmul.u32.u64.compose %v1107, %v1102
  %v1112 = vextract.low.u32 %v1111
  %v1113 = vextract.high.u32 %v1111
  %v1114 = vmul.u32 %v1107, %v1098
  %v1115 = vadd.s32 %v1110, %v1112
  %vm1116 = vc.u32 %v1110, %v1112
  %v1117 = vadd.s32 %v1113, 1
  %v1118 = vsel %vm1116, %v1117, %v1113
  %v1119 = vadd.s32 %v1114, %v1118
  %v1120 = vadd.s32 %v1119, 536870912
  %v1121 = vshrl.u32 %v1120, 30
  %v1122 = vshll.u32 %v1121, 30
  %v1123 = vsub.s32 %v1119, %v1122
  %vm1124 = vcmp.lt.s32.totalorder %v1123, 0
  %v1125 = vsub.s32 0, %v1123
  %v1126 = vsel %vm1124, %v1125, %v1123
  %v1127 = vclz %v1126
  %v1128 = vsub.s32 %v1127, 2
  %vm1129 = vcmp.gt.s32.totalorder 0, %v1128
  %v1130 = vsel %vm1129, 0, %v1128
  %v1131 = vsub.s32 32, %v1130
  %v1132 = vshll.u32 %v1123, %v1130
  %v1133 = vshrl.u32 %v1115, %v1131
  %v1134 = vor.u32 %v1132, %v1133
  %v1135 = vsub.s32 4294967266, %v1130
  %v1136 = vadd.s32 %v1135, 127
  %v1137 = vshll.u32 %v1136, 23
  %v1138 = vor.u32 4788187, %v1137
  %v1139 = vand.u32 2147483647, %v1138
  %v1141 = vcvt.s32.f32 %v1134
  %v1142 = vmul.f32 %v1141, %v1139
  %v1143 = vxor.u32 %v1142, 2147483648
  %v1144 = vsel %vm1061, %v1143, %v1142
  %v1145 = vsub.s32 4, %v1121
  %v1146 = vsel %vm1061, %v1145, %v1121
  %v1147 = vsel %vm1060, %v821, %v1144
  %v1148 = vsel %vm1060, 0, %v1146
  %v1149 = vcosq.f32.pop %v1147
  %v1150 = vsinq.f32.pop %v1147
  %vm1151 = vweird.f32 %v821
  %v1152 = vadd.s32 %v1148, 3
  %v1153 = vand.u32 %v1152, 3
  %vm1154 = vcmp.lt.s32.totalorder %v1153, 2
  %vm1155 = vcmp.eq.s32.totalorder %v1153, 0
  %v1156 = vxor.u32 %v1150, 2147483648
  %v1157 = vsel %vm1155, %v1149, %v1156
  %vm1158 = vcmp.eq.s32.totalorder %v1153, 2
  %v1159 = vxor.u32 %v1149, 2147483648
  %v1160 = vsel %vm1158, %v1159, %v1150
  %v1161 = vsel %vm1154, %v1157, %v1160
  %v1162 = vsel %vm1151, nan, %v1161
  %v1163 = vand.u32 2147483647, %v822
  %vm1164 = vcmp.le.f32.partialorder %v1163, 0.7853982
  %vm1165 = vcmp.lt.s32.totalorder %v822, 0
  %v1166 = vand.u32 %v822, 2139095040
  %v1167 = vshrl.u32 %v1166, 23
  %v1168 = vsub.s32 %v1167, 127
  %v1169 = vand.u32 2147483647, %v822
  %v1170 = vand.u32 %v1169, 8388607
  %v1171 = vor.u32 %v1170, 8388608
  %v1172 = vsub.s32 0, %v1171
  %v1173 = vadd.s32 %v1168, 1
  %vm1174 = vcmp.gt.s32.totalorder %v1173, 0
  %v1175 = vsel %vm1174, %v1173, 0
  %v1176 = vshrl.u32 %v1175, 5
  %v1177 = vand.u32 %v1175, 31
  %v1178 = vsub.s32 32, %v1177
  %v1179 = vshrl.u32 683565275, %v1178
  %v1180 = vshll.u32 683565275, %v1177
  %v1181 = vshrl.u32 2475754826, %v1178
  %v1182 = vor.u32 %v1180, %v1181
  %v1183 = vshll.u32 2475754826, %v1177
  %v1184 = vshrl.u32 2131351028, %v1178
  %v1185 = vor.u32 %v1183, %v1184
  %v1186 = vshll.u32 2131351028, %v1177
  %v1187 = vshrl.u32 2102212464, %v1178
  %v1188 = vor.u32 %v1186, %v1187
  %v1189 = vshll.u32 2102212464, %v1177
  %v1190 = vshrl.u32 920167782, %v1178
  %v1191 = vor.u32 %v1189, %v1190
  %v1192 = vshll.u32 920167782, %v1177
  %v1193 = vshrl.u32 1326507024, %v1178
  %v1194 = vor.u32 %v1192, %v1193
  %vm1195 = vcmp.lt.s32.totalorder %v1176, 1
  %vm1196 = vcmp.lt.s32.totalorder %v1176, 2
  %vm1197 = vcmp.lt.s32.totalorder %v1176, 3
  %vm1198 = vcmp.lt.s32.totalorder %v1176, 4
  %v1199 = vsel %vm1195, %v1179, %v1182
  %v1200 = vsel %vm1198, %v1188, 2102212464
  %v1201 = vsel %vm1197, %v1185, %v1200
  %v1202 = vsel %vm1196, %v1199, %v1201
  %v1203 = vsel %vm1195, %v1182, %v1185
  %v1204 = vsel %vm1198, %v1191, 920167782
  %v1205 = vsel %vm1197, %v1188, %v1204
  %v1206 = vsel %vm1196, %v1203, %v1205
  %v1207 = vsel %vm1195, %v1185, %v1188
  %v1208 = vsel %vm1198, %v1194, 1326507024
  %v1209 = vsel %vm1197, %v1191, %v1208
  %v1210 = vsel %vm1196, %v1207, %v1209
  %v1211 = vshll.u32 %v1171, 8
  %v1212 = vmul.u32.u64.compose %v1211, %v1210
  %v1213 = vextract.low.u32 %v1212
  %v1214 = vextract.high.u32 %v1212
  %v1215 = vmul.u32.u64.compose %v1211, %v1206
  %v1216 = vextract.low.u32 %v1215
  %v1217 = vextract.high.u32 %v1215
  %v1218 = vmul.u32 %v1211, %v1202
  %v1219 = vadd.s32 %v1214, %v1216
  %vm1220 = vc.u32 %v1214, %v1216
  %v1221 = vadd.s32 %v1217, 1
  %v1222 = vsel %vm1220, %v1221, %v1217
  %v1223 = vadd.s32 %v1218, %v1222
  %v1224 = vadd.s32 %v1223, 536870912
  %v1225 = vshrl.u32 %v1224, 30
  %v1226 = vshll.u32 %v1225, 30
  %v1227 = vsub.s32 %v1223, %v1226
  %vm1228 = vcmp.lt.s32.totalorder %v1227, 0
  %v1229 = vsub.s32 0, %v1227
  %v1230 = vsel %vm1228, %v1229, %v1227
  %v1231 = vclz %v1230
  %v1232 = vsub.s32 %v1231, 2
  %vm1233 = vcmp.gt.s32.totalorder 0, %v1232
  %v1234 = vsel %vm1233, 0, %v1232
  %v1235 = vsub.s32 32, %v1234
  %v1236 = vshll.u32 %v1227, %v1234
  %v1237 = vshrl.u32 %v1219, %v1235
  %v1238 = vor.u32 %v1236, %v1237
  %v1239 = vsub.s32 4294967266, %v1234
  %v1240 = vadd.s32 %v1239, 127
  %v1241 = vshll.u32 %v1240, 23
  %v1242 = vor.u32 4788187, %v1241
  %v1243 = vand.u32 2147483647, %v1242
  %v1245 = vcvt.s32.f32 %v1238
  %v1246 = vmul.f32 %v1245, %v1243
  %v1247 = vxor.u32 %v1246, 2147483648
  %v1248 = vsel %vm1165, %v1247, %v1246
  %v1249 = vsub.s32 4, %v1225
  %v1250 = vsel %vm1165, %v1249, %v1225
  %v1251 = vsel %vm1164, %v822, %v1248
  %v1252 = vsel %vm1164, 0, %v1250
  %v1253 = vcosq.f32.pop %v1251
  %v1254 = vsinq.f32.pop %v1251
  %vm1255 = vweird.f32 %v822
  %v1256 = vadd.s32 %v1252, 3
  %v1257 = vand.u32 %v1256, 3
  %vm1258 = vcmp.lt.s32.totalorder %v1257, 2
  %vm1259 = vcmp.eq.s32.totalorder %v1257, 0
  %v1260 = vxor.u32 %v1254, 2147483648
  %v1261 = vsel %vm1259, %v1253, %v1260
  %vm1262 = vcmp.eq.s32.totalorder %v1257, 2
  %v1263 = vxor.u32 %v1253, 2147483648
  %v1264 = vsel %vm1262, %v1263, %v1254
  %v1265 = vsel %vm1258, %v1261, %v1264
  %v1266 = vsel %vm1255, nan, %v1265
  %v1267 = vand.u32 2147483647, %v823
  %vm1268 = vcmp.le.f32.partialorder %v1267, 0.7853982
  %vm1269 = vcmp.lt.s32.totalorder %v823, 0
  %v1270 = vand.u32 %v823, 2139095040
  %v1271 = vshrl.u32 %v1270, 23
  %v1272 = vsub.s32 %v1271, 127
  %v1273 = vand.u32 2147483647, %v823
  %v1274 = vand.u32 %v1273, 8388607
  %v1275 = vor.u32 %v1274, 8388608
  %v1276 = vsub.s32 0, %v1275
  %v1277 = vadd.s32 %v1272, 1
  %vm1278 = vcmp.gt.s32.totalorder %v1277, 0
  %v1279 = vsel %vm1278, %v1277, 0
  %v1280 = vshrl.u32 %v1279, 5
  %v1281 = vand.u32 %v1279, 31
  %v1282 = vsub.s32 32, %v1281
  %v1283 = vshrl.u32 683565275, %v1282
  %v1284 = vshll.u32 683565275, %v1281
  %v1285 = vshrl.u32 2475754826, %v1282
  %v1286 = vor.u32 %v1284, %v1285
  %v1287 = vshll.u32 2475754826, %v1281
  %v1288 = vshrl.u32 2131351028, %v1282
  %v1289 = vor.u32 %v1287, %v1288
  %v1290 = vshll.u32 2131351028, %v1281
  %v1291 = vshrl.u32 2102212464, %v1282
  %v1292 = vor.u32 %v1290, %v1291
  %v1293 = vshll.u32 2102212464, %v1281
  %v1294 = vshrl.u32 920167782, %v1282
  %v1295 = vor.u32 %v1293, %v1294
  %v1296 = vshll.u32 920167782, %v1281
  %v1297 = vshrl.u32 1326507024, %v1282
  %v1298 = vor.u32 %v1296, %v1297
  %vm1299 = vcmp.lt.s32.totalorder %v1280, 1
  %vm1300 = vcmp.lt.s32.totalorder %v1280, 2
  %vm1301 = vcmp.lt.s32.totalorder %v1280, 3
  %vm1302 = vcmp.lt.s32.totalorder %v1280, 4
  %v1303 = vsel %vm1299, %v1283, %v1286
  %v1304 = vsel %vm1302, %v1292, 2102212464
  %v1305 = vsel %vm1301, %v1289, %v1304
  %v1306 = vsel %vm1300, %v1303, %v1305
  %v1307 = vsel %vm1299, %v1286, %v1289
  %v1308 = vsel %vm1302, %v1295, 920167782
  %v1309 = vsel %vm1301, %v1292, %v1308
  %v1310 = vsel %vm1300, %v1307, %v1309
  %v1311 = vsel %vm1299, %v1289, %v1292
  %v1312 = vsel %vm1302, %v1298, 1326507024
  %v1313 = vsel %vm1301, %v1295, %v1312
  %v1314 = vsel %vm1300, %v1311, %v1313
  %v1315 = vshll.u32 %v1275, 8
  %v1316 = vmul.u32.u64.compose %v1315, %v1314
  %v1317 = vextract.low.u32 %v1316
  %v1318 = vextract.high.u32 %v1316
  %v1319 = vmul.u32.u64.compose %v1315, %v1310
  %v1320 = vextract.low.u32 %v1319
  %v1321 = vextract.high.u32 %v1319
  %v1322 = vmul.u32 %v1315, %v1306
  %v1323 = vadd.s32 %v1318, %v1320
  %vm1324 = vc.u32 %v1318, %v1320
  %v1325 = vadd.s32 %v1321, 1
  %v1326 = vsel %vm1324, %v1325, %v1321
  %v1327 = vadd.s32 %v1322, %v1326
  %v1328 = vadd.s32 %v1327, 536870912
  %v1329 = vshrl.u32 %v1328, 30
  %v1330 = vshll.u32 %v1329, 30
  %v1331 = vsub.s32 %v1327, %v1330
  %vm1332 = vcmp.lt.s32.totalorder %v1331, 0
  %v1333 = vsub.s32 0, %v1331
  %v1334 = vsel %vm1332, %v1333, %v1331
  %v1335 = vclz %v1334
  %v1336 = vsub.s32 %v1335, 2
  %vm1337 = vcmp.gt.s32.totalorder 0, %v1336
  %v1338 = vsel %vm1337, 0, %v1336
  %v1339 = vsub.s32 32, %v1338
  %v1340 = vshll.u32 %v1331, %v1338
  %v1341 = vshrl.u32 %v1323, %v1339
  %v1342 = vor.u32 %v1340, %v1341
  %v1343 = vsub.s32 4294967266, %v1338
  %v1344 = vadd.s32 %v1343, 127
  %v1345 = vshll.u32 %v1344, 23
  %v1346 = vor.u32 4788187, %v1345
  %v1347 = vand.u32 2147483647, %v1346
  %v1349 = vcvt.s32.f32 %v1342
  %v1350 = vmul.f32 %v1349, %v1347
  %v1351 = vxor.u32 %v1350, 2147483648
  %v1352 = vsel %vm1269, %v1351, %v1350
  %v1353 = vsub.s32 4, %v1329
  %v1354 = vsel %vm1269, %v1353, %v1329
  %v1355 = vsel %vm1268, %v823, %v1352
  %v1356 = vsel %vm1268, 0, %v1354
  %v1357 = vcosq.f32.pop %v1355
  %v1358 = vsinq.f32.pop %v1355
  %vm1359 = vweird.f32 %v823
  %v1360 = vadd.s32 %v1356, 3
  %v1361 = vand.u32 %v1360, 3
  %vm1362 = vcmp.lt.s32.totalorder %v1361, 2
  %vm1363 = vcmp.eq.s32.totalorder %v1361, 0
  %v1364 = vxor.u32 %v1358, 2147483648
  %v1365 = vsel %vm1363, %v1357, %v1364
  %vm1366 = vcmp.eq.s32.totalorder %v1361, 2
  %v1367 = vxor.u32 %v1357, 2147483648
  %v1368 = vsel %vm1366, %v1367, %v1358
  %v1369 = vsel %vm1362, %v1365, %v1368
  %v1370 = vsel %vm1359, nan, %v1369
  %v1371 = vand.u32 2147483647, %v824
  %vm1372 = vcmp.le.f32.partialorder %v1371, 0.7853982
  %vm1373 = vcmp.lt.s32.totalorder %v824, 0
  %v1374 = vand.u32 %v824, 2139095040
  %v1375 = vshrl.u32 %v1374, 23
  %v1376 = vsub.s32 %v1375, 127
  %v1377 = vand.u32 2147483647, %v824
  %v1378 = vand.u32 %v1377, 8388607
  %v1379 = vor.u32 %v1378, 8388608
  %v1380 = vsub.s32 0, %v1379
  %v1381 = vadd.s32 %v1376, 1
  %vm1382 = vcmp.gt.s32.totalorder %v1381, 0
  %v1383 = vsel %vm1382, %v1381, 0
  %v1384 = vshrl.u32 %v1383, 5
  %v1385 = vand.u32 %v1383, 31
  %v1386 = vsub.s32 32, %v1385
  %v1387 = vshrl.u32 683565275, %v1386
  %v1388 = vshll.u32 683565275, %v1385
  %v1389 = vshrl.u32 2475754826, %v1386
  %v1390 = vor.u32 %v1388, %v1389
  %v1391 = vshll.u32 2475754826, %v1385
  %v1392 = vshrl.u32 2131351028, %v1386
  %v1393 = vor.u32 %v1391, %v1392
  %v1394 = vshll.u32 2131351028, %v1385
  %v1395 = vshrl.u32 2102212464, %v1386
  %v1396 = vor.u32 %v1394, %v1395
  %v1397 = vshll.u32 2102212464, %v1385
  %v1398 = vshrl.u32 920167782, %v1386
  %v1399 = vor.u32 %v1397, %v1398
  %v1400 = vshll.u32 920167782, %v1385
  %v1401 = vshrl.u32 1326507024, %v1386
  %v1402 = vor.u32 %v1400, %v1401
  %vm1403 = vcmp.lt.s32.totalorder %v1384, 1
  %vm1404 = vcmp.lt.s32.totalorder %v1384, 2
  %vm1405 = vcmp.lt.s32.totalorder %v1384, 3
  %vm1406 = vcmp.lt.s32.totalorder %v1384, 4
  %v1407 = vsel %vm1403, %v1387, %v1390
  %v1408 = vsel %vm1406, %v1396, 2102212464
  %v1409 = vsel %vm1405, %v1393, %v1408
  %v1410 = vsel %vm1404, %v1407, %v1409
  %v1411 = vsel %vm1403, %v1390, %v1393
  %v1412 = vsel %vm1406, %v1399, 920167782
  %v1413 = vsel %vm1405, %v1396, %v1412
  %v1414 = vsel %vm1404, %v1411, %v1413
  %v1415 = vsel %vm1403, %v1393, %v1396
  %v1416 = vsel %vm1406, %v1402, 1326507024
  %v1417 = vsel %vm1405, %v1399, %v1416
  %v1418 = vsel %vm1404, %v1415, %v1417
  %v1419 = vshll.u32 %v1379, 8
  %v1420 = vmul.u32.u64.compose %v1419, %v1418
  %v1421 = vextract.low.u32 %v1420
  %v1422 = vextract.high.u32 %v1420
  %v1423 = vmul.u32.u64.compose %v1419, %v1414
  %v1424 = vextract.low.u32 %v1423
  %v1425 = vextract.high.u32 %v1423
  %v1426 = vmul.u32 %v1419, %v1410
  %v1427 = vadd.s32 %v1422, %v1424
  %vm1428 = vc.u32 %v1422, %v1424
  %v1429 = vadd.s32 %v1425, 1
  %v1430 = vsel %vm1428, %v1429, %v1425
  %v1431 = vadd.s32 %v1426, %v1430
  %v1432 = vadd.s32 %v1431, 536870912
  %v1433 = vshrl.u32 %v1432, 30
  %v1434 = vshll.u32 %v1433, 30
  %v1435 = vsub.s32 %v1431, %v1434
  %vm1436 = vcmp.lt.s32.totalorder %v1435, 0
  %v1437 = vsub.s32 0, %v1435
  %v1438 = vsel %vm1436, %v1437, %v1435
  %v1439 = vclz %v1438
  %v1440 = vsub.s32 %v1439, 2
  %vm1441 = vcmp.gt.s32.totalorder 0, %v1440
  %v1442 = vsel %vm1441, 0, %v1440
  %v1443 = vsub.s32 32, %v1442
  %v1444 = vshll.u32 %v1435, %v1442
  %v1445 = vshrl.u32 %v1427, %v1443
  %v1446 = vor.u32 %v1444, %v1445
  %v1447 = vsub.s32 4294967266, %v1442
  %v1448 = vadd.s32 %v1447, 127
  %v1449 = vshll.u32 %v1448, 23
  %v1450 = vor.u32 4788187, %v1449
  %v1451 = vand.u32 2147483647, %v1450
  %v1453 = vcvt.s32.f32 %v1446
  %v1454 = vmul.f32 %v1453, %v1451
  %v1455 = vxor.u32 %v1454, 2147483648
  %v1456 = vsel %vm1373, %v1455, %v1454
  %v1457 = vsub.s32 4, %v1433
  %v1458 = vsel %vm1373, %v1457, %v1433
  %v1459 = vsel %vm1372, %v824, %v1456
  %v1460 = vsel %vm1372, 0, %v1458
  %v1461 = vcosq.f32.pop %v1459
  %v1462 = vsinq.f32.pop %v1459
  %vm1463 = vweird.f32 %v824
  %v1464 = vadd.s32 %v1460, 3
  %v1465 = vand.u32 %v1464, 3
  %vm1466 = vcmp.lt.s32.totalorder %v1465, 2
  %vm1467 = vcmp.eq.s32.totalorder %v1465, 0
  %v1468 = vxor.u32 %v1462, 2147483648
  %v1469 = vsel %vm1467, %v1461, %v1468
  %vm1470 = vcmp.eq.s32.totalorder %v1465, 2
  %v1471 = vxor.u32 %v1461, 2147483648
  %v1472 = vsel %vm1470, %v1471, %v1462
  %v1473 = vsel %vm1466, %v1469, %v1472
  %v1474 = vsel %vm1463, nan, %v1473
  %v1475 = vand.u32 2147483647, %v825
  %vm1476 = vcmp.le.f32.partialorder %v1475, 0.7853982
  %vm1477 = vcmp.lt.s32.totalorder %v825, 0
  %v1478 = vand.u32 %v825, 2139095040
  %v1479 = vshrl.u32 %v1478, 23
  %v1480 = vsub.s32 %v1479, 127
  %v1481 = vand.u32 2147483647, %v825
  %v1482 = vand.u32 %v1481, 8388607
  %v1483 = vor.u32 %v1482, 8388608
  %v1484 = vsub.s32 0, %v1483
  %v1485 = vadd.s32 %v1480, 1
  %vm1486 = vcmp.gt.s32.totalorder %v1485, 0
  %v1487 = vsel %vm1486, %v1485, 0
  %v1488 = vshrl.u32 %v1487, 5
  %v1489 = vand.u32 %v1487, 31
  %v1490 = vsub.s32 32, %v1489
  %v1491 = vshrl.u32 683565275, %v1490
  %v1492 = vshll.u32 683565275, %v1489
  %v1493 = vshrl.u32 2475754826, %v1490
  %v1494 = vor.u32 %v1492, %v1493
  %v1495 = vshll.u32 2475754826, %v1489
  %v1496 = vshrl.u32 2131351028, %v1490
  %v1497 = vor.u32 %v1495, %v1496
  %v1498 = vshll.u32 2131351028, %v1489
  %v1499 = vshrl.u32 2102212464, %v1490
  %v1500 = vor.u32 %v1498, %v1499
  %v1501 = vshll.u32 2102212464, %v1489
  %v1502 = vshrl.u32 920167782, %v1490
  %v1503 = vor.u32 %v1501, %v1502
  %v1504 = vshll.u32 920167782, %v1489
  %v1505 = vshrl.u32 1326507024, %v1490
  %v1506 = vor.u32 %v1504, %v1505
  %vm1507 = vcmp.lt.s32.totalorder %v1488, 1
  %vm1508 = vcmp.lt.s32.totalorder %v1488, 2
  %vm1509 = vcmp.lt.s32.totalorder %v1488, 3
  %vm1510 = vcmp.lt.s32.totalorder %v1488, 4
  %v1511 = vsel %vm1507, %v1491, %v1494
  %v1512 = vsel %vm1510, %v1500, 2102212464
  %v1513 = vsel %vm1509, %v1497, %v1512
  %v1514 = vsel %vm1508, %v1511, %v1513
  %v1515 = vsel %vm1507, %v1494, %v1497
  %v1516 = vsel %vm1510, %v1503, 920167782
  %v1517 = vsel %vm1509, %v1500, %v1516
  %v1518 = vsel %vm1508, %v1515, %v1517
  %v1519 = vsel %vm1507, %v1497, %v1500
  %v1520 = vsel %vm1510, %v1506, 1326507024
  %v1521 = vsel %vm1509, %v1503, %v1520
  %v1522 = vsel %vm1508, %v1519, %v1521
  %v1523 = vshll.u32 %v1483, 8
  %v1524 = vmul.u32.u64.compose %v1523, %v1522
  %v1525 = vextract.low.u32 %v1524
  %v1526 = vextract.high.u32 %v1524
  %v1527 = vmul.u32.u64.compose %v1523, %v1518
  %v1528 = vextract.low.u32 %v1527
  %v1529 = vextract.high.u32 %v1527
  %v1530 = vmul.u32 %v1523, %v1514
  %v1531 = vadd.s32 %v1526, %v1528
  %vm1532 = vc.u32 %v1526, %v1528
  %v1533 = vadd.s32 %v1529, 1
  %v1534 = vsel %vm1532, %v1533, %v1529
  %v1535 = vadd.s32 %v1530, %v1534
  %v1536 = vadd.s32 %v1535, 536870912
  %v1537 = vshrl.u32 %v1536, 30
  %v1538 = vshll.u32 %v1537, 30
  %v1539 = vsub.s32 %v1535, %v1538
  %vm1540 = vcmp.lt.s32.totalorder %v1539, 0
  %v1541 = vsub.s32 0, %v1539
  %v1542 = vsel %vm1540, %v1541, %v1539
  %v1543 = vclz %v1542
  %v1544 = vsub.s32 %v1543, 2
  %vm1545 = vcmp.gt.s32.totalorder 0, %v1544
  %v1546 = vsel %vm1545, 0, %v1544
  %v1547 = vsub.s32 32, %v1546
  %v1548 = vshll.u32 %v1539, %v1546
  %v1549 = vshrl.u32 %v1531, %v1547
  %v1550 = vor.u32 %v1548, %v1549
  %v1551 = vsub.s32 4294967266, %v1546
  %v1552 = vadd.s32 %v1551, 127
  %v1553 = vshll.u32 %v1552, 23
  %v1554 = vor.u32 4788187, %v1553
  %v1555 = vand.u32 2147483647, %v1554
  %v1557 = vcvt.s32.f32 %v1550
  %v1558 = vmul.f32 %v1557, %v1555
  %v1559 = vxor.u32 %v1558, 2147483648
  %v1560 = vsel %vm1477, %v1559, %v1558
  %v1561 = vsub.s32 4, %v1537
  %v1562 = vsel %vm1477, %v1561, %v1537
  %v1563 = vsel %vm1476, %v825, %v1560
  %v1564 = vsel %vm1476, 0, %v1562
  %v1565 = vcosq.f32.pop %v1563
  %v1566 = vsinq.f32.pop %v1563
  %vm1567 = vweird.f32 %v825
  %v1568 = vadd.s32 %v1564, 3
  %v1569 = vand.u32 %v1568, 3
  %vm1570 = vcmp.lt.s32.totalorder %v1569, 2
  %vm1571 = vcmp.eq.s32.totalorder %v1569, 0
  %v1572 = vxor.u32 %v1566, 2147483648
  %v1573 = vsel %vm1571, %v1565, %v1572
  %vm1574 = vcmp.eq.s32.totalorder %v1569, 2
  %v1575 = vxor.u32 %v1565, 2147483648
  %v1576 = vsel %vm1574, %v1575, %v1566
  %v1577 = vsel %vm1570, %v1573, %v1576
  %v1578 = vsel %vm1567, nan, %v1577
  %v1579 = vand.u32 2147483647, %v826
  %vm1580 = vcmp.le.f32.partialorder %v1579, 0.7853982
  %vm1581 = vcmp.lt.s32.totalorder %v826, 0
  %v1582 = vand.u32 %v826, 2139095040
  %v1583 = vshrl.u32 %v1582, 23
  %v1584 = vsub.s32 %v1583, 127
  %v1585 = vand.u32 2147483647, %v826
  %v1586 = vand.u32 %v1585, 8388607
  %v1587 = vor.u32 %v1586, 8388608
  %v1588 = vsub.s32 0, %v1587
  %v1589 = vadd.s32 %v1584, 1
  %vm1590 = vcmp.gt.s32.totalorder %v1589, 0
  %v1591 = vsel %vm1590, %v1589, 0
  %v1592 = vshrl.u32 %v1591, 5
  %v1593 = vand.u32 %v1591, 31
  %v1594 = vsub.s32 32, %v1593
  %v1595 = vshrl.u32 683565275, %v1594
  %v1596 = vshll.u32 683565275, %v1593
  %v1597 = vshrl.u32 2475754826, %v1594
  %v1598 = vor.u32 %v1596, %v1597
  %v1599 = vshll.u32 2475754826, %v1593
  %v1600 = vshrl.u32 2131351028, %v1594
  %v1601 = vor.u32 %v1599, %v1600
  %v1602 = vshll.u32 2131351028, %v1593
  %v1603 = vshrl.u32 2102212464, %v1594
  %v1604 = vor.u32 %v1602, %v1603
  %v1605 = vshll.u32 2102212464, %v1593
  %v1606 = vshrl.u32 920167782, %v1594
  %v1607 = vor.u32 %v1605, %v1606
  %v1608 = vshll.u32 920167782, %v1593
  %v1609 = vshrl.u32 1326507024, %v1594
  %v1610 = vor.u32 %v1608, %v1609
  %vm1611 = vcmp.lt.s32.totalorder %v1592, 1
  %vm1612 = vcmp.lt.s32.totalorder %v1592, 2
  %vm1613 = vcmp.lt.s32.totalorder %v1592, 3
  %vm1614 = vcmp.lt.s32.totalorder %v1592, 4
  %v1615 = vsel %vm1611, %v1595, %v1598
  %v1616 = vsel %vm1614, %v1604, 2102212464
  %v1617 = vsel %vm1613, %v1601, %v1616
  %v1618 = vsel %vm1612, %v1615, %v1617
  %v1619 = vsel %vm1611, %v1598, %v1601
  %v1620 = vsel %vm1614, %v1607, 920167782
  %v1621 = vsel %vm1613, %v1604, %v1620
  %v1622 = vsel %vm1612, %v1619, %v1621
  %v1623 = vsel %vm1611, %v1601, %v1604
  %v1624 = vsel %vm1614, %v1610, 1326507024
  %v1625 = vsel %vm1613, %v1607, %v1624
  %v1626 = vsel %vm1612, %v1623, %v1625
  %v1627 = vshll.u32 %v1587, 8
  %v1628 = vmul.u32.u64.compose %v1627, %v1626
  %v1629 = vextract.low.u32 %v1628
  %v1630 = vextract.high.u32 %v1628
  %v1631 = vmul.u32.u64.compose %v1627, %v1622
  %v1632 = vextract.low.u32 %v1631
  %v1633 = vextract.high.u32 %v1631
  %v1634 = vmul.u32 %v1627, %v1618
  %v1635 = vadd.s32 %v1630, %v1632
  %vm1636 = vc.u32 %v1630, %v1632
  %v1637 = vadd.s32 %v1633, 1
  %v1638 = vsel %vm1636, %v1637, %v1633
  %v1639 = vadd.s32 %v1634, %v1638
  %v1640 = vadd.s32 %v1639, 536870912
  %v1641 = vshrl.u32 %v1640, 30
  %v1642 = vshll.u32 %v1641, 30
  %v1643 = vsub.s32 %v1639, %v1642
  %vm1644 = vcmp.lt.s32.totalorder %v1643, 0
  %v1645 = vsub.s32 0, %v1643
  %v1646 = vsel %vm1644, %v1645, %v1643
  %v1647 = vclz %v1646
  %v1648 = vsub.s32 %v1647, 2
  %vm1649 = vcmp.gt.s32.totalorder 0, %v1648
  %v1650 = vsel %vm1649, 0, %v1648
  %v1651 = vsub.s32 32, %v1650
  %v1652 = vshll.u32 %v1643, %v1650
  %v1653 = vshrl.u32 %v1635, %v1651
  %v1654 = vor.u32 %v1652, %v1653
  %v1655 = vsub.s32 4294967266, %v1650
  %v1656 = vadd.s32 %v1655, 127
  %v1657 = vshll.u32 %v1656, 23
  %v1658 = vor.u32 4788187, %v1657
  %v1659 = vand.u32 2147483647, %v1658
  %v1661 = vcvt.s32.f32 %v1654
  %v1662 = vmul.f32 %v1661, %v1659
  %v1663 = vxor.u32 %v1662, 2147483648
  %v1664 = vsel %vm1581, %v1663, %v1662
  %v1665 = vsub.s32 4, %v1641
  %v1666 = vsel %vm1581, %v1665, %v1641
  %v1667 = vsel %vm1580, %v826, %v1664
  %v1668 = vsel %vm1580, 0, %v1666
  %v1669 = vcosq.f32.pop %v1667
  %v1670 = vsinq.f32.pop %v1667
  %vm1671 = vweird.f32 %v826
  %v1672 = vadd.s32 %v1668, 3
  %v1673 = vand.u32 %v1672, 3
  %vm1674 = vcmp.lt.s32.totalorder %v1673, 2
  %vm1675 = vcmp.eq.s32.totalorder %v1673, 0
  %v1676 = vxor.u32 %v1670, 2147483648
  %v1677 = vsel %vm1675, %v1669, %v1676
  %vm1678 = vcmp.eq.s32.totalorder %v1673, 2
  %v1679 = vxor.u32 %v1669, 2147483648
  %v1680 = vsel %vm1678, %v1679, %v1670
  %v1681 = vsel %vm1674, %v1677, %v1680
  %v1682 = vsel %vm1671, nan, %v1681
  %v1683 = vand.u32 2147483647, %v827
  %vm1684 = vcmp.le.f32.partialorder %v1683, 0.7853982
  %vm1685 = vcmp.lt.s32.totalorder %v827, 0
  %v1686 = vand.u32 %v827, 2139095040
  %v1687 = vshrl.u32 %v1686, 23
  %v1688 = vsub.s32 %v1687, 127
  %v1689 = vand.u32 2147483647, %v827
  %v1690 = vand.u32 %v1689, 8388607
  %v1691 = vor.u32 %v1690, 8388608
  %v1692 = vsub.s32 0, %v1691
  %v1693 = vadd.s32 %v1688, 1
  %vm1694 = vcmp.gt.s32.totalorder %v1693, 0
  %v1695 = vsel %vm1694, %v1693, 0
  %v1696 = vshrl.u32 %v1695, 5
  %v1697 = vand.u32 %v1695, 31
  %v1698 = vsub.s32 32, %v1697
  %v1699 = vshrl.u32 683565275, %v1698
  %v1700 = vshll.u32 683565275, %v1697
  %v1701 = vshrl.u32 2475754826, %v1698
  %v1702 = vor.u32 %v1700, %v1701
  %v1703 = vshll.u32 2475754826, %v1697
  %v1704 = vshrl.u32 2131351028, %v1698
  %v1705 = vor.u32 %v1703, %v1704
  %v1706 = vshll.u32 2131351028, %v1697
  %v1707 = vshrl.u32 2102212464, %v1698
  %v1708 = vor.u32 %v1706, %v1707
  %v1709 = vshll.u32 2102212464, %v1697
  %v1710 = vshrl.u32 920167782, %v1698
  %v1711 = vor.u32 %v1709, %v1710
  %v1712 = vshll.u32 920167782, %v1697
  %v1713 = vshrl.u32 1326507024, %v1698
  %v1714 = vor.u32 %v1712, %v1713
  %vm1715 = vcmp.lt.s32.totalorder %v1696, 1
  %vm1716 = vcmp.lt.s32.totalorder %v1696, 2
  %vm1717 = vcmp.lt.s32.totalorder %v1696, 3
  %vm1718 = vcmp.lt.s32.totalorder %v1696, 4
  %v1719 = vsel %vm1715, %v1699, %v1702
  %v1720 = vsel %vm1718, %v1708, 2102212464
  %v1721 = vsel %vm1717, %v1705, %v1720
  %v1722 = vsel %vm1716, %v1719, %v1721
  %v1723 = vsel %vm1715, %v1702, %v1705
  %v1724 = vsel %vm1718, %v1711, 920167782
  %v1725 = vsel %vm1717, %v1708, %v1724
  %v1726 = vsel %vm1716, %v1723, %v1725
  %v1727 = vsel %vm1715, %v1705, %v1708
  %v1728 = vsel %vm1718, %v1714, 1326507024
  %v1729 = vsel %vm1717, %v1711, %v1728
  %v1730 = vsel %vm1716, %v1727, %v1729
  %v1731 = vshll.u32 %v1691, 8
  %v1732 = vmul.u32.u64.compose %v1731, %v1730
  %v1733 = vextract.low.u32 %v1732
  %v1734 = vextract.high.u32 %v1732
  %v1735 = vmul.u32.u64.compose %v1731, %v1726
  %v1736 = vextract.low.u32 %v1735
  %v1737 = vextract.high.u32 %v1735
  %v1738 = vmul.u32 %v1731, %v1722
  %v1739 = vadd.s32 %v1734, %v1736
  %vm1740 = vc.u32 %v1734, %v1736
  %v1741 = vadd.s32 %v1737, 1
  %v1742 = vsel %vm1740, %v1741, %v1737
  %v1743 = vadd.s32 %v1738, %v1742
  %v1744 = vadd.s32 %v1743, 536870912
  %v1745 = vshrl.u32 %v1744, 30
  %v1746 = vshll.u32 %v1745, 30
  %v1747 = vsub.s32 %v1743, %v1746
  %vm1748 = vcmp.lt.s32.totalorder %v1747, 0
  %v1749 = vsub.s32 0, %v1747
  %v1750 = vsel %vm1748, %v1749, %v1747
  %v1751 = vclz %v1750
  %v1752 = vsub.s32 %v1751, 2
  %vm1753 = vcmp.gt.s32.totalorder 0, %v1752
  %v1754 = vsel %vm1753, 0, %v1752
  %v1755 = vsub.s32 32, %v1754
  %v1756 = vshll.u32 %v1747, %v1754
  %v1757 = vshrl.u32 %v1739, %v1755
  %v1758 = vor.u32 %v1756, %v1757
  %v1759 = vsub.s32 4294967266, %v1754
  %v1760 = vadd.s32 %v1759, 127
  %v1761 = vshll.u32 %v1760, 23
  %v1762 = vor.u32 4788187, %v1761
  %v1763 = vand.u32 2147483647, %v1762
  %v1765 = vcvt.s32.f32 %v1758
  %v1766 = vmul.f32 %v1765, %v1763
  %v1767 = vxor.u32 %v1766, 2147483648
  %v1768 = vsel %vm1685, %v1767, %v1766
  %v1769 = vsub.s32 4, %v1745
  %v1770 = vsel %vm1685, %v1769, %v1745
  %v1771 = vsel %vm1684, %v827, %v1768
  %v1772 = vsel %vm1684, 0, %v1770
  %v1773 = vcosq.f32.pop %v1771
  %v1774 = vsinq.f32.pop %v1771
  %vm1775 = vweird.f32 %v827
  %v1776 = vadd.s32 %v1772, 3
  %v1777 = vand.u32 %v1776, 3
  %vm1778 = vcmp.lt.s32.totalorder %v1777, 2
  %vm1779 = vcmp.eq.s32.totalorder %v1777, 0
  %v1780 = vxor.u32 %v1774, 2147483648
  %v1781 = vsel %vm1779, %v1773, %v1780
  %vm1782 = vcmp.eq.s32.totalorder %v1777, 2
  %v1783 = vxor.u32 %v1773, 2147483648
  %v1784 = vsel %vm1782, %v1783, %v1774
  %v1785 = vsel %vm1778, %v1781, %v1784
  %v1786 = vsel %vm1775, nan, %v1785
  %v1787 = vand.u32 2147483647, %v828
  %vm1788 = vcmp.le.f32.partialorder %v1787, 0.7853982
  %vm1789 = vcmp.lt.s32.totalorder %v828, 0
  %v1790 = vand.u32 %v828, 2139095040
  %v1791 = vshrl.u32 %v1790, 23
  %v1792 = vsub.s32 %v1791, 127
  %v1793 = vand.u32 2147483647, %v828
  %v1794 = vand.u32 %v1793, 8388607
  %v1795 = vor.u32 %v1794, 8388608
  %v1796 = vsub.s32 0, %v1795
  %v1797 = vadd.s32 %v1792, 1
  %vm1798 = vcmp.gt.s32.totalorder %v1797, 0
  %v1799 = vsel %vm1798, %v1797, 0
  %v1800 = vshrl.u32 %v1799, 5
  %v1801 = vand.u32 %v1799, 31
  %v1802 = vsub.s32 32, %v1801
  %v1803 = vshrl.u32 683565275, %v1802
  %v1804 = vshll.u32 683565275, %v1801
  %v1805 = vshrl.u32 2475754826, %v1802
  %v1806 = vor.u32 %v1804, %v1805
  %v1807 = vshll.u32 2475754826, %v1801
  %v1808 = vshrl.u32 2131351028, %v1802
  %v1809 = vor.u32 %v1807, %v1808
  %v1810 = vshll.u32 2131351028, %v1801
  %v1811 = vshrl.u32 2102212464, %v1802
  %v1812 = vor.u32 %v1810, %v1811
  %v1813 = vshll.u32 2102212464, %v1801
  %v1814 = vshrl.u32 920167782, %v1802
  %v1815 = vor.u32 %v1813, %v1814
  %v1816 = vshll.u32 920167782, %v1801
  %v1817 = vshrl.u32 1326507024, %v1802
  %v1818 = vor.u32 %v1816, %v1817
  %vm1819 = vcmp.lt.s32.totalorder %v1800, 1
  %vm1820 = vcmp.lt.s32.totalorder %v1800, 2
  %vm1821 = vcmp.lt.s32.totalorder %v1800, 3
  %vm1822 = vcmp.lt.s32.totalorder %v1800, 4
  %v1823 = vsel %vm1819, %v1803, %v1806
  %v1824 = vsel %vm1822, %v1812, 2102212464
  %v1825 = vsel %vm1821, %v1809, %v1824
  %v1826 = vsel %vm1820, %v1823, %v1825
  %v1827 = vsel %vm1819, %v1806, %v1809
  %v1828 = vsel %vm1822, %v1815, 920167782
  %v1829 = vsel %vm1821, %v1812, %v1828
  %v1830 = vsel %vm1820, %v1827, %v1829
  %v1831 = vsel %vm1819, %v1809, %v1812
  %v1832 = vsel %vm1822, %v1818, 1326507024
  %v1833 = vsel %vm1821, %v1815, %v1832
  %v1834 = vsel %vm1820, %v1831, %v1833
  %v1835 = vshll.u32 %v1795, 8
  %v1836 = vmul.u32.u64.compose %v1835, %v1834
  %v1837 = vextract.low.u32 %v1836
  %v1838 = vextract.high.u32 %v1836
  %v1839 = vmul.u32.u64.compose %v1835, %v1830
  %v1840 = vextract.low.u32 %v1839
  %v1841 = vextract.high.u32 %v1839
  %v1842 = vmul.u32 %v1835, %v1826
  %v1843 = vadd.s32 %v1838, %v1840
  %vm1844 = vc.u32 %v1838, %v1840
  %v1845 = vadd.s32 %v1841, 1
  %v1846 = vsel %vm1844, %v1845, %v1841
  %v1847 = vadd.s32 %v1842, %v1846
  %v1848 = vadd.s32 %v1847, 536870912
  %v1849 = vshrl.u32 %v1848, 30
  %v1850 = vshll.u32 %v1849, 30
  %v1851 = vsub.s32 %v1847, %v1850
  %vm1852 = vcmp.lt.s32.totalorder %v1851, 0
  %v1853 = vsub.s32 0, %v1851
  %v1854 = vsel %vm1852, %v1853, %v1851
  %v1855 = vclz %v1854
  %v1856 = vsub.s32 %v1855, 2
  %vm1857 = vcmp.gt.s32.totalorder 0, %v1856
  %v1858 = vsel %vm1857, 0, %v1856
  %v1859 = vsub.s32 32, %v1858
  %v1860 = vshll.u32 %v1851, %v1858
  %v1861 = vshrl.u32 %v1843, %v1859
  %v1862 = vor.u32 %v1860, %v1861
  %v1863 = vsub.s32 4294967266, %v1858
  %v1864 = vadd.s32 %v1863, 127
  %v1865 = vshll.u32 %v1864, 23
  %v1866 = vor.u32 4788187, %v1865
  %v1867 = vand.u32 2147483647, %v1866
  %v1869 = vcvt.s32.f32 %v1862
  %v1870 = vmul.f32 %v1869, %v1867
  %v1871 = vxor.u32 %v1870, 2147483648
  %v1872 = vsel %vm1789, %v1871, %v1870
  %v1873 = vsub.s32 4, %v1849
  %v1874 = vsel %vm1789, %v1873, %v1849
  %v1875 = vsel %vm1788, %v828, %v1872
  %v1876 = vsel %vm1788, 0, %v1874
  %v1877 = vcosq.f32.pop %v1875
  %v1878 = vsinq.f32.pop %v1875
  %vm1879 = vweird.f32 %v828
  %v1880 = vadd.s32 %v1876, 3
  %v1881 = vand.u32 %v1880, 3
  %vm1882 = vcmp.lt.s32.totalorder %v1881, 2
  %vm1883 = vcmp.eq.s32.totalorder %v1881, 0
  %v1884 = vxor.u32 %v1878, 2147483648
  %v1885 = vsel %vm1883, %v1877, %v1884
  %vm1886 = vcmp.eq.s32.totalorder %v1881, 2
  %v1887 = vxor.u32 %v1877, 2147483648
  %v1888 = vsel %vm1886, %v1887, %v1878
  %v1889 = vsel %vm1882, %v1885, %v1888
  %v1890 = vsel %vm1879, nan, %v1889
  %v1891 = vand.u32 2147483647, %v829
  %vm1892 = vcmp.le.f32.partialorder %v1891, 0.7853982
  %vm1893 = vcmp.lt.s32.totalorder %v829, 0
  %v1894 = vand.u32 %v829, 2139095040
  %v1895 = vshrl.u32 %v1894, 23
  %v1896 = vsub.s32 %v1895, 127
  %v1897 = vand.u32 2147483647, %v829
  %v1898 = vand.u32 %v1897, 8388607
  %v1899 = vor.u32 %v1898, 8388608
  %v1900 = vsub.s32 0, %v1899
  %v1901 = vadd.s32 %v1896, 1
  %vm1902 = vcmp.gt.s32.totalorder %v1901, 0
  %v1903 = vsel %vm1902, %v1901, 0
  %v1904 = vshrl.u32 %v1903, 5
  %v1905 = vand.u32 %v1903, 31
  %v1906 = vsub.s32 32, %v1905
  %v1907 = vshrl.u32 683565275, %v1906
  %v1908 = vshll.u32 683565275, %v1905
  %v1909 = vshrl.u32 2475754826, %v1906
  %v1910 = vor.u32 %v1908, %v1909
  %v1911 = vshll.u32 2475754826, %v1905
  %v1912 = vshrl.u32 2131351028, %v1906
  %v1913 = vor.u32 %v1911, %v1912
  %v1914 = vshll.u32 2131351028, %v1905
  %v1915 = vshrl.u32 2102212464, %v1906
  %v1916 = vor.u32 %v1914, %v1915
  %v1917 = vshll.u32 2102212464, %v1905
  %v1918 = vshrl.u32 920167782, %v1906
  %v1919 = vor.u32 %v1917, %v1918
  %v1920 = vshll.u32 920167782, %v1905
  %v1921 = vshrl.u32 1326507024, %v1906
  %v1922 = vor.u32 %v1920, %v1921
  %vm1923 = vcmp.lt.s32.totalorder %v1904, 1
  %vm1924 = vcmp.lt.s32.totalorder %v1904, 2
  %vm1925 = vcmp.lt.s32.totalorder %v1904, 3
  %vm1926 = vcmp.lt.s32.totalorder %v1904, 4
  %v1927 = vsel %vm1923, %v1907, %v1910
  %v1928 = vsel %vm1926, %v1916, 2102212464
  %v1929 = vsel %vm1925, %v1913, %v1928
  %v1930 = vsel %vm1924, %v1927, %v1929
  %v1931 = vsel %vm1923, %v1910, %v1913
  %v1932 = vsel %vm1926, %v1919, 920167782
  %v1933 = vsel %vm1925, %v1916, %v1932
  %v1934 = vsel %vm1924, %v1931, %v1933
  %v1935 = vsel %vm1923, %v1913, %v1916
  %v1936 = vsel %vm1926, %v1922, 1326507024
  %v1937 = vsel %vm1925, %v1919, %v1936
  %v1938 = vsel %vm1924, %v1935, %v1937
  %v1939 = vshll.u32 %v1899, 8
  %v1940 = vmul.u32.u64.compose %v1939, %v1938
  %v1941 = vextract.low.u32 %v1940
  %v1942 = vextract.high.u32 %v1940
  %v1943 = vmul.u32.u64.compose %v1939, %v1934
  %v1944 = vextract.low.u32 %v1943
  %v1945 = vextract.high.u32 %v1943
  %v1946 = vmul.u32 %v1939, %v1930
  %v1947 = vadd.s32 %v1942, %v1944
  %vm1948 = vc.u32 %v1942, %v1944
  %v1949 = vadd.s32 %v1945, 1
  %v1950 = vsel %vm1948, %v1949, %v1945
  %v1951 = vadd.s32 %v1946, %v1950
  %v1952 = vadd.s32 %v1951, 536870912
  %v1953 = vshrl.u32 %v1952, 30
  %v1954 = vshll.u32 %v1953, 30
  %v1955 = vsub.s32 %v1951, %v1954
  %vm1956 = vcmp.lt.s32.totalorder %v1955, 0
  %v1957 = vsub.s32 0, %v1955
  %v1958 = vsel %vm1956, %v1957, %v1955
  %v1959 = vclz %v1958
  %v1960 = vsub.s32 %v1959, 2
  %vm1961 = vcmp.gt.s32.totalorder 0, %v1960
  %v1962 = vsel %vm1961, 0, %v1960
  %v1963 = vsub.s32 32, %v1962
  %v1964 = vshll.u32 %v1955, %v1962
  %v1965 = vshrl.u32 %v1947, %v1963
  %v1966 = vor.u32 %v1964, %v1965
  %v1967 = vsub.s32 4294967266, %v1962
  %v1968 = vadd.s32 %v1967, 127
  %v1969 = vshll.u32 %v1968, 23
  %v1970 = vor.u32 4788187, %v1969
  %v1971 = vand.u32 2147483647, %v1970
  %v1973 = vcvt.s32.f32 %v1966
  %v1974 = vmul.f32 %v1973, %v1971
  %v1975 = vxor.u32 %v1974, 2147483648
  %v1976 = vsel %vm1893, %v1975, %v1974
  %v1977 = vsub.s32 4, %v1953
  %v1978 = vsel %vm1893, %v1977, %v1953
  %v1979 = vsel %vm1892, %v829, %v1976
  %v1980 = vsel %vm1892, 0, %v1978
  %v1981 = vcosq.f32.pop %v1979
  %v1982 = vsinq.f32.pop %v1979
  %vm1983 = vweird.f32 %v829
  %v1984 = vadd.s32 %v1980, 3
  %v1985 = vand.u32 %v1984, 3
  %vm1986 = vcmp.lt.s32.totalorder %v1985, 2
  %vm1987 = vcmp.eq.s32.totalorder %v1985, 0
  %v1988 = vxor.u32 %v1982, 2147483648
  %v1989 = vsel %vm1987, %v1981, %v1988
  %vm1990 = vcmp.eq.s32.totalorder %v1985, 2
  %v1991 = vxor.u32 %v1981, 2147483648
  %v1992 = vsel %vm1990, %v1991, %v1982
  %v1993 = vsel %vm1986, %v1989, %v1992
  %v1994 = vsel %vm1983, nan, %v1993
  %v1995 = vand.u32 2147483647, %v830
  %vm1996 = vcmp.le.f32.partialorder %v1995, 0.7853982
  %vm1997 = vcmp.lt.s32.totalorder %v830, 0
  %v1998 = vand.u32 %v830, 2139095040
  %v1999 = vshrl.u32 %v1998, 23
  %v2000 = vsub.s32 %v1999, 127
  %v2001 = vand.u32 2147483647, %v830
  %v2002 = vand.u32 %v2001, 8388607
  %v2003 = vor.u32 %v2002, 8388608
  %v2004 = vsub.s32 0, %v2003
  %v2005 = vadd.s32 %v2000, 1
  %vm2006 = vcmp.gt.s32.totalorder %v2005, 0
  %v2007 = vsel %vm2006, %v2005, 0
  %v2008 = vshrl.u32 %v2007, 5
  %v2009 = vand.u32 %v2007, 31
  %v2010 = vsub.s32 32, %v2009
  %v2011 = vshrl.u32 683565275, %v2010
  %v2012 = vshll.u32 683565275, %v2009
  %v2013 = vshrl.u32 2475754826, %v2010
  %v2014 = vor.u32 %v2012, %v2013
  %v2015 = vshll.u32 2475754826, %v2009
  %v2016 = vshrl.u32 2131351028, %v2010
  %v2017 = vor.u32 %v2015, %v2016
  %v2018 = vshll.u32 2131351028, %v2009
  %v2019 = vshrl.u32 2102212464, %v2010
  %v2020 = vor.u32 %v2018, %v2019
  %v2021 = vshll.u32 2102212464, %v2009
  %v2022 = vshrl.u32 920167782, %v2010
  %v2023 = vor.u32 %v2021, %v2022
  %v2024 = vshll.u32 920167782, %v2009
  %v2025 = vshrl.u32 1326507024, %v2010
  %v2026 = vor.u32 %v2024, %v2025
  %vm2027 = vcmp.lt.s32.totalorder %v2008, 1
  %vm2028 = vcmp.lt.s32.totalorder %v2008, 2
  %vm2029 = vcmp.lt.s32.totalorder %v2008, 3
  %vm2030 = vcmp.lt.s32.totalorder %v2008, 4
  %v2031 = vsel %vm2027, %v2011, %v2014
  %v2032 = vsel %vm2030, %v2020, 2102212464
  %v2033 = vsel %vm2029, %v2017, %v2032
  %v2034 = vsel %vm2028, %v2031, %v2033
  %v2035 = vsel %vm2027, %v2014, %v2017
  %v2036 = vsel %vm2030, %v2023, 920167782
  %v2037 = vsel %vm2029, %v2020, %v2036
  %v2038 = vsel %vm2028, %v2035, %v2037
  %v2039 = vsel %vm2027, %v2017, %v2020
  %v2040 = vsel %vm2030, %v2026, 1326507024
  %v2041 = vsel %vm2029, %v2023, %v2040
  %v2042 = vsel %vm2028, %v2039, %v2041
  %v2043 = vshll.u32 %v2003, 8
  %v2044 = vmul.u32.u64.compose %v2043, %v2042
  %v2045 = vextract.low.u32 %v2044
  %v2046 = vextract.high.u32 %v2044
  %v2047 = vmul.u32.u64.compose %v2043, %v2038
  %v2048 = vextract.low.u32 %v2047
  %v2049 = vextract.high.u32 %v2047
  %v2050 = vmul.u32 %v2043, %v2034
  %v2051 = vadd.s32 %v2046, %v2048
  %vm2052 = vc.u32 %v2046, %v2048
  %v2053 = vadd.s32 %v2049, 1
  %v2054 = vsel %vm2052, %v2053, %v2049
  %v2055 = vadd.s32 %v2050, %v2054
  %v2056 = vadd.s32 %v2055, 536870912
  %v2057 = vshrl.u32 %v2056, 30
  %v2058 = vshll.u32 %v2057, 30
  %v2059 = vsub.s32 %v2055, %v2058
  %vm2060 = vcmp.lt.s32.totalorder %v2059, 0
  %v2061 = vsub.s32 0, %v2059
  %v2062 = vsel %vm2060, %v2061, %v2059
  %v2063 = vclz %v2062
  %v2064 = vsub.s32 %v2063, 2
  %vm2065 = vcmp.gt.s32.totalorder 0, %v2064
  %v2066 = vsel %vm2065, 0, %v2064
  %v2067 = vsub.s32 32, %v2066
  %v2068 = vshll.u32 %v2059, %v2066
  %v2069 = vshrl.u32 %v2051, %v2067
  %v2070 = vor.u32 %v2068, %v2069
  %v2071 = vsub.s32 4294967266, %v2066
  %v2072 = vadd.s32 %v2071, 127
  %v2073 = vshll.u32 %v2072, 23
  %v2074 = vor.u32 4788187, %v2073
  %v2075 = vand.u32 2147483647, %v2074
  %v2077 = vcvt.s32.f32 %v2070
  %v2078 = vmul.f32 %v2077, %v2075
  %v2079 = vxor.u32 %v2078, 2147483648
  %v2080 = vsel %vm1997, %v2079, %v2078
  %v2081 = vsub.s32 4, %v2057
  %v2082 = vsel %vm1997, %v2081, %v2057
  %v2083 = vsel %vm1996, %v830, %v2080
  %v2084 = vsel %vm1996, 0, %v2082
  %v2085 = vcosq.f32.pop %v2083
  %v2086 = vsinq.f32.pop %v2083
  %vm2087 = vweird.f32 %v830
  %v2088 = vadd.s32 %v2084, 3
  %v2089 = vand.u32 %v2088, 3
  %vm2090 = vcmp.lt.s32.totalorder %v2089, 2
  %vm2091 = vcmp.eq.s32.totalorder %v2089, 0
  %v2092 = vxor.u32 %v2086, 2147483648
  %v2093 = vsel %vm2091, %v2085, %v2092
  %vm2094 = vcmp.eq.s32.totalorder %v2089, 2
  %v2095 = vxor.u32 %v2085, 2147483648
  %v2096 = vsel %vm2094, %v2095, %v2086
  %v2097 = vsel %vm2090, %v2093, %v2096
  %v2098 = vsel %vm2087, nan, %v2097
  %v2099 = vand.u32 2147483647, %v831
  %vm2100 = vcmp.le.f32.partialorder %v2099, 0.7853982
  %vm2101 = vcmp.lt.s32.totalorder %v831, 0
  %v2102 = vand.u32 %v831, 2139095040
  %v2103 = vshrl.u32 %v2102, 23
  %v2104 = vsub.s32 %v2103, 127
  %v2105 = vand.u32 2147483647, %v831
  %v2106 = vand.u32 %v2105, 8388607
  %v2107 = vor.u32 %v2106, 8388608
  %v2108 = vsub.s32 0, %v2107
  %v2109 = vadd.s32 %v2104, 1
  %vm2110 = vcmp.gt.s32.totalorder %v2109, 0
  %v2111 = vsel %vm2110, %v2109, 0
  %v2112 = vshrl.u32 %v2111, 5
  %v2113 = vand.u32 %v2111, 31
  %v2114 = vsub.s32 32, %v2113
  %v2115 = vshrl.u32 683565275, %v2114
  %v2116 = vshll.u32 683565275, %v2113
  %v2117 = vshrl.u32 2475754826, %v2114
  %v2118 = vor.u32 %v2116, %v2117
  %v2119 = vshll.u32 2475754826, %v2113
  %v2120 = vshrl.u32 2131351028, %v2114
  %v2121 = vor.u32 %v2119, %v2120
  %v2122 = vshll.u32 2131351028, %v2113
  %v2123 = vshrl.u32 2102212464, %v2114
  %v2124 = vor.u32 %v2122, %v2123
  %v2125 = vshll.u32 2102212464, %v2113
  %v2126 = vshrl.u32 920167782, %v2114
  %v2127 = vor.u32 %v2125, %v2126
  %v2128 = vshll.u32 920167782, %v2113
  %v2129 = vshrl.u32 1326507024, %v2114
  %v2130 = vor.u32 %v2128, %v2129
  %vm2131 = vcmp.lt.s32.totalorder %v2112, 1
  %vm2132 = vcmp.lt.s32.totalorder %v2112, 2
  %vm2133 = vcmp.lt.s32.totalorder %v2112, 3
  %vm2134 = vcmp.lt.s32.totalorder %v2112, 4
  %v2135 = vsel %vm2131, %v2115, %v2118
  %v2136 = vsel %vm2134, %v2124, 2102212464
  %v2137 = vsel %vm2133, %v2121, %v2136
  %v2138 = vsel %vm2132, %v2135, %v2137
  %v2139 = vsel %vm2131, %v2118, %v2121
  %v2140 = vsel %vm2134, %v2127, 920167782
  %v2141 = vsel %vm2133, %v2124, %v2140
  %v2142 = vsel %vm2132, %v2139, %v2141
  %v2143 = vsel %vm2131, %v2121, %v2124
  %v2144 = vsel %vm2134, %v2130, 1326507024
  %v2145 = vsel %vm2133, %v2127, %v2144
  %v2146 = vsel %vm2132, %v2143, %v2145
  %v2147 = vshll.u32 %v2107, 8
  %v2148 = vmul.u32.u64.compose %v2147, %v2146
  %v2149 = vextract.low.u32 %v2148
  %v2150 = vextract.high.u32 %v2148
  %v2151 = vmul.u32.u64.compose %v2147, %v2142
  %v2152 = vextract.low.u32 %v2151
  %v2153 = vextract.high.u32 %v2151
  %v2154 = vmul.u32 %v2147, %v2138
  %v2155 = vadd.s32 %v2150, %v2152
  %vm2156 = vc.u32 %v2150, %v2152
  %v2157 = vadd.s32 %v2153, 1
  %v2158 = vsel %vm2156, %v2157, %v2153
  %v2159 = vadd.s32 %v2154, %v2158
  %v2160 = vadd.s32 %v2159, 536870912
  %v2161 = vshrl.u32 %v2160, 30
  %v2162 = vshll.u32 %v2161, 30
  %v2163 = vsub.s32 %v2159, %v2162
  %vm2164 = vcmp.lt.s32.totalorder %v2163, 0
  %v2165 = vsub.s32 0, %v2163
  %v2166 = vsel %vm2164, %v2165, %v2163
  %v2167 = vclz %v2166
  %v2168 = vsub.s32 %v2167, 2
  %vm2169 = vcmp.gt.s32.totalorder 0, %v2168
  %v2170 = vsel %vm2169, 0, %v2168
  %v2171 = vsub.s32 32, %v2170
  %v2172 = vshll.u32 %v2163, %v2170
  %v2173 = vshrl.u32 %v2155, %v2171
  %v2174 = vor.u32 %v2172, %v2173
  %v2175 = vsub.s32 4294967266, %v2170
  %v2176 = vadd.s32 %v2175, 127
  %v2177 = vshll.u32 %v2176, 23
  %v2178 = vor.u32 4788187, %v2177
  %v2179 = vand.u32 2147483647, %v2178
  %v2181 = vcvt.s32.f32 %v2174
  %v2182 = vmul.f32 %v2181, %v2179
  %v2183 = vxor.u32 %v2182, 2147483648
  %v2184 = vsel %vm2101, %v2183, %v2182
  %v2185 = vsub.s32 4, %v2161
  %v2186 = vsel %vm2101, %v2185, %v2161
  %v2187 = vsel %vm2100, %v831, %v2184
  %v2188 = vsel %vm2100, 0, %v2186
  %v2189 = vcosq.f32.pop %v2187
  %v2190 = vsinq.f32.pop %v2187
  %vm2191 = vweird.f32 %v831
  %v2192 = vadd.s32 %v2188, 3
  %v2193 = vand.u32 %v2192, 3
  %vm2194 = vcmp.lt.s32.totalorder %v2193, 2
  %vm2195 = vcmp.eq.s32.totalorder %v2193, 0
  %v2196 = vxor.u32 %v2190, 2147483648
  %v2197 = vsel %vm2195, %v2189, %v2196
  %vm2198 = vcmp.eq.s32.totalorder %v2193, 2
  %v2199 = vxor.u32 %v2189, 2147483648
  %v2200 = vsel %vm2198, %v2199, %v2190
  %v2201 = vsel %vm2194, %v2197, %v2200
  %v2202 = vsel %vm2191, nan, %v2201
  %v2203 = vand.u32 2147483647, %v832
  %vm2204 = vcmp.le.f32.partialorder %v2203, 0.7853982
  %vm2205 = vcmp.lt.s32.totalorder %v832, 0
  %v2206 = vand.u32 %v832, 2139095040
  %v2207 = vshrl.u32 %v2206, 23
  %v2208 = vsub.s32 %v2207, 127
  %v2209 = vand.u32 2147483647, %v832
  %v2210 = vand.u32 %v2209, 8388607
  %v2211 = vor.u32 %v2210, 8388608
  %v2212 = vsub.s32 0, %v2211
  %v2213 = vadd.s32 %v2208, 1
  %vm2214 = vcmp.gt.s32.totalorder %v2213, 0
  %v2215 = vsel %vm2214, %v2213, 0
  %v2216 = vshrl.u32 %v2215, 5
  %v2217 = vand.u32 %v2215, 31
  %v2218 = vsub.s32 32, %v2217
  %v2219 = vshrl.u32 683565275, %v2218
  %v2220 = vshll.u32 683565275, %v2217
  %v2221 = vshrl.u32 2475754826, %v2218
  %v2222 = vor.u32 %v2220, %v2221
  %v2223 = vshll.u32 2475754826, %v2217
  %v2224 = vshrl.u32 2131351028, %v2218
  %v2225 = vor.u32 %v2223, %v2224
  %v2226 = vshll.u32 2131351028, %v2217
  %v2227 = vshrl.u32 2102212464, %v2218
  %v2228 = vor.u32 %v2226, %v2227
  %v2229 = vshll.u32 2102212464, %v2217
  %v2230 = vshrl.u32 920167782, %v2218
  %v2231 = vor.u32 %v2229, %v2230
  %v2232 = vshll.u32 920167782, %v2217
  %v2233 = vshrl.u32 1326507024, %v2218
  %v2234 = vor.u32 %v2232, %v2233
  %vm2235 = vcmp.lt.s32.totalorder %v2216, 1
  %vm2236 = vcmp.lt.s32.totalorder %v2216, 2
  %vm2237 = vcmp.lt.s32.totalorder %v2216, 3
  %vm2238 = vcmp.lt.s32.totalorder %v2216, 4
  %v2239 = vsel %vm2235, %v2219, %v2222
  %v2240 = vsel %vm2238, %v2228, 2102212464
  %v2241 = vsel %vm2237, %v2225, %v2240
  %v2242 = vsel %vm2236, %v2239, %v2241
  %v2243 = vsel %vm2235, %v2222, %v2225
  %v2244 = vsel %vm2238, %v2231, 920167782
  %v2245 = vsel %vm2237, %v2228, %v2244
  %v2246 = vsel %vm2236, %v2243, %v2245
  %v2247 = vsel %vm2235, %v2225, %v2228
  %v2248 = vsel %vm2238, %v2234, 1326507024
  %v2249 = vsel %vm2237, %v2231, %v2248
  %v2250 = vsel %vm2236, %v2247, %v2249
  %v2251 = vshll.u32 %v2211, 8
  %v2252 = vmul.u32.u64.compose %v2251, %v2250
  %v2253 = vextract.low.u32 %v2252
  %v2254 = vextract.high.u32 %v2252
  %v2255 = vmul.u32.u64.compose %v2251, %v2246
  %v2256 = vextract.low.u32 %v2255
  %v2257 = vextract.high.u32 %v2255
  %v2258 = vmul.u32 %v2251, %v2242
  %v2259 = vadd.s32 %v2254, %v2256
  %vm2260 = vc.u32 %v2254, %v2256
  %v2261 = vadd.s32 %v2257, 1
  %v2262 = vsel %vm2260, %v2261, %v2257
  %v2263 = vadd.s32 %v2258, %v2262
  %v2264 = vadd.s32 %v2263, 536870912
  %v2265 = vshrl.u32 %v2264, 30
  %v2266 = vshll.u32 %v2265, 30
  %v2267 = vsub.s32 %v2263, %v2266
  %vm2268 = vcmp.lt.s32.totalorder %v2267, 0
  %v2269 = vsub.s32 0, %v2267
  %v2270 = vsel %vm2268, %v2269, %v2267
  %v2271 = vclz %v2270
  %v2272 = vsub.s32 %v2271, 2
  %vm2273 = vcmp.gt.s32.totalorder 0, %v2272
  %v2274 = vsel %vm2273, 0, %v2272
  %v2275 = vsub.s32 32, %v2274
  %v2276 = vshll.u32 %v2267, %v2274
  %v2277 = vshrl.u32 %v2259, %v2275
  %v2278 = vor.u32 %v2276, %v2277
  %v2279 = vsub.s32 4294967266, %v2274
  %v2280 = vadd.s32 %v2279, 127
  %v2281 = vshll.u32 %v2280, 23
  %v2282 = vor.u32 4788187, %v2281
  %v2283 = vand.u32 2147483647, %v2282
  %v2285 = vcvt.s32.f32 %v2278
  %v2286 = vmul.f32 %v2285, %v2283
  %v2287 = vxor.u32 %v2286, 2147483648
  %v2288 = vsel %vm2205, %v2287, %v2286
  %v2289 = vsub.s32 4, %v2265
  %v2290 = vsel %vm2205, %v2289, %v2265
  %v2291 = vsel %vm2204, %v832, %v2288
  %v2292 = vsel %vm2204, 0, %v2290
  %v2293 = vcosq.f32.pop %v2291
  %v2294 = vsinq.f32.pop %v2291
  %vm2295 = vweird.f32 %v832
  %v2296 = vadd.s32 %v2292, 3
  %v2297 = vand.u32 %v2296, 3
  %vm2298 = vcmp.lt.s32.totalorder %v2297, 2
  %vm2299 = vcmp.eq.s32.totalorder %v2297, 0
  %v2300 = vxor.u32 %v2294, 2147483648
  %v2301 = vsel %vm2299, %v2293, %v2300
  %vm2302 = vcmp.eq.s32.totalorder %v2297, 2
  %v2303 = vxor.u32 %v2293, 2147483648
  %v2304 = vsel %vm2302, %v2303, %v2294
  %v2305 = vsel %vm2298, %v2301, %v2304
  %v2306 = vsel %vm2295, nan, %v2305
  %v2307 = vand.u32 2147483647, %v833
  %vm2308 = vcmp.le.f32.partialorder %v2307, 0.7853982
  %vm2309 = vcmp.lt.s32.totalorder %v833, 0
  %v2310 = vand.u32 %v833, 2139095040
  %v2311 = vshrl.u32 %v2310, 23
  %v2312 = vsub.s32 %v2311, 127
  %v2313 = vand.u32 2147483647, %v833
  %v2314 = vand.u32 %v2313, 8388607
  %v2315 = vor.u32 %v2314, 8388608
  %v2316 = vsub.s32 0, %v2315
  %v2317 = vadd.s32 %v2312, 1
  %vm2318 = vcmp.gt.s32.totalorder %v2317, 0
  %v2319 = vsel %vm2318, %v2317, 0
  %v2320 = vshrl.u32 %v2319, 5
  %v2321 = vand.u32 %v2319, 31
  %v2322 = vsub.s32 32, %v2321
  %v2323 = vshrl.u32 683565275, %v2322
  %v2324 = vshll.u32 683565275, %v2321
  %v2325 = vshrl.u32 2475754826, %v2322
  %v2326 = vor.u32 %v2324, %v2325
  %v2327 = vshll.u32 2475754826, %v2321
  %v2328 = vshrl.u32 2131351028, %v2322
  %v2329 = vor.u32 %v2327, %v2328
  %v2330 = vshll.u32 2131351028, %v2321
  %v2331 = vshrl.u32 2102212464, %v2322
  %v2332 = vor.u32 %v2330, %v2331
  %v2333 = vshll.u32 2102212464, %v2321
  %v2334 = vshrl.u32 920167782, %v2322
  %v2335 = vor.u32 %v2333, %v2334
  %v2336 = vshll.u32 920167782, %v2321
  %v2337 = vshrl.u32 1326507024, %v2322
  %v2338 = vor.u32 %v2336, %v2337
  %vm2339 = vcmp.lt.s32.totalorder %v2320, 1
  %vm2340 = vcmp.lt.s32.totalorder %v2320, 2
  %vm2341 = vcmp.lt.s32.totalorder %v2320, 3
  %vm2342 = vcmp.lt.s32.totalorder %v2320, 4
  %v2343 = vsel %vm2339, %v2323, %v2326
  %v2344 = vsel %vm2342, %v2332, 2102212464
  %v2345 = vsel %vm2341, %v2329, %v2344
  %v2346 = vsel %vm2340, %v2343, %v2345
  %v2347 = vsel %vm2339, %v2326, %v2329
  %v2348 = vsel %vm2342, %v2335, 920167782
  %v2349 = vsel %vm2341, %v2332, %v2348
  %v2350 = vsel %vm2340, %v2347, %v2349
  %v2351 = vsel %vm2339, %v2329, %v2332
  %v2352 = vsel %vm2342, %v2338, 1326507024
  %v2353 = vsel %vm2341, %v2335, %v2352
  %v2354 = vsel %vm2340, %v2351, %v2353
  %v2355 = vshll.u32 %v2315, 8
  %v2356 = vmul.u32.u64.compose %v2355, %v2354
  %v2357 = vextract.low.u32 %v2356
  %v2358 = vextract.high.u32 %v2356
  %v2359 = vmul.u32.u64.compose %v2355, %v2350
  %v2360 = vextract.low.u32 %v2359
  %v2361 = vextract.high.u32 %v2359
  %v2362 = vmul.u32 %v2355, %v2346
  %v2363 = vadd.s32 %v2358, %v2360
  %vm2364 = vc.u32 %v2358, %v2360
  %v2365 = vadd.s32 %v2361, 1
  %v2366 = vsel %vm2364, %v2365, %v2361
  %v2367 = vadd.s32 %v2362, %v2366
  %v2368 = vadd.s32 %v2367, 536870912
  %v2369 = vshrl.u32 %v2368, 30
  %v2370 = vshll.u32 %v2369, 30
  %v2371 = vsub.s32 %v2367, %v2370
  %vm2372 = vcmp.lt.s32.totalorder %v2371, 0
  %v2373 = vsub.s32 0, %v2371
  %v2374 = vsel %vm2372, %v2373, %v2371
  %v2375 = vclz %v2374
  %v2376 = vsub.s32 %v2375, 2
  %vm2377 = vcmp.gt.s32.totalorder 0, %v2376
  %v2378 = vsel %vm2377, 0, %v2376
  %v2379 = vsub.s32 32, %v2378
  %v2380 = vshll.u32 %v2371, %v2378
  %v2381 = vshrl.u32 %v2363, %v2379
  %v2382 = vor.u32 %v2380, %v2381
  %v2383 = vsub.s32 4294967266, %v2378
  %v2384 = vadd.s32 %v2383, 127
  %v2385 = vshll.u32 %v2384, 23
  %v2386 = vor.u32 4788187, %v2385
  %v2387 = vand.u32 2147483647, %v2386
  %v2389 = vcvt.s32.f32 %v2382
  %v2390 = vmul.f32 %v2389, %v2387
  %v2391 = vxor.u32 %v2390, 2147483648
  %v2392 = vsel %vm2309, %v2391, %v2390
  %v2393 = vsub.s32 4, %v2369
  %v2394 = vsel %vm2309, %v2393, %v2369
  %v2395 = vsel %vm2308, %v833, %v2392
  %v2396 = vsel %vm2308, 0, %v2394
  %v2397 = vcosq.f32.pop %v2395
  %v2398 = vsinq.f32.pop %v2395
  %vm2399 = vweird.f32 %v833
  %v2400 = vadd.s32 %v2396, 3
  %v2401 = vand.u32 %v2400, 3
  %vm2402 = vcmp.lt.s32.totalorder %v2401, 2
  %vm2403 = vcmp.eq.s32.totalorder %v2401, 0
  %v2404 = vxor.u32 %v2398, 2147483648
  %v2405 = vsel %vm2403, %v2397, %v2404
  %vm2406 = vcmp.eq.s32.totalorder %v2401, 2
  %v2407 = vxor.u32 %v2397, 2147483648
  %v2408 = vsel %vm2406, %v2407, %v2398
  %v2409 = vsel %vm2402, %v2405, %v2408
  %v2410 = vsel %vm2399, nan, %v2409
  %v2411 = vand.u32 2147483647, %v834
  %vm2412 = vcmp.le.f32.partialorder %v2411, 0.7853982
  %vm2413 = vcmp.lt.s32.totalorder %v834, 0
  %v2414 = vand.u32 %v834, 2139095040
  %v2415 = vshrl.u32 %v2414, 23
  %v2416 = vsub.s32 %v2415, 127
  %v2417 = vand.u32 2147483647, %v834
  %v2418 = vand.u32 %v2417, 8388607
  %v2419 = vor.u32 %v2418, 8388608
  %v2420 = vsub.s32 0, %v2419
  %v2421 = vadd.s32 %v2416, 1
  %vm2422 = vcmp.gt.s32.totalorder %v2421, 0
  %v2423 = vsel %vm2422, %v2421, 0
  %v2424 = vshrl.u32 %v2423, 5
  %v2425 = vand.u32 %v2423, 31
  %v2426 = vsub.s32 32, %v2425
  %v2427 = vshrl.u32 683565275, %v2426
  %v2428 = vshll.u32 683565275, %v2425
  %v2429 = vshrl.u32 2475754826, %v2426
  %v2430 = vor.u32 %v2428, %v2429
  %v2431 = vshll.u32 2475754826, %v2425
  %v2432 = vshrl.u32 2131351028, %v2426
  %v2433 = vor.u32 %v2431, %v2432
  %v2434 = vshll.u32 2131351028, %v2425
  %v2435 = vshrl.u32 2102212464, %v2426
  %v2436 = vor.u32 %v2434, %v2435
  %v2437 = vshll.u32 2102212464, %v2425
  %v2438 = vshrl.u32 920167782, %v2426
  %v2439 = vor.u32 %v2437, %v2438
  %v2440 = vshll.u32 920167782, %v2425
  %v2441 = vshrl.u32 1326507024, %v2426
  %v2442 = vor.u32 %v2440, %v2441
  %vm2443 = vcmp.lt.s32.totalorder %v2424, 1
  %vm2444 = vcmp.lt.s32.totalorder %v2424, 2
  %vm2445 = vcmp.lt.s32.totalorder %v2424, 3
  %vm2446 = vcmp.lt.s32.totalorder %v2424, 4
  %v2447 = vsel %vm2443, %v2427, %v2430
  %v2448 = vsel %vm2446, %v2436, 2102212464
  %v2449 = vsel %vm2445, %v2433, %v2448
  %v2450 = vsel %vm2444, %v2447, %v2449
  %v2451 = vsel %vm2443, %v2430, %v2433
  %v2452 = vsel %vm2446, %v2439, 920167782
  %v2453 = vsel %vm2445, %v2436, %v2452
  %v2454 = vsel %vm2444, %v2451, %v2453
  %v2455 = vsel %vm2443, %v2433, %v2436
  %v2456 = vsel %vm2446, %v2442, 1326507024
  %v2457 = vsel %vm2445, %v2439, %v2456
  %v2458 = vsel %vm2444, %v2455, %v2457
  %v2459 = vshll.u32 %v2419, 8
  %v2460 = vmul.u32.u64.compose %v2459, %v2458
  %v2461 = vextract.low.u32 %v2460
  %v2462 = vextract.high.u32 %v2460
  %v2463 = vmul.u32.u64.compose %v2459, %v2454
  %v2464 = vextract.low.u32 %v2463
  %v2465 = vextract.high.u32 %v2463
  %v2466 = vmul.u32 %v2459, %v2450
  %v2467 = vadd.s32 %v2462, %v2464
  %vm2468 = vc.u32 %v2462, %v2464
  %v2469 = vadd.s32 %v2465, 1
  %v2470 = vsel %vm2468, %v2469, %v2465
  %v2471 = vadd.s32 %v2466, %v2470
  %v2472 = vadd.s32 %v2471, 536870912
  %v2473 = vshrl.u32 %v2472, 30
  %v2474 = vshll.u32 %v2473, 30
  %v2475 = vsub.s32 %v2471, %v2474
  %vm2476 = vcmp.lt.s32.totalorder %v2475, 0
  %v2477 = vsub.s32 0, %v2475
  %v2478 = vsel %vm2476, %v2477, %v2475
  %v2479 = vclz %v2478
  %v2480 = vsub.s32 %v2479, 2
  %vm2481 = vcmp.gt.s32.totalorder 0, %v2480
  %v2482 = vsel %vm2481, 0, %v2480
  %v2483 = vsub.s32 32, %v2482
  %v2484 = vshll.u32 %v2475, %v2482
  %v2485 = vshrl.u32 %v2467, %v2483
  %v2486 = vor.u32 %v2484, %v2485
  %v2487 = vsub.s32 4294967266, %v2482
  %v2488 = vadd.s32 %v2487, 127
  %v2489 = vshll.u32 %v2488, 23
  %v2490 = vor.u32 4788187, %v2489
  %v2491 = vand.u32 2147483647, %v2490
  %v2493 = vcvt.s32.f32 %v2486
  %v2494 = vmul.f32 %v2493, %v2491
  %v2495 = vxor.u32 %v2494, 2147483648
  %v2496 = vsel %vm2413, %v2495, %v2494
  %v2497 = vsub.s32 4, %v2473
  %v2498 = vsel %vm2413, %v2497, %v2473
  %v2499 = vsel %vm2412, %v834, %v2496
  %v2500 = vsel %vm2412, 0, %v2498
  %v2501 = vcosq.f32.pop %v2499
  %v2502 = vsinq.f32.pop %v2499
  %vm2503 = vweird.f32 %v834
  %v2504 = vadd.s32 %v2500, 3
  %v2505 = vand.u32 %v2504, 3
  %vm2506 = vcmp.lt.s32.totalorder %v2505, 2
  %vm2507 = vcmp.eq.s32.totalorder %v2505, 0
  %v2508 = vxor.u32 %v2502, 2147483648
  %v2509 = vsel %vm2507, %v2501, %v2508
  %vm2510 = vcmp.eq.s32.totalorder %v2505, 2
  %v2511 = vxor.u32 %v2501, 2147483648
  %v2512 = vsel %vm2510, %v2511, %v2502
  %v2513 = vsel %vm2506, %v2509, %v2512
  %v2514 = vsel %vm2503, nan, %v2513
  %v2515 = vand.u32 2147483647, %v835
  %vm2516 = vcmp.le.f32.partialorder %v2515, 0.7853982
  %vm2517 = vcmp.lt.s32.totalorder %v835, 0
  %v2518 = vand.u32 %v835, 2139095040
  %v2519 = vshrl.u32 %v2518, 23
  %v2520 = vsub.s32 %v2519, 127
  %v2521 = vand.u32 2147483647, %v835
  %v2522 = vand.u32 %v2521, 8388607
  %v2523 = vor.u32 %v2522, 8388608
  %v2524 = vsub.s32 0, %v2523
  %v2525 = vadd.s32 %v2520, 1
  %vm2526 = vcmp.gt.s32.totalorder %v2525, 0
  %v2527 = vsel %vm2526, %v2525, 0
  %v2528 = vshrl.u32 %v2527, 5
  %v2529 = vand.u32 %v2527, 31
  %v2530 = vsub.s32 32, %v2529
  %v2531 = vshrl.u32 683565275, %v2530
  %v2532 = vshll.u32 683565275, %v2529
  %v2533 = vshrl.u32 2475754826, %v2530
  %v2534 = vor.u32 %v2532, %v2533
  %v2535 = vshll.u32 2475754826, %v2529
  %v2536 = vshrl.u32 2131351028, %v2530
  %v2537 = vor.u32 %v2535, %v2536
  %v2538 = vshll.u32 2131351028, %v2529
  %v2539 = vshrl.u32 2102212464, %v2530
  %v2540 = vor.u32 %v2538, %v2539
  %v2541 = vshll.u32 2102212464, %v2529
  %v2542 = vshrl.u32 920167782, %v2530
  %v2543 = vor.u32 %v2541, %v2542
  %v2544 = vshll.u32 920167782, %v2529
  %v2545 = vshrl.u32 1326507024, %v2530
  %v2546 = vor.u32 %v2544, %v2545
  %vm2547 = vcmp.lt.s32.totalorder %v2528, 1
  %vm2548 = vcmp.lt.s32.totalorder %v2528, 2
  %vm2549 = vcmp.lt.s32.totalorder %v2528, 3
  %vm2550 = vcmp.lt.s32.totalorder %v2528, 4
  %v2551 = vsel %vm2547, %v2531, %v2534
  %v2552 = vsel %vm2550, %v2540, 2102212464
  %v2553 = vsel %vm2549, %v2537, %v2552
  %v2554 = vsel %vm2548, %v2551, %v2553
  %v2555 = vsel %vm2547, %v2534, %v2537
  %v2556 = vsel %vm2550, %v2543, 920167782
  %v2557 = vsel %vm2549, %v2540, %v2556
  %v2558 = vsel %vm2548, %v2555, %v2557
  %v2559 = vsel %vm2547, %v2537, %v2540
  %v2560 = vsel %vm2550, %v2546, 1326507024
  %v2561 = vsel %vm2549, %v2543, %v2560
  %v2562 = vsel %vm2548, %v2559, %v2561
  %v2563 = vshll.u32 %v2523, 8
  %v2564 = vmul.u32.u64.compose %v2563, %v2562
  %v2565 = vextract.low.u32 %v2564
  %v2566 = vextract.high.u32 %v2564
  %v2567 = vmul.u32.u64.compose %v2563, %v2558
  %v2568 = vextract.low.u32 %v2567
  %v2569 = vextract.high.u32 %v2567
  %v2570 = vmul.u32 %v2563, %v2554
  %v2571 = vadd.s32 %v2566, %v2568
  %vm2572 = vc.u32 %v2566, %v2568
  %v2573 = vadd.s32 %v2569, 1
  %v2574 = vsel %vm2572, %v2573, %v2569
  %v2575 = vadd.s32 %v2570, %v2574
  %v2576 = vadd.s32 %v2575, 536870912
  %v2577 = vshrl.u32 %v2576, 30
  %v2578 = vshll.u32 %v2577, 30
  %v2579 = vsub.s32 %v2575, %v2578
  %vm2580 = vcmp.lt.s32.totalorder %v2579, 0
  %v2581 = vsub.s32 0, %v2579
  %v2582 = vsel %vm2580, %v2581, %v2579
  %v2583 = vclz %v2582
  %v2584 = vsub.s32 %v2583, 2
  %vm2585 = vcmp.gt.s32.totalorder 0, %v2584
  %v2586 = vsel %vm2585, 0, %v2584
  %v2587 = vsub.s32 32, %v2586
  %v2588 = vshll.u32 %v2579, %v2586
  %v2589 = vshrl.u32 %v2571, %v2587
  %v2590 = vor.u32 %v2588, %v2589
  %v2591 = vsub.s32 4294967266, %v2586
  %v2592 = vadd.s32 %v2591, 127
  %v2593 = vshll.u32 %v2592, 23
  %v2594 = vor.u32 4788187, %v2593
  %v2595 = vand.u32 2147483647, %v2594
  %v2597 = vcvt.s32.f32 %v2590
  %v2598 = vmul.f32 %v2597, %v2595
  %v2599 = vxor.u32 %v2598, 2147483648
  %v2600 = vsel %vm2517, %v2599, %v2598
  %v2601 = vsub.s32 4, %v2577
  %v2602 = vsel %vm2517, %v2601, %v2577
  %v2603 = vsel %vm2516, %v835, %v2600
  %v2604 = vsel %vm2516, 0, %v2602
  %v2605 = vcosq.f32.pop %v2603
  %v2606 = vsinq.f32.pop %v2603
  %vm2607 = vweird.f32 %v835
  %v2608 = vadd.s32 %v2604, 3
  %v2609 = vand.u32 %v2608, 3
  %vm2610 = vcmp.lt.s32.totalorder %v2609, 2
  %vm2611 = vcmp.eq.s32.totalorder %v2609, 0
  %v2612 = vxor.u32 %v2606, 2147483648
  %v2613 = vsel %vm2611, %v2605, %v2612
  %vm2614 = vcmp.eq.s32.totalorder %v2609, 2
  %v2615 = vxor.u32 %v2605, 2147483648
  %v2616 = vsel %vm2614, %v2615, %v2606
  %v2617 = vsel %vm2610, %v2613, %v2616
  %v2618 = vsel %vm2607, nan, %v2617
  %v2619 = vand.u32 2147483647, %v836
  %vm2620 = vcmp.le.f32.partialorder %v2619, 0.7853982
  %vm2621 = vcmp.lt.s32.totalorder %v836, 0
  %v2622 = vand.u32 %v836, 2139095040
  %v2623 = vshrl.u32 %v2622, 23
  %v2624 = vsub.s32 %v2623, 127
  %v2625 = vand.u32 2147483647, %v836
  %v2626 = vand.u32 %v2625, 8388607
  %v2627 = vor.u32 %v2626, 8388608
  %v2628 = vsub.s32 0, %v2627
  %v2629 = vadd.s32 %v2624, 1
  %vm2630 = vcmp.gt.s32.totalorder %v2629, 0
  %v2631 = vsel %vm2630, %v2629, 0
  %v2632 = vshrl.u32 %v2631, 5
  %v2633 = vand.u32 %v2631, 31
  %v2634 = vsub.s32 32, %v2633
  %v2635 = vshrl.u32 683565275, %v2634
  %v2636 = vshll.u32 683565275, %v2633
  %v2637 = vshrl.u32 2475754826, %v2634
  %v2638 = vor.u32 %v2636, %v2637
  %v2639 = vshll.u32 2475754826, %v2633
  %v2640 = vshrl.u32 2131351028, %v2634
  %v2641 = vor.u32 %v2639, %v2640
  %v2642 = vshll.u32 2131351028, %v2633
  %v2643 = vshrl.u32 2102212464, %v2634
  %v2644 = vor.u32 %v2642, %v2643
  %v2645 = vshll.u32 2102212464, %v2633
  %v2646 = vshrl.u32 920167782, %v2634
  %v2647 = vor.u32 %v2645, %v2646
  %v2648 = vshll.u32 920167782, %v2633
  %v2649 = vshrl.u32 1326507024, %v2634
  %v2650 = vor.u32 %v2648, %v2649
  %vm2651 = vcmp.lt.s32.totalorder %v2632, 1
  %vm2652 = vcmp.lt.s32.totalorder %v2632, 2
  %vm2653 = vcmp.lt.s32.totalorder %v2632, 3
  %vm2654 = vcmp.lt.s32.totalorder %v2632, 4
  %v2655 = vsel %vm2651, %v2635, %v2638
  %v2656 = vsel %vm2654, %v2644, 2102212464
  %v2657 = vsel %vm2653, %v2641, %v2656
  %v2658 = vsel %vm2652, %v2655, %v2657
  %v2659 = vsel %vm2651, %v2638, %v2641
  %v2660 = vsel %vm2654, %v2647, 920167782
  %v2661 = vsel %vm2653, %v2644, %v2660
  %v2662 = vsel %vm2652, %v2659, %v2661
  %v2663 = vsel %vm2651, %v2641, %v2644
  %v2664 = vsel %vm2654, %v2650, 1326507024
  %v2665 = vsel %vm2653, %v2647, %v2664
  %v2666 = vsel %vm2652, %v2663, %v2665
  %v2667 = vshll.u32 %v2627, 8
  %v2668 = vmul.u32.u64.compose %v2667, %v2666
  %v2669 = vextract.low.u32 %v2668
  %v2670 = vextract.high.u32 %v2668
  %v2671 = vmul.u32.u64.compose %v2667, %v2662
  %v2672 = vextract.low.u32 %v2671
  %v2673 = vextract.high.u32 %v2671
  %v2674 = vmul.u32 %v2667, %v2658
  %v2675 = vadd.s32 %v2670, %v2672
  %vm2676 = vc.u32 %v2670, %v2672
  %v2677 = vadd.s32 %v2673, 1
  %v2678 = vsel %vm2676, %v2677, %v2673
  %v2679 = vadd.s32 %v2674, %v2678
  %v2680 = vadd.s32 %v2679, 536870912
  %v2681 = vshrl.u32 %v2680, 30
  %v2682 = vshll.u32 %v2681, 30
  %v2683 = vsub.s32 %v2679, %v2682
  %vm2684 = vcmp.lt.s32.totalorder %v2683, 0
  %v2685 = vsub.s32 0, %v2683
  %v2686 = vsel %vm2684, %v2685, %v2683
  %v2687 = vclz %v2686
  %v2688 = vsub.s32 %v2687, 2
  %vm2689 = vcmp.gt.s32.totalorder 0, %v2688
  %v2690 = vsel %vm2689, 0, %v2688
  %v2691 = vsub.s32 32, %v2690
  %v2692 = vshll.u32 %v2683, %v2690
  %v2693 = vshrl.u32 %v2675, %v2691
  %v2694 = vor.u32 %v2692, %v2693
  %v2695 = vsub.s32 4294967266, %v2690
  %v2696 = vadd.s32 %v2695, 127
  %v2697 = vshll.u32 %v2696, 23
  %v2698 = vor.u32 4788187, %v2697
  %v2699 = vand.u32 2147483647, %v2698
  %v2701 = vcvt.s32.f32 %v2694
  %v2702 = vmul.f32 %v2701, %v2699
  %v2703 = vxor.u32 %v2702, 2147483648
  %v2704 = vsel %vm2621, %v2703, %v2702
  %v2705 = vsub.s32 4, %v2681
  %v2706 = vsel %vm2621, %v2705, %v2681
  %v2707 = vsel %vm2620, %v836, %v2704
  %v2708 = vsel %vm2620, 0, %v2706
  %v2709 = vcosq.f32.pop %v2707
  %v2710 = vsinq.f32.pop %v2707
  %vm2711 = vweird.f32 %v836
  %v2712 = vadd.s32 %v2708, 3
  %v2713 = vand.u32 %v2712, 3
  %vm2714 = vcmp.lt.s32.totalorder %v2713, 2
  %vm2715 = vcmp.eq.s32.totalorder %v2713, 0
  %v2716 = vxor.u32 %v2710, 2147483648
  %v2717 = vsel %vm2715, %v2709, %v2716
  %vm2718 = vcmp.eq.s32.totalorder %v2713, 2
  %v2719 = vxor.u32 %v2709, 2147483648
  %v2720 = vsel %vm2718, %v2719, %v2710
  %v2721 = vsel %vm2714, %v2717, %v2720
  %v2722 = vsel %vm2711, nan, %v2721
  %v2723 = vand.u32 2147483647, %v837
  %vm2724 = vcmp.le.f32.partialorder %v2723, 0.7853982
  %vm2725 = vcmp.lt.s32.totalorder %v837, 0
  %v2726 = vand.u32 %v837, 2139095040
  %v2727 = vshrl.u32 %v2726, 23
  %v2728 = vsub.s32 %v2727, 127
  %v2729 = vand.u32 2147483647, %v837
  %v2730 = vand.u32 %v2729, 8388607
  %v2731 = vor.u32 %v2730, 8388608
  %v2732 = vsub.s32 0, %v2731
  %v2733 = vadd.s32 %v2728, 1
  %vm2734 = vcmp.gt.s32.totalorder %v2733, 0
  %v2735 = vsel %vm2734, %v2733, 0
  %v2736 = vshrl.u32 %v2735, 5
  %v2737 = vand.u32 %v2735, 31
  %v2738 = vsub.s32 32, %v2737
  %v2739 = vshrl.u32 683565275, %v2738
  %v2740 = vshll.u32 683565275, %v2737
  %v2741 = vshrl.u32 2475754826, %v2738
  %v2742 = vor.u32 %v2740, %v2741
  %v2743 = vshll.u32 2475754826, %v2737
  %v2744 = vshrl.u32 2131351028, %v2738
  %v2745 = vor.u32 %v2743, %v2744
  %v2746 = vshll.u32 2131351028, %v2737
  %v2747 = vshrl.u32 2102212464, %v2738
  %v2748 = vor.u32 %v2746, %v2747
  %v2749 = vshll.u32 2102212464, %v2737
  %v2750 = vshrl.u32 920167782, %v2738
  %v2751 = vor.u32 %v2749, %v2750
  %v2752 = vshll.u32 920167782, %v2737
  %v2753 = vshrl.u32 1326507024, %v2738
  %v2754 = vor.u32 %v2752, %v2753
  %vm2755 = vcmp.lt.s32.totalorder %v2736, 1
  %vm2756 = vcmp.lt.s32.totalorder %v2736, 2
  %vm2757 = vcmp.lt.s32.totalorder %v2736, 3
  %vm2758 = vcmp.lt.s32.totalorder %v2736, 4
  %v2759 = vsel %vm2755, %v2739, %v2742
  %v2760 = vsel %vm2758, %v2748, 2102212464
  %v2761 = vsel %vm2757, %v2745, %v2760
  %v2762 = vsel %vm2756, %v2759, %v2761
  %v2763 = vsel %vm2755, %v2742, %v2745
  %v2764 = vsel %vm2758, %v2751, 920167782
  %v2765 = vsel %vm2757, %v2748, %v2764
  %v2766 = vsel %vm2756, %v2763, %v2765
  %v2767 = vsel %vm2755, %v2745, %v2748
  %v2768 = vsel %vm2758, %v2754, 1326507024
  %v2769 = vsel %vm2757, %v2751, %v2768
  %v2770 = vsel %vm2756, %v2767, %v2769
  %v2771 = vshll.u32 %v2731, 8
  %v2772 = vmul.u32.u64.compose %v2771, %v2770
  %v2773 = vextract.low.u32 %v2772
  %v2774 = vextract.high.u32 %v2772
  %v2775 = vmul.u32.u64.compose %v2771, %v2766
  %v2776 = vextract.low.u32 %v2775
  %v2777 = vextract.high.u32 %v2775
  %v2778 = vmul.u32 %v2771, %v2762
  %v2779 = vadd.s32 %v2774, %v2776
  %vm2780 = vc.u32 %v2774, %v2776
  %v2781 = vadd.s32 %v2777, 1
  %v2782 = vsel %vm2780, %v2781, %v2777
  %v2783 = vadd.s32 %v2778, %v2782
  %v2784 = vadd.s32 %v2783, 536870912
  %v2785 = vshrl.u32 %v2784, 30
  %v2786 = vshll.u32 %v2785, 30
  %v2787 = vsub.s32 %v2783, %v2786
  %vm2788 = vcmp.lt.s32.totalorder %v2787, 0
  %v2789 = vsub.s32 0, %v2787
  %v2790 = vsel %vm2788, %v2789, %v2787
  %v2791 = vclz %v2790
  %v2792 = vsub.s32 %v2791, 2
  %vm2793 = vcmp.gt.s32.totalorder 0, %v2792
  %v2794 = vsel %vm2793, 0, %v2792
  %v2795 = vsub.s32 32, %v2794
  %v2796 = vshll.u32 %v2787, %v2794
  %v2797 = vshrl.u32 %v2779, %v2795
  %v2798 = vor.u32 %v2796, %v2797
  %v2799 = vsub.s32 4294967266, %v2794
  %v2800 = vadd.s32 %v2799, 127
  %v2801 = vshll.u32 %v2800, 23
  %v2802 = vor.u32 4788187, %v2801
  %v2803 = vand.u32 2147483647, %v2802
  %v2805 = vcvt.s32.f32 %v2798
  %v2806 = vmul.f32 %v2805, %v2803
  %v2807 = vxor.u32 %v2806, 2147483648
  %v2808 = vsel %vm2725, %v2807, %v2806
  %v2809 = vsub.s32 4, %v2785
  %v2810 = vsel %vm2725, %v2809, %v2785
  %v2811 = vsel %vm2724, %v837, %v2808
  %v2812 = vsel %vm2724, 0, %v2810
  %v2813 = vcosq.f32.pop %v2811
  %v2814 = vsinq.f32.pop %v2811
  %vm2815 = vweird.f32 %v837
  %v2816 = vadd.s32 %v2812, 3
  %v2817 = vand.u32 %v2816, 3
  %vm2818 = vcmp.lt.s32.totalorder %v2817, 2
  %vm2819 = vcmp.eq.s32.totalorder %v2817, 0
  %v2820 = vxor.u32 %v2814, 2147483648
  %v2821 = vsel %vm2819, %v2813, %v2820
  %vm2822 = vcmp.eq.s32.totalorder %v2817, 2
  %v2823 = vxor.u32 %v2813, 2147483648
  %v2824 = vsel %vm2822, %v2823, %v2814
  %v2825 = vsel %vm2818, %v2821, %v2824
  %v2826 = vsel %vm2815, nan, %v2825
  %v2827 = vand.u32 2147483647, %v838
  %vm2828 = vcmp.le.f32.partialorder %v2827, 0.7853982
  %vm2829 = vcmp.lt.s32.totalorder %v838, 0
  %v2830 = vand.u32 %v838, 2139095040
  %v2831 = vshrl.u32 %v2830, 23
  %v2832 = vsub.s32 %v2831, 127
  %v2833 = vand.u32 2147483647, %v838
  %v2834 = vand.u32 %v2833, 8388607
  %v2835 = vor.u32 %v2834, 8388608
  %v2836 = vsub.s32 0, %v2835
  %v2837 = vadd.s32 %v2832, 1
  %vm2838 = vcmp.gt.s32.totalorder %v2837, 0
  %v2839 = vsel %vm2838, %v2837, 0
  %v2840 = vshrl.u32 %v2839, 5
  %v2841 = vand.u32 %v2839, 31
  %v2842 = vsub.s32 32, %v2841
  %v2843 = vshrl.u32 683565275, %v2842
  %v2844 = vshll.u32 683565275, %v2841
  %v2845 = vshrl.u32 2475754826, %v2842
  %v2846 = vor.u32 %v2844, %v2845
  %v2847 = vshll.u32 2475754826, %v2841
  %v2848 = vshrl.u32 2131351028, %v2842
  %v2849 = vor.u32 %v2847, %v2848
  %v2850 = vshll.u32 2131351028, %v2841
  %v2851 = vshrl.u32 2102212464, %v2842
  %v2852 = vor.u32 %v2850, %v2851
  %v2853 = vshll.u32 2102212464, %v2841
  %v2854 = vshrl.u32 920167782, %v2842
  %v2855 = vor.u32 %v2853, %v2854
  %v2856 = vshll.u32 920167782, %v2841
  %v2857 = vshrl.u32 1326507024, %v2842
  %v2858 = vor.u32 %v2856, %v2857
  %vm2859 = vcmp.lt.s32.totalorder %v2840, 1
  %vm2860 = vcmp.lt.s32.totalorder %v2840, 2
  %vm2861 = vcmp.lt.s32.totalorder %v2840, 3
  %vm2862 = vcmp.lt.s32.totalorder %v2840, 4
  %v2863 = vsel %vm2859, %v2843, %v2846
  %v2864 = vsel %vm2862, %v2852, 2102212464
  %v2865 = vsel %vm2861, %v2849, %v2864
  %v2866 = vsel %vm2860, %v2863, %v2865
  %v2867 = vsel %vm2859, %v2846, %v2849
  %v2868 = vsel %vm2862, %v2855, 920167782
  %v2869 = vsel %vm2861, %v2852, %v2868
  %v2870 = vsel %vm2860, %v2867, %v2869
  %v2871 = vsel %vm2859, %v2849, %v2852
  %v2872 = vsel %vm2862, %v2858, 1326507024
  %v2873 = vsel %vm2861, %v2855, %v2872
  %v2874 = vsel %vm2860, %v2871, %v2873
  %v2875 = vshll.u32 %v2835, 8
  %v2876 = vmul.u32.u64.compose %v2875, %v2874
  %v2877 = vextract.low.u32 %v2876
  %v2878 = vextract.high.u32 %v2876
  %v2879 = vmul.u32.u64.compose %v2875, %v2870
  %v2880 = vextract.low.u32 %v2879
  %v2881 = vextract.high.u32 %v2879
  %v2882 = vmul.u32 %v2875, %v2866
  %v2883 = vadd.s32 %v2878, %v2880
  %vm2884 = vc.u32 %v2878, %v2880
  %v2885 = vadd.s32 %v2881, 1
  %v2886 = vsel %vm2884, %v2885, %v2881
  %v2887 = vadd.s32 %v2882, %v2886
  %v2888 = vadd.s32 %v2887, 536870912
  %v2889 = vshrl.u32 %v2888, 30
  %v2890 = vshll.u32 %v2889, 30
  %v2891 = vsub.s32 %v2887, %v2890
  %vm2892 = vcmp.lt.s32.totalorder %v2891, 0
  %v2893 = vsub.s32 0, %v2891
  %v2894 = vsel %vm2892, %v2893, %v2891
  %v2895 = vclz %v2894
  %v2896 = vsub.s32 %v2895, 2
  %vm2897 = vcmp.gt.s32.totalorder 0, %v2896
  %v2898 = vsel %vm2897, 0, %v2896
  %v2899 = vsub.s32 32, %v2898
  %v2900 = vshll.u32 %v2891, %v2898
  %v2901 = vshrl.u32 %v2883, %v2899
  %v2902 = vor.u32 %v2900, %v2901
  %v2903 = vsub.s32 4294967266, %v2898
  %v2904 = vadd.s32 %v2903, 127
  %v2905 = vshll.u32 %v2904, 23
  %v2906 = vor.u32 4788187, %v2905
  %v2907 = vand.u32 2147483647, %v2906
  %v2909 = vcvt.s32.f32 %v2902
  %v2910 = vmul.f32 %v2909, %v2907
  %v2911 = vxor.u32 %v2910, 2147483648
  %v2912 = vsel %vm2829, %v2911, %v2910
  %v2913 = vsub.s32 4, %v2889
  %v2914 = vsel %vm2829, %v2913, %v2889
  %v2915 = vsel %vm2828, %v838, %v2912
  %v2916 = vsel %vm2828, 0, %v2914
  %v2917 = vcosq.f32.pop %v2915
  %v2918 = vsinq.f32.pop %v2915
  %vm2919 = vweird.f32 %v838
  %v2920 = vadd.s32 %v2916, 3
  %v2921 = vand.u32 %v2920, 3
  %vm2922 = vcmp.lt.s32.totalorder %v2921, 2
  %vm2923 = vcmp.eq.s32.totalorder %v2921, 0
  %v2924 = vxor.u32 %v2918, 2147483648
  %v2925 = vsel %vm2923, %v2917, %v2924
  %vm2926 = vcmp.eq.s32.totalorder %v2921, 2
  %v2927 = vxor.u32 %v2917, 2147483648
  %v2928 = vsel %vm2926, %v2927, %v2918
  %v2929 = vsel %vm2922, %v2925, %v2928
  %v2930 = vsel %vm2919, nan, %v2929
  %v2931 = vand.u32 2147483647, %v839
  %vm2932 = vcmp.le.f32.partialorder %v2931, 0.7853982
  %vm2933 = vcmp.lt.s32.totalorder %v839, 0
  %v2934 = vand.u32 %v839, 2139095040
  %v2935 = vshrl.u32 %v2934, 23
  %v2936 = vsub.s32 %v2935, 127
  %v2937 = vand.u32 2147483647, %v839
  %v2938 = vand.u32 %v2937, 8388607
  %v2939 = vor.u32 %v2938, 8388608
  %v2940 = vsub.s32 0, %v2939
  %v2941 = vadd.s32 %v2936, 1
  %vm2942 = vcmp.gt.s32.totalorder %v2941, 0
  %v2943 = vsel %vm2942, %v2941, 0
  %v2944 = vshrl.u32 %v2943, 5
  %v2945 = vand.u32 %v2943, 31
  %v2946 = vsub.s32 32, %v2945
  %v2947 = vshrl.u32 683565275, %v2946
  %v2948 = vshll.u32 683565275, %v2945
  %v2949 = vshrl.u32 2475754826, %v2946
  %v2950 = vor.u32 %v2948, %v2949
  %v2951 = vshll.u32 2475754826, %v2945
  %v2952 = vshrl.u32 2131351028, %v2946
  %v2953 = vor.u32 %v2951, %v2952
  %v2954 = vshll.u32 2131351028, %v2945
  %v2955 = vshrl.u32 2102212464, %v2946
  %v2956 = vor.u32 %v2954, %v2955
  %v2957 = vshll.u32 2102212464, %v2945
  %v2958 = vshrl.u32 920167782, %v2946
  %v2959 = vor.u32 %v2957, %v2958
  %v2960 = vshll.u32 920167782, %v2945
  %v2961 = vshrl.u32 1326507024, %v2946
  %v2962 = vor.u32 %v2960, %v2961
  %vm2963 = vcmp.lt.s32.totalorder %v2944, 1
  %vm2964 = vcmp.lt.s32.totalorder %v2944, 2
  %vm2965 = vcmp.lt.s32.totalorder %v2944, 3
  %vm2966 = vcmp.lt.s32.totalorder %v2944, 4
  %v2967 = vsel %vm2963, %v2947, %v2950
  %v2968 = vsel %vm2966, %v2956, 2102212464
  %v2969 = vsel %vm2965, %v2953, %v2968
  %v2970 = vsel %vm2964, %v2967, %v2969
  %v2971 = vsel %vm2963, %v2950, %v2953
  %v2972 = vsel %vm2966, %v2959, 920167782
  %v2973 = vsel %vm2965, %v2956, %v2972
  %v2974 = vsel %vm2964, %v2971, %v2973
  %v2975 = vsel %vm2963, %v2953, %v2956
  %v2976 = vsel %vm2966, %v2962, 1326507024
  %v2977 = vsel %vm2965, %v2959, %v2976
  %v2978 = vsel %vm2964, %v2975, %v2977
  %v2979 = vshll.u32 %v2939, 8
  %v2980 = vmul.u32.u64.compose %v2979, %v2978
  %v2981 = vextract.low.u32 %v2980
  %v2982 = vextract.high.u32 %v2980
  %v2983 = vmul.u32.u64.compose %v2979, %v2974
  %v2984 = vextract.low.u32 %v2983
  %v2985 = vextract.high.u32 %v2983
  %v2986 = vmul.u32 %v2979, %v2970
  %v2987 = vadd.s32 %v2982, %v2984
  %vm2988 = vc.u32 %v2982, %v2984
  %v2989 = vadd.s32 %v2985, 1
  %v2990 = vsel %vm2988, %v2989, %v2985
  %v2991 = vadd.s32 %v2986, %v2990
  %v2992 = vadd.s32 %v2991, 536870912
  %v2993 = vshrl.u32 %v2992, 30
  %v2994 = vshll.u32 %v2993, 30
  %v2995 = vsub.s32 %v2991, %v2994
  %vm2996 = vcmp.lt.s32.totalorder %v2995, 0
  %v2997 = vsub.s32 0, %v2995
  %v2998 = vsel %vm2996, %v2997, %v2995
  %v2999 = vclz %v2998
  %v3000 = vsub.s32 %v2999, 2
  %vm3001 = vcmp.gt.s32.totalorder 0, %v3000
  %v3002 = vsel %vm3001, 0, %v3000
  %v3003 = vsub.s32 32, %v3002
  %v3004 = vshll.u32 %v2995, %v3002
  %v3005 = vshrl.u32 %v2987, %v3003
  %v3006 = vor.u32 %v3004, %v3005
  %v3007 = vsub.s32 4294967266, %v3002
  %v3008 = vadd.s32 %v3007, 127
  %v3009 = vshll.u32 %v3008, 23
  %v3010 = vor.u32 4788187, %v3009
  %v3011 = vand.u32 2147483647, %v3010
  %v3013 = vcvt.s32.f32 %v3006
  %v3014 = vmul.f32 %v3013, %v3011
  %v3015 = vxor.u32 %v3014, 2147483648
  %v3016 = vsel %vm2933, %v3015, %v3014
  %v3017 = vsub.s32 4, %v2993
  %v3018 = vsel %vm2933, %v3017, %v2993
  %v3019 = vsel %vm2932, %v839, %v3016
  %v3020 = vsel %vm2932, 0, %v3018
  %v3021 = vcosq.f32.pop %v3019
  %v3022 = vsinq.f32.pop %v3019
  %vm3023 = vweird.f32 %v839
  %v3024 = vadd.s32 %v3020, 3
  %v3025 = vand.u32 %v3024, 3
  %vm3026 = vcmp.lt.s32.totalorder %v3025, 2
  %vm3027 = vcmp.eq.s32.totalorder %v3025, 0
  %v3028 = vxor.u32 %v3022, 2147483648
  %v3029 = vsel %vm3027, %v3021, %v3028
  %vm3030 = vcmp.eq.s32.totalorder %v3025, 2
  %v3031 = vxor.u32 %v3021, 2147483648
  %v3032 = vsel %vm3030, %v3031, %v3022
  %v3033 = vsel %vm3026, %v3029, %v3032
  %v3034 = vsel %vm3023, nan, %v3033
  %v3035 = vand.u32 2147483647, %v840
  %vm3036 = vcmp.le.f32.partialorder %v3035, 0.7853982
  %vm3037 = vcmp.lt.s32.totalorder %v840, 0
  %v3038 = vand.u32 %v840, 2139095040
  %v3039 = vshrl.u32 %v3038, 23
  %v3040 = vsub.s32 %v3039, 127
  %v3041 = vand.u32 2147483647, %v840
  %v3042 = vand.u32 %v3041, 8388607
  %v3043 = vor.u32 %v3042, 8388608
  %v3044 = vsub.s32 0, %v3043
  %v3045 = vadd.s32 %v3040, 1
  %vm3046 = vcmp.gt.s32.totalorder %v3045, 0
  %v3047 = vsel %vm3046, %v3045, 0
  %v3048 = vshrl.u32 %v3047, 5
  %v3049 = vand.u32 %v3047, 31
  %v3050 = vsub.s32 32, %v3049
  %v3051 = vshrl.u32 683565275, %v3050
  %v3052 = vshll.u32 683565275, %v3049
  %v3053 = vshrl.u32 2475754826, %v3050
  %v3054 = vor.u32 %v3052, %v3053
  %v3055 = vshll.u32 2475754826, %v3049
  %v3056 = vshrl.u32 2131351028, %v3050
  %v3057 = vor.u32 %v3055, %v3056
  %v3058 = vshll.u32 2131351028, %v3049
  %v3059 = vshrl.u32 2102212464, %v3050
  %v3060 = vor.u32 %v3058, %v3059
  %v3061 = vshll.u32 2102212464, %v3049
  %v3062 = vshrl.u32 920167782, %v3050
  %v3063 = vor.u32 %v3061, %v3062
  %v3064 = vshll.u32 920167782, %v3049
  %v3065 = vshrl.u32 1326507024, %v3050
  %v3066 = vor.u32 %v3064, %v3065
  %vm3067 = vcmp.lt.s32.totalorder %v3048, 1
  %vm3068 = vcmp.lt.s32.totalorder %v3048, 2
  %vm3069 = vcmp.lt.s32.totalorder %v3048, 3
  %vm3070 = vcmp.lt.s32.totalorder %v3048, 4
  %v3071 = vsel %vm3067, %v3051, %v3054
  %v3072 = vsel %vm3070, %v3060, 2102212464
  %v3073 = vsel %vm3069, %v3057, %v3072
  %v3074 = vsel %vm3068, %v3071, %v3073
  %v3075 = vsel %vm3067, %v3054, %v3057
  %v3076 = vsel %vm3070, %v3063, 920167782
  %v3077 = vsel %vm3069, %v3060, %v3076
  %v3078 = vsel %vm3068, %v3075, %v3077
  %v3079 = vsel %vm3067, %v3057, %v3060
  %v3080 = vsel %vm3070, %v3066, 1326507024
  %v3081 = vsel %vm3069, %v3063, %v3080
  %v3082 = vsel %vm3068, %v3079, %v3081
  %v3083 = vshll.u32 %v3043, 8
  %v3084 = vmul.u32.u64.compose %v3083, %v3082
  %v3085 = vextract.low.u32 %v3084
  %v3086 = vextract.high.u32 %v3084
  %v3087 = vmul.u32.u64.compose %v3083, %v3078
  %v3088 = vextract.low.u32 %v3087
  %v3089 = vextract.high.u32 %v3087
  %v3090 = vmul.u32 %v3083, %v3074
  %v3091 = vadd.s32 %v3086, %v3088
  %vm3092 = vc.u32 %v3086, %v3088
  %v3093 = vadd.s32 %v3089, 1
  %v3094 = vsel %vm3092, %v3093, %v3089
  %v3095 = vadd.s32 %v3090, %v3094
  %v3096 = vadd.s32 %v3095, 536870912
  %v3097 = vshrl.u32 %v3096, 30
  %v3098 = vshll.u32 %v3097, 30
  %v3099 = vsub.s32 %v3095, %v3098
  %vm3100 = vcmp.lt.s32.totalorder %v3099, 0
  %v3101 = vsub.s32 0, %v3099
  %v3102 = vsel %vm3100, %v3101, %v3099
  %v3103 = vclz %v3102
  %v3104 = vsub.s32 %v3103, 2
  %vm3105 = vcmp.gt.s32.totalorder 0, %v3104
  %v3106 = vsel %vm3105, 0, %v3104
  %v3107 = vsub.s32 32, %v3106
  %v3108 = vshll.u32 %v3099, %v3106
  %v3109 = vshrl.u32 %v3091, %v3107
  %v3110 = vor.u32 %v3108, %v3109
  %v3111 = vsub.s32 4294967266, %v3106
  %v3112 = vadd.s32 %v3111, 127
  %v3113 = vshll.u32 %v3112, 23
  %v3114 = vor.u32 4788187, %v3113
  %v3115 = vand.u32 2147483647, %v3114
  %v3117 = vcvt.s32.f32 %v3110
  %v3118 = vmul.f32 %v3117, %v3115
  %v3119 = vxor.u32 %v3118, 2147483648
  %v3120 = vsel %vm3037, %v3119, %v3118
  %v3121 = vsub.s32 4, %v3097
  %v3122 = vsel %vm3037, %v3121, %v3097
  %v3123 = vsel %vm3036, %v840, %v3120
  %v3124 = vsel %vm3036, 0, %v3122
  %v3125 = vcosq.f32.pop %v3123
  %v3126 = vsinq.f32.pop %v3123
  %vm3127 = vweird.f32 %v840
  %v3128 = vadd.s32 %v3124, 3
  %v3129 = vand.u32 %v3128, 3
  %vm3130 = vcmp.lt.s32.totalorder %v3129, 2
  %vm3131 = vcmp.eq.s32.totalorder %v3129, 0
  %v3132 = vxor.u32 %v3126, 2147483648
  %v3133 = vsel %vm3131, %v3125, %v3132
  %vm3134 = vcmp.eq.s32.totalorder %v3129, 2
  %v3135 = vxor.u32 %v3125, 2147483648
  %v3136 = vsel %vm3134, %v3135, %v3126
  %v3137 = vsel %vm3130, %v3133, %v3136
  %v3138 = vsel %vm3127, nan, %v3137
  %v3139 = vand.u32 2147483647, %v841
  %vm3140 = vcmp.le.f32.partialorder %v3139, 0.7853982
  %vm3141 = vcmp.lt.s32.totalorder %v841, 0
  %v3142 = vand.u32 %v841, 2139095040
  %v3143 = vshrl.u32 %v3142, 23
  %v3144 = vsub.s32 %v3143, 127
  %v3145 = vand.u32 2147483647, %v841
  %v3146 = vand.u32 %v3145, 8388607
  %v3147 = vor.u32 %v3146, 8388608
  %v3148 = vsub.s32 0, %v3147
  %v3149 = vadd.s32 %v3144, 1
  %vm3150 = vcmp.gt.s32.totalorder %v3149, 0
  %v3151 = vsel %vm3150, %v3149, 0
  %v3152 = vshrl.u32 %v3151, 5
  %v3153 = vand.u32 %v3151, 31
  %v3154 = vsub.s32 32, %v3153
  %v3155 = vshrl.u32 683565275, %v3154
  %v3156 = vshll.u32 683565275, %v3153
  %v3157 = vshrl.u32 2475754826, %v3154
  %v3158 = vor.u32 %v3156, %v3157
  %v3159 = vshll.u32 2475754826, %v3153
  %v3160 = vshrl.u32 2131351028, %v3154
  %v3161 = vor.u32 %v3159, %v3160
  %v3162 = vshll.u32 2131351028, %v3153
  %v3163 = vshrl.u32 2102212464, %v3154
  %v3164 = vor.u32 %v3162, %v3163
  %v3165 = vshll.u32 2102212464, %v3153
  %v3166 = vshrl.u32 920167782, %v3154
  %v3167 = vor.u32 %v3165, %v3166
  %v3168 = vshll.u32 920167782, %v3153
  %v3169 = vshrl.u32 1326507024, %v3154
  %v3170 = vor.u32 %v3168, %v3169
  %vm3171 = vcmp.lt.s32.totalorder %v3152, 1
  %vm3172 = vcmp.lt.s32.totalorder %v3152, 2
  %vm3173 = vcmp.lt.s32.totalorder %v3152, 3
  %vm3174 = vcmp.lt.s32.totalorder %v3152, 4
  %v3175 = vsel %vm3171, %v3155, %v3158
  %v3176 = vsel %vm3174, %v3164, 2102212464
  %v3177 = vsel %vm3173, %v3161, %v3176
  %v3178 = vsel %vm3172, %v3175, %v3177
  %v3179 = vsel %vm3171, %v3158, %v3161
  %v3180 = vsel %vm3174, %v3167, 920167782
  %v3181 = vsel %vm3173, %v3164, %v3180
  %v3182 = vsel %vm3172, %v3179, %v3181
  %v3183 = vsel %vm3171, %v3161, %v3164
  %v3184 = vsel %vm3174, %v3170, 1326507024
  %v3185 = vsel %vm3173, %v3167, %v3184
  %v3186 = vsel %vm3172, %v3183, %v3185
  %v3187 = vshll.u32 %v3147, 8
  %v3188 = vmul.u32.u64.compose %v3187, %v3186
  %v3189 = vextract.low.u32 %v3188
  %v3190 = vextract.high.u32 %v3188
  %v3191 = vmul.u32.u64.compose %v3187, %v3182
  %v3192 = vextract.low.u32 %v3191
  %v3193 = vextract.high.u32 %v3191
  %v3194 = vmul.u32 %v3187, %v3178
  %v3195 = vadd.s32 %v3190, %v3192
  %vm3196 = vc.u32 %v3190, %v3192
  %v3197 = vadd.s32 %v3193, 1
  %v3198 = vsel %vm3196, %v3197, %v3193
  %v3199 = vadd.s32 %v3194, %v3198
  %v3200 = vadd.s32 %v3199, 536870912
  %v3201 = vshrl.u32 %v3200, 30
  %v3202 = vshll.u32 %v3201, 30
  %v3203 = vsub.s32 %v3199, %v3202
  %vm3204 = vcmp.lt.s32.totalorder %v3203, 0
  %v3205 = vsub.s32 0, %v3203
  %v3206 = vsel %vm3204, %v3205, %v3203
  %v3207 = vclz %v3206
  %v3208 = vsub.s32 %v3207, 2
  %vm3209 = vcmp.gt.s32.totalorder 0, %v3208
  %v3210 = vsel %vm3209, 0, %v3208
  %v3211 = vsub.s32 32, %v3210
  %v3212 = vshll.u32 %v3203, %v3210
  %v3213 = vshrl.u32 %v3195, %v3211
  %v3214 = vor.u32 %v3212, %v3213
  %v3215 = vsub.s32 4294967266, %v3210
  %v3216 = vadd.s32 %v3215, 127
  %v3217 = vshll.u32 %v3216, 23
  %v3218 = vor.u32 4788187, %v3217
  %v3219 = vand.u32 2147483647, %v3218
  %v3221 = vcvt.s32.f32 %v3214
  %v3222 = vmul.f32 %v3221, %v3219
  %v3223 = vxor.u32 %v3222, 2147483648
  %v3224 = vsel %vm3141, %v3223, %v3222
  %v3225 = vsub.s32 4, %v3201
  %v3226 = vsel %vm3141, %v3225, %v3201
  %v3227 = vsel %vm3140, %v841, %v3224
  %v3228 = vsel %vm3140, 0, %v3226
  %v3229 = vcosq.f32.pop %v3227
  %v3230 = vsinq.f32.pop %v3227
  %vm3231 = vweird.f32 %v841
  %v3232 = vadd.s32 %v3228, 3
  %v3233 = vand.u32 %v3232, 3
  %vm3234 = vcmp.lt.s32.totalorder %v3233, 2
  %vm3235 = vcmp.eq.s32.totalorder %v3233, 0
  %v3236 = vxor.u32 %v3230, 2147483648
  %v3237 = vsel %vm3235, %v3229, %v3236
  %vm3238 = vcmp.eq.s32.totalorder %v3233, 2
  %v3239 = vxor.u32 %v3229, 2147483648
  %v3240 = vsel %vm3238, %v3239, %v3230
  %v3241 = vsel %vm3234, %v3237, %v3240
  %v3242 = vsel %vm3231, nan, %v3241
  %v3243 = vand.u32 2147483647, %v842
  %vm3244 = vcmp.le.f32.partialorder %v3243, 0.7853982
  %vm3245 = vcmp.lt.s32.totalorder %v842, 0
  %v3246 = vand.u32 %v842, 2139095040
  %v3247 = vshrl.u32 %v3246, 23
  %v3248 = vsub.s32 %v3247, 127
  %v3249 = vand.u32 2147483647, %v842
  %v3250 = vand.u32 %v3249, 8388607
  %v3251 = vor.u32 %v3250, 8388608
  %v3252 = vsub.s32 0, %v3251
  %v3253 = vadd.s32 %v3248, 1
  %vm3254 = vcmp.gt.s32.totalorder %v3253, 0
  %v3255 = vsel %vm3254, %v3253, 0
  %v3256 = vshrl.u32 %v3255, 5
  %v3257 = vand.u32 %v3255, 31
  %v3258 = vsub.s32 32, %v3257
  %v3259 = vshrl.u32 683565275, %v3258
  %v3260 = vshll.u32 683565275, %v3257
  %v3261 = vshrl.u32 2475754826, %v3258
  %v3262 = vor.u32 %v3260, %v3261
  %v3263 = vshll.u32 2475754826, %v3257
  %v3264 = vshrl.u32 2131351028, %v3258
  %v3265 = vor.u32 %v3263, %v3264
  %v3266 = vshll.u32 2131351028, %v3257
  %v3267 = vshrl.u32 2102212464, %v3258
  %v3268 = vor.u32 %v3266, %v3267
  %v3269 = vshll.u32 2102212464, %v3257
  %v3270 = vshrl.u32 920167782, %v3258
  %v3271 = vor.u32 %v3269, %v3270
  %v3272 = vshll.u32 920167782, %v3257
  %v3273 = vshrl.u32 1326507024, %v3258
  %v3274 = vor.u32 %v3272, %v3273
  %vm3275 = vcmp.lt.s32.totalorder %v3256, 1
  %vm3276 = vcmp.lt.s32.totalorder %v3256, 2
  %vm3277 = vcmp.lt.s32.totalorder %v3256, 3
  %vm3278 = vcmp.lt.s32.totalorder %v3256, 4
  %v3279 = vsel %vm3275, %v3259, %v3262
  %v3280 = vsel %vm3278, %v3268, 2102212464
  %v3281 = vsel %vm3277, %v3265, %v3280
  %v3282 = vsel %vm3276, %v3279, %v3281
  %v3283 = vsel %vm3275, %v3262, %v3265
  %v3284 = vsel %vm3278, %v3271, 920167782
  %v3285 = vsel %vm3277, %v3268, %v3284
  %v3286 = vsel %vm3276, %v3283, %v3285
  %v3287 = vsel %vm3275, %v3265, %v3268
  %v3288 = vsel %vm3278, %v3274, 1326507024
  %v3289 = vsel %vm3277, %v3271, %v3288
  %v3290 = vsel %vm3276, %v3287, %v3289
  %v3291 = vshll.u32 %v3251, 8
  %v3292 = vmul.u32.u64.compose %v3291, %v3290
  %v3293 = vextract.low.u32 %v3292
  %v3294 = vextract.high.u32 %v3292
  %v3295 = vmul.u32.u64.compose %v3291, %v3286
  %v3296 = vextract.low.u32 %v3295
  %v3297 = vextract.high.u32 %v3295
  %v3298 = vmul.u32 %v3291, %v3282
  %v3299 = vadd.s32 %v3294, %v3296
  %vm3300 = vc.u32 %v3294, %v3296
  %v3301 = vadd.s32 %v3297, 1
  %v3302 = vsel %vm3300, %v3301, %v3297
  %v3303 = vadd.s32 %v3298, %v3302
  %v3304 = vadd.s32 %v3303, 536870912
  %v3305 = vshrl.u32 %v3304, 30
  %v3306 = vshll.u32 %v3305, 30
  %v3307 = vsub.s32 %v3303, %v3306
  %vm3308 = vcmp.lt.s32.totalorder %v3307, 0
  %v3309 = vsub.s32 0, %v3307
  %v3310 = vsel %vm3308, %v3309, %v3307
  %v3311 = vclz %v3310
  %v3312 = vsub.s32 %v3311, 2
  %vm3313 = vcmp.gt.s32.totalorder 0, %v3312
  %v3314 = vsel %vm3313, 0, %v3312
  %v3315 = vsub.s32 32, %v3314
  %v3316 = vshll.u32 %v3307, %v3314
  %v3317 = vshrl.u32 %v3299, %v3315
  %v3318 = vor.u32 %v3316, %v3317
  %v3319 = vsub.s32 4294967266, %v3314
  %v3320 = vadd.s32 %v3319, 127
  %v3321 = vshll.u32 %v3320, 23
  %v3322 = vor.u32 4788187, %v3321
  %v3323 = vand.u32 2147483647, %v3322
  %v3325 = vcvt.s32.f32 %v3318
  %v3326 = vmul.f32 %v3325, %v3323
  %v3327 = vxor.u32 %v3326, 2147483648
  %v3328 = vsel %vm3245, %v3327, %v3326
  %v3329 = vsub.s32 4, %v3305
  %v3330 = vsel %vm3245, %v3329, %v3305
  %v3331 = vsel %vm3244, %v842, %v3328
  %v3332 = vsel %vm3244, 0, %v3330
  %v3333 = vcosq.f32.pop %v3331
  %v3334 = vsinq.f32.pop %v3331
  %vm3335 = vweird.f32 %v842
  %v3336 = vadd.s32 %v3332, 3
  %v3337 = vand.u32 %v3336, 3
  %vm3338 = vcmp.lt.s32.totalorder %v3337, 2
  %vm3339 = vcmp.eq.s32.totalorder %v3337, 0
  %v3340 = vxor.u32 %v3334, 2147483648
  %v3341 = vsel %vm3339, %v3333, %v3340
  %vm3342 = vcmp.eq.s32.totalorder %v3337, 2
  %v3343 = vxor.u32 %v3333, 2147483648
  %v3344 = vsel %vm3342, %v3343, %v3334
  %v3345 = vsel %vm3338, %v3341, %v3344
  %v3346 = vsel %vm3335, nan, %v3345
  %v3347 = vand.u32 2147483647, %v843
  %vm3348 = vcmp.le.f32.partialorder %v3347, 0.7853982
  %vm3349 = vcmp.lt.s32.totalorder %v843, 0
  %v3350 = vand.u32 %v843, 2139095040
  %v3351 = vshrl.u32 %v3350, 23
  %v3352 = vsub.s32 %v3351, 127
  %v3353 = vand.u32 2147483647, %v843
  %v3354 = vand.u32 %v3353, 8388607
  %v3355 = vor.u32 %v3354, 8388608
  %v3356 = vsub.s32 0, %v3355
  %v3357 = vadd.s32 %v3352, 1
  %vm3358 = vcmp.gt.s32.totalorder %v3357, 0
  %v3359 = vsel %vm3358, %v3357, 0
  %v3360 = vshrl.u32 %v3359, 5
  %v3361 = vand.u32 %v3359, 31
  %v3362 = vsub.s32 32, %v3361
  %v3363 = vshrl.u32 683565275, %v3362
  %v3364 = vshll.u32 683565275, %v3361
  %v3365 = vshrl.u32 2475754826, %v3362
  %v3366 = vor.u32 %v3364, %v3365
  %v3367 = vshll.u32 2475754826, %v3361
  %v3368 = vshrl.u32 2131351028, %v3362
  %v3369 = vor.u32 %v3367, %v3368
  %v3370 = vshll.u32 2131351028, %v3361
  %v3371 = vshrl.u32 2102212464, %v3362
  %v3372 = vor.u32 %v3370, %v3371
  %v3373 = vshll.u32 2102212464, %v3361
  %v3374 = vshrl.u32 920167782, %v3362
  %v3375 = vor.u32 %v3373, %v3374
  %v3376 = vshll.u32 920167782, %v3361
  %v3377 = vshrl.u32 1326507024, %v3362
  %v3378 = vor.u32 %v3376, %v3377
  %vm3379 = vcmp.lt.s32.totalorder %v3360, 1
  %vm3380 = vcmp.lt.s32.totalorder %v3360, 2
  %vm3381 = vcmp.lt.s32.totalorder %v3360, 3
  %vm3382 = vcmp.lt.s32.totalorder %v3360, 4
  %v3383 = vsel %vm3379, %v3363, %v3366
  %v3384 = vsel %vm3382, %v3372, 2102212464
  %v3385 = vsel %vm3381, %v3369, %v3384
  %v3386 = vsel %vm3380, %v3383, %v3385
  %v3387 = vsel %vm3379, %v3366, %v3369
  %v3388 = vsel %vm3382, %v3375, 920167782
  %v3389 = vsel %vm3381, %v3372, %v3388
  %v3390 = vsel %vm3380, %v3387, %v3389
  %v3391 = vsel %vm3379, %v3369, %v3372
  %v3392 = vsel %vm3382, %v3378, 1326507024
  %v3393 = vsel %vm3381, %v3375, %v3392
  %v3394 = vsel %vm3380, %v3391, %v3393
  %v3395 = vshll.u32 %v3355, 8
  %v3396 = vmul.u32.u64.compose %v3395, %v3394
  %v3397 = vextract.low.u32 %v3396
  %v3398 = vextract.high.u32 %v3396
  %v3399 = vmul.u32.u64.compose %v3395, %v3390
  %v3400 = vextract.low.u32 %v3399
  %v3401 = vextract.high.u32 %v3399
  %v3402 = vmul.u32 %v3395, %v3386
  %v3403 = vadd.s32 %v3398, %v3400
  %vm3404 = vc.u32 %v3398, %v3400
  %v3405 = vadd.s32 %v3401, 1
  %v3406 = vsel %vm3404, %v3405, %v3401
  %v3407 = vadd.s32 %v3402, %v3406
  %v3408 = vadd.s32 %v3407, 536870912
  %v3409 = vshrl.u32 %v3408, 30
  %v3410 = vshll.u32 %v3409, 30
  %v3411 = vsub.s32 %v3407, %v3410
  %vm3412 = vcmp.lt.s32.totalorder %v3411, 0
  %v3413 = vsub.s32 0, %v3411
  %v3414 = vsel %vm3412, %v3413, %v3411
  %v3415 = vclz %v3414
  %v3416 = vsub.s32 %v3415, 2
  %vm3417 = vcmp.gt.s32.totalorder 0, %v3416
  %v3418 = vsel %vm3417, 0, %v3416
  %v3419 = vsub.s32 32, %v3418
  %v3420 = vshll.u32 %v3411, %v3418
  %v3421 = vshrl.u32 %v3403, %v3419
  %v3422 = vor.u32 %v3420, %v3421
  %v3423 = vsub.s32 4294967266, %v3418
  %v3424 = vadd.s32 %v3423, 127
  %v3425 = vshll.u32 %v3424, 23
  %v3426 = vor.u32 4788187, %v3425
  %v3427 = vand.u32 2147483647, %v3426
  %v3429 = vcvt.s32.f32 %v3422
  %v3430 = vmul.f32 %v3429, %v3427
  %v3431 = vxor.u32 %v3430, 2147483648
  %v3432 = vsel %vm3349, %v3431, %v3430
  %v3433 = vsub.s32 4, %v3409
  %v3434 = vsel %vm3349, %v3433, %v3409
  %v3435 = vsel %vm3348, %v843, %v3432
  %v3436 = vsel %vm3348, 0, %v3434
  %v3437 = vcosq.f32.pop %v3435
  %v3438 = vsinq.f32.pop %v3435
  %vm3439 = vweird.f32 %v843
  %v3440 = vadd.s32 %v3436, 3
  %v3441 = vand.u32 %v3440, 3
  %vm3442 = vcmp.lt.s32.totalorder %v3441, 2
  %vm3443 = vcmp.eq.s32.totalorder %v3441, 0
  %v3444 = vxor.u32 %v3438, 2147483648
  %v3445 = vsel %vm3443, %v3437, %v3444
  %vm3446 = vcmp.eq.s32.totalorder %v3441, 2
  %v3447 = vxor.u32 %v3437, 2147483648
  %v3448 = vsel %vm3446, %v3447, %v3438
  %v3449 = vsel %vm3442, %v3445, %v3448
  %v3450 = vsel %vm3439, nan, %v3449
  %v3451 = vand.u32 2147483647, %v844
  %vm3452 = vcmp.le.f32.partialorder %v3451, 0.7853982
  %vm3453 = vcmp.lt.s32.totalorder %v844, 0
  %v3454 = vand.u32 %v844, 2139095040
  %v3455 = vshrl.u32 %v3454, 23
  %v3456 = vsub.s32 %v3455, 127
  %v3457 = vand.u32 2147483647, %v844
  %v3458 = vand.u32 %v3457, 8388607
  %v3459 = vor.u32 %v3458, 8388608
  %v3460 = vsub.s32 0, %v3459
  %v3461 = vadd.s32 %v3456, 1
  %vm3462 = vcmp.gt.s32.totalorder %v3461, 0
  %v3463 = vsel %vm3462, %v3461, 0
  %v3464 = vshrl.u32 %v3463, 5
  %v3465 = vand.u32 %v3463, 31
  %v3466 = vsub.s32 32, %v3465
  %v3467 = vshrl.u32 683565275, %v3466
  %v3468 = vshll.u32 683565275, %v3465
  %v3469 = vshrl.u32 2475754826, %v3466
  %v3470 = vor.u32 %v3468, %v3469
  %v3471 = vshll.u32 2475754826, %v3465
  %v3472 = vshrl.u32 2131351028, %v3466
  %v3473 = vor.u32 %v3471, %v3472
  %v3474 = vshll.u32 2131351028, %v3465
  %v3475 = vshrl.u32 2102212464, %v3466
  %v3476 = vor.u32 %v3474, %v3475
  %v3477 = vshll.u32 2102212464, %v3465
  %v3478 = vshrl.u32 920167782, %v3466
  %v3479 = vor.u32 %v3477, %v3478
  %v3480 = vshll.u32 920167782, %v3465
  %v3481 = vshrl.u32 1326507024, %v3466
  %v3482 = vor.u32 %v3480, %v3481
  %vm3483 = vcmp.lt.s32.totalorder %v3464, 1
  %vm3484 = vcmp.lt.s32.totalorder %v3464, 2
  %vm3485 = vcmp.lt.s32.totalorder %v3464, 3
  %vm3486 = vcmp.lt.s32.totalorder %v3464, 4
  %v3487 = vsel %vm3483, %v3467, %v3470
  %v3488 = vsel %vm3486, %v3476, 2102212464
  %v3489 = vsel %vm3485, %v3473, %v3488
  %v3490 = vsel %vm3484, %v3487, %v3489
  %v3491 = vsel %vm3483, %v3470, %v3473
  %v3492 = vsel %vm3486, %v3479, 920167782
  %v3493 = vsel %vm3485, %v3476, %v3492
  %v3494 = vsel %vm3484, %v3491, %v3493
  %v3495 = vsel %vm3483, %v3473, %v3476
  %v3496 = vsel %vm3486, %v3482, 1326507024
  %v3497 = vsel %vm3485, %v3479, %v3496
  %v3498 = vsel %vm3484, %v3495, %v3497
  %v3499 = vshll.u32 %v3459, 8
  %v3500 = vmul.u32.u64.compose %v3499, %v3498
  %v3501 = vextract.low.u32 %v3500
  %v3502 = vextract.high.u32 %v3500
  %v3503 = vmul.u32.u64.compose %v3499, %v3494
  %v3504 = vextract.low.u32 %v3503
  %v3505 = vextract.high.u32 %v3503
  %v3506 = vmul.u32 %v3499, %v3490
  %v3507 = vadd.s32 %v3502, %v3504
  %vm3508 = vc.u32 %v3502, %v3504
  %v3509 = vadd.s32 %v3505, 1
  %v3510 = vsel %vm3508, %v3509, %v3505
  %v3511 = vadd.s32 %v3506, %v3510
  %v3512 = vadd.s32 %v3511, 536870912
  %v3513 = vshrl.u32 %v3512, 30
  %v3514 = vshll.u32 %v3513, 30
  %v3515 = vsub.s32 %v3511, %v3514
  %vm3516 = vcmp.lt.s32.totalorder %v3515, 0
  %v3517 = vsub.s32 0, %v3515
  %v3518 = vsel %vm3516, %v3517, %v3515
  %v3519 = vclz %v3518
  %v3520 = vsub.s32 %v3519, 2
  %vm3521 = vcmp.gt.s32.totalorder 0, %v3520
  %v3522 = vsel %vm3521, 0, %v3520
  %v3523 = vsub.s32 32, %v3522
  %v3524 = vshll.u32 %v3515, %v3522
  %v3525 = vshrl.u32 %v3507, %v3523
  %v3526 = vor.u32 %v3524, %v3525
  %v3527 = vsub.s32 4294967266, %v3522
  %v3528 = vadd.s32 %v3527, 127
  %v3529 = vshll.u32 %v3528, 23
  %v3530 = vor.u32 4788187, %v3529
  %v3531 = vand.u32 2147483647, %v3530
  %v3533 = vcvt.s32.f32 %v3526
  %v3534 = vmul.f32 %v3533, %v3531
  %v3535 = vxor.u32 %v3534, 2147483648
  %v3536 = vsel %vm3453, %v3535, %v3534
  %v3537 = vsub.s32 4, %v3513
  %v3538 = vsel %vm3453, %v3537, %v3513
  %v3539 = vsel %vm3452, %v844, %v3536
  %v3540 = vsel %vm3452, 0, %v3538
  %v3541 = vcosq.f32.pop %v3539
  %v3542 = vsinq.f32.pop %v3539
  %vm3543 = vweird.f32 %v844
  %v3544 = vadd.s32 %v3540, 3
  %v3545 = vand.u32 %v3544, 3
  %vm3546 = vcmp.lt.s32.totalorder %v3545, 2
  %vm3547 = vcmp.eq.s32.totalorder %v3545, 0
  %v3548 = vxor.u32 %v3542, 2147483648
  %v3549 = vsel %vm3547, %v3541, %v3548
  %vm3550 = vcmp.eq.s32.totalorder %v3545, 2
  %v3551 = vxor.u32 %v3541, 2147483648
  %v3552 = vsel %vm3550, %v3551, %v3542
  %v3553 = vsel %vm3546, %v3549, %v3552
  %v3554 = vsel %vm3543, nan, %v3553
  %v3555 = vand.u32 2147483647, %v845
  %vm3556 = vcmp.le.f32.partialorder %v3555, 0.7853982
  %vm3557 = vcmp.lt.s32.totalorder %v845, 0
  %v3558 = vand.u32 %v845, 2139095040
  %v3559 = vshrl.u32 %v3558, 23
  %v3560 = vsub.s32 %v3559, 127
  %v3561 = vand.u32 2147483647, %v845
  %v3562 = vand.u32 %v3561, 8388607
  %v3563 = vor.u32 %v3562, 8388608
  %v3564 = vsub.s32 0, %v3563
  %v3565 = vadd.s32 %v3560, 1
  %vm3566 = vcmp.gt.s32.totalorder %v3565, 0
  %v3567 = vsel %vm3566, %v3565, 0
  %v3568 = vshrl.u32 %v3567, 5
  %v3569 = vand.u32 %v3567, 31
  %v3570 = vsub.s32 32, %v3569
  %v3571 = vshrl.u32 683565275, %v3570
  %v3572 = vshll.u32 683565275, %v3569
  %v3573 = vshrl.u32 2475754826, %v3570
  %v3574 = vor.u32 %v3572, %v3573
  %v3575 = vshll.u32 2475754826, %v3569
  %v3576 = vshrl.u32 2131351028, %v3570
  %v3577 = vor.u32 %v3575, %v3576
  %v3578 = vshll.u32 2131351028, %v3569
  %v3579 = vshrl.u32 2102212464, %v3570
  %v3580 = vor.u32 %v3578, %v3579
  %v3581 = vshll.u32 2102212464, %v3569
  %v3582 = vshrl.u32 920167782, %v3570
  %v3583 = vor.u32 %v3581, %v3582
  %v3584 = vshll.u32 920167782, %v3569
  %v3585 = vshrl.u32 1326507024, %v3570
  %v3586 = vor.u32 %v3584, %v3585
  %vm3587 = vcmp.lt.s32.totalorder %v3568, 1
  %vm3588 = vcmp.lt.s32.totalorder %v3568, 2
  %vm3589 = vcmp.lt.s32.totalorder %v3568, 3
  %vm3590 = vcmp.lt.s32.totalorder %v3568, 4
  %v3591 = vsel %vm3587, %v3571, %v3574
  %v3592 = vsel %vm3590, %v3580, 2102212464
  %v3593 = vsel %vm3589, %v3577, %v3592
  %v3594 = vsel %vm3588, %v3591, %v3593
  %v3595 = vsel %vm3587, %v3574, %v3577
  %v3596 = vsel %vm3590, %v3583, 920167782
  %v3597 = vsel %vm3589, %v3580, %v3596
  %v3598 = vsel %vm3588, %v3595, %v3597
  %v3599 = vsel %vm3587, %v3577, %v3580
  %v3600 = vsel %vm3590, %v3586, 1326507024
  %v3601 = vsel %vm3589, %v3583, %v3600
  %v3602 = vsel %vm3588, %v3599, %v3601
  %v3603 = vshll.u32 %v3563, 8
  %v3604 = vmul.u32.u64.compose %v3603, %v3602
  %v3605 = vextract.low.u32 %v3604
  %v3606 = vextract.high.u32 %v3604
  %v3607 = vmul.u32.u64.compose %v3603, %v3598
  %v3608 = vextract.low.u32 %v3607
  %v3609 = vextract.high.u32 %v3607
  %v3610 = vmul.u32 %v3603, %v3594
  %v3611 = vadd.s32 %v3606, %v3608
  %vm3612 = vc.u32 %v3606, %v3608
  %v3613 = vadd.s32 %v3609, 1
  %v3614 = vsel %vm3612, %v3613, %v3609
  %v3615 = vadd.s32 %v3610, %v3614
  %v3616 = vadd.s32 %v3615, 536870912
  %v3617 = vshrl.u32 %v3616, 30
  %v3618 = vshll.u32 %v3617, 30
  %v3619 = vsub.s32 %v3615, %v3618
  %vm3620 = vcmp.lt.s32.totalorder %v3619, 0
  %v3621 = vsub.s32 0, %v3619
  %v3622 = vsel %vm3620, %v3621, %v3619
  %v3623 = vclz %v3622
  %v3624 = vsub.s32 %v3623, 2
  %vm3625 = vcmp.gt.s32.totalorder 0, %v3624
  %v3626 = vsel %vm3625, 0, %v3624
  %v3627 = vsub.s32 32, %v3626
  %v3628 = vshll.u32 %v3619, %v3626
  %v3629 = vshrl.u32 %v3611, %v3627
  %v3630 = vor.u32 %v3628, %v3629
  %v3631 = vsub.s32 4294967266, %v3626
  %v3632 = vadd.s32 %v3631, 127
  %v3633 = vshll.u32 %v3632, 23
  %v3634 = vor.u32 4788187, %v3633
  %v3635 = vand.u32 2147483647, %v3634
  %v3637 = vcvt.s32.f32 %v3630
  %v3638 = vmul.f32 %v3637, %v3635
  %v3639 = vxor.u32 %v3638, 2147483648
  %v3640 = vsel %vm3557, %v3639, %v3638
  %v3641 = vsub.s32 4, %v3617
  %v3642 = vsel %vm3557, %v3641, %v3617
  %v3643 = vsel %vm3556, %v845, %v3640
  %v3644 = vsel %vm3556, 0, %v3642
  %v3645 = vcosq.f32.pop %v3643
  %v3646 = vsinq.f32.pop %v3643
  %vm3647 = vweird.f32 %v845
  %v3648 = vadd.s32 %v3644, 3
  %v3649 = vand.u32 %v3648, 3
  %vm3650 = vcmp.lt.s32.totalorder %v3649, 2
  %vm3651 = vcmp.eq.s32.totalorder %v3649, 0
  %v3652 = vxor.u32 %v3646, 2147483648
  %v3653 = vsel %vm3651, %v3645, %v3652
  %vm3654 = vcmp.eq.s32.totalorder %v3649, 2
  %v3655 = vxor.u32 %v3645, 2147483648
  %v3656 = vsel %vm3654, %v3655, %v3646
  %v3657 = vsel %vm3650, %v3653, %v3656
  %v3658 = vsel %vm3647, nan, %v3657
  %v3659 = vand.u32 2147483647, %v846
  %vm3660 = vcmp.le.f32.partialorder %v3659, 0.7853982
  %vm3661 = vcmp.lt.s32.totalorder %v846, 0
  %v3662 = vand.u32 %v846, 2139095040
  %v3663 = vshrl.u32 %v3662, 23
  %v3664 = vsub.s32 %v3663, 127
  %v3665 = vand.u32 2147483647, %v846
  %v3666 = vand.u32 %v3665, 8388607
  %v3667 = vor.u32 %v3666, 8388608
  %v3668 = vsub.s32 0, %v3667
  %v3669 = vadd.s32 %v3664, 1
  %vm3670 = vcmp.gt.s32.totalorder %v3669, 0
  %v3671 = vsel %vm3670, %v3669, 0
  %v3672 = vshrl.u32 %v3671, 5
  %v3673 = vand.u32 %v3671, 31
  %v3674 = vsub.s32 32, %v3673
  %v3675 = vshrl.u32 683565275, %v3674
  %v3676 = vshll.u32 683565275, %v3673
  %v3677 = vshrl.u32 2475754826, %v3674
  %v3678 = vor.u32 %v3676, %v3677
  %v3679 = vshll.u32 2475754826, %v3673
  %v3680 = vshrl.u32 2131351028, %v3674
  %v3681 = vor.u32 %v3679, %v3680
  %v3682 = vshll.u32 2131351028, %v3673
  %v3683 = vshrl.u32 2102212464, %v3674
  %v3684 = vor.u32 %v3682, %v3683
  %v3685 = vshll.u32 2102212464, %v3673
  %v3686 = vshrl.u32 920167782, %v3674
  %v3687 = vor.u32 %v3685, %v3686
  %v3688 = vshll.u32 920167782, %v3673
  %v3689 = vshrl.u32 1326507024, %v3674
  %v3690 = vor.u32 %v3688, %v3689
  %vm3691 = vcmp.lt.s32.totalorder %v3672, 1
  %vm3692 = vcmp.lt.s32.totalorder %v3672, 2
  %vm3693 = vcmp.lt.s32.totalorder %v3672, 3
  %vm3694 = vcmp.lt.s32.totalorder %v3672, 4
  %v3695 = vsel %vm3691, %v3675, %v3678
  %v3696 = vsel %vm3694, %v3684, 2102212464
  %v3697 = vsel %vm3693, %v3681, %v3696
  %v3698 = vsel %vm3692, %v3695, %v3697
  %v3699 = vsel %vm3691, %v3678, %v3681
  %v3700 = vsel %vm3694, %v3687, 920167782
  %v3701 = vsel %vm3693, %v3684, %v3700
  %v3702 = vsel %vm3692, %v3699, %v3701
  %v3703 = vsel %vm3691, %v3681, %v3684
  %v3704 = vsel %vm3694, %v3690, 1326507024
  %v3705 = vsel %vm3693, %v3687, %v3704
  %v3706 = vsel %vm3692, %v3703, %v3705
  %v3707 = vshll.u32 %v3667, 8
  %v3708 = vmul.u32.u64.compose %v3707, %v3706
  %v3709 = vextract.low.u32 %v3708
  %v3710 = vextract.high.u32 %v3708
  %v3711 = vmul.u32.u64.compose %v3707, %v3702
  %v3712 = vextract.low.u32 %v3711
  %v3713 = vextract.high.u32 %v3711
  %v3714 = vmul.u32 %v3707, %v3698
  %v3715 = vadd.s32 %v3710, %v3712
  %vm3716 = vc.u32 %v3710, %v3712
  %v3717 = vadd.s32 %v3713, 1
  %v3718 = vsel %vm3716, %v3717, %v3713
  %v3719 = vadd.s32 %v3714, %v3718
  %v3720 = vadd.s32 %v3719, 536870912
  %v3721 = vshrl.u32 %v3720, 30
  %v3722 = vshll.u32 %v3721, 30
  %v3723 = vsub.s32 %v3719, %v3722
  %vm3724 = vcmp.lt.s32.totalorder %v3723, 0
  %v3725 = vsub.s32 0, %v3723
  %v3726 = vsel %vm3724, %v3725, %v3723
  %v3727 = vclz %v3726
  %v3728 = vsub.s32 %v3727, 2
  %vm3729 = vcmp.gt.s32.totalorder 0, %v3728
  %v3730 = vsel %vm3729, 0, %v3728
  %v3731 = vsub.s32 32, %v3730
  %v3732 = vshll.u32 %v3723, %v3730
  %v3733 = vshrl.u32 %v3715, %v3731
  %v3734 = vor.u32 %v3732, %v3733
  %v3735 = vsub.s32 4294967266, %v3730
  %v3736 = vadd.s32 %v3735, 127
  %v3737 = vshll.u32 %v3736, 23
  %v3738 = vor.u32 4788187, %v3737
  %v3739 = vand.u32 2147483647, %v3738
  %v3741 = vcvt.s32.f32 %v3734
  %v3742 = vmul.f32 %v3741, %v3739
  %v3743 = vxor.u32 %v3742, 2147483648
  %v3744 = vsel %vm3661, %v3743, %v3742
  %v3745 = vsub.s32 4, %v3721
  %v3746 = vsel %vm3661, %v3745, %v3721
  %v3747 = vsel %vm3660, %v846, %v3744
  %v3748 = vsel %vm3660, 0, %v3746
  %v3749 = vcosq.f32.pop %v3747
  %v3750 = vsinq.f32.pop %v3747
  %vm3751 = vweird.f32 %v846
  %v3752 = vadd.s32 %v3748, 3
  %v3753 = vand.u32 %v3752, 3
  %vm3754 = vcmp.lt.s32.totalorder %v3753, 2
  %vm3755 = vcmp.eq.s32.totalorder %v3753, 0
  %v3756 = vxor.u32 %v3750, 2147483648
  %v3757 = vsel %vm3755, %v3749, %v3756
  %vm3758 = vcmp.eq.s32.totalorder %v3753, 2
  %v3759 = vxor.u32 %v3749, 2147483648
  %v3760 = vsel %vm3758, %v3759, %v3750
  %v3761 = vsel %vm3754, %v3757, %v3760
  %v3762 = vsel %vm3751, nan, %v3761
  %v3763 = vand.u32 2147483647, %v847
  %vm3764 = vcmp.le.f32.partialorder %v3763, 0.7853982
  %vm3765 = vcmp.lt.s32.totalorder %v847, 0
  %v3766 = vand.u32 %v847, 2139095040
  %v3767 = vshrl.u32 %v3766, 23
  %v3768 = vsub.s32 %v3767, 127
  %v3769 = vand.u32 2147483647, %v847
  %v3770 = vand.u32 %v3769, 8388607
  %v3771 = vor.u32 %v3770, 8388608
  %v3772 = vsub.s32 0, %v3771
  %v3773 = vadd.s32 %v3768, 1
  %vm3774 = vcmp.gt.s32.totalorder %v3773, 0
  %v3775 = vsel %vm3774, %v3773, 0
  %v3776 = vshrl.u32 %v3775, 5
  %v3777 = vand.u32 %v3775, 31
  %v3778 = vsub.s32 32, %v3777
  %v3779 = vshrl.u32 683565275, %v3778
  %v3780 = vshll.u32 683565275, %v3777
  %v3781 = vshrl.u32 2475754826, %v3778
  %v3782 = vor.u32 %v3780, %v3781
  %v3783 = vshll.u32 2475754826, %v3777
  %v3784 = vshrl.u32 2131351028, %v3778
  %v3785 = vor.u32 %v3783, %v3784
  %v3786 = vshll.u32 2131351028, %v3777
  %v3787 = vshrl.u32 2102212464, %v3778
  %v3788 = vor.u32 %v3786, %v3787
  %v3789 = vshll.u32 2102212464, %v3777
  %v3790 = vshrl.u32 920167782, %v3778
  %v3791 = vor.u32 %v3789, %v3790
  %v3792 = vshll.u32 920167782, %v3777
  %v3793 = vshrl.u32 1326507024, %v3778
  %v3794 = vor.u32 %v3792, %v3793
  %vm3795 = vcmp.lt.s32.totalorder %v3776, 1
  %vm3796 = vcmp.lt.s32.totalorder %v3776, 2
  %vm3797 = vcmp.lt.s32.totalorder %v3776, 3
  %vm3798 = vcmp.lt.s32.totalorder %v3776, 4
  %v3799 = vsel %vm3795, %v3779, %v3782
  %v3800 = vsel %vm3798, %v3788, 2102212464
  %v3801 = vsel %vm3797, %v3785, %v3800
  %v3802 = vsel %vm3796, %v3799, %v3801
  %v3803 = vsel %vm3795, %v3782, %v3785
  %v3804 = vsel %vm3798, %v3791, 920167782
  %v3805 = vsel %vm3797, %v3788, %v3804
  %v3806 = vsel %vm3796, %v3803, %v3805
  %v3807 = vsel %vm3795, %v3785, %v3788
  %v3808 = vsel %vm3798, %v3794, 1326507024
  %v3809 = vsel %vm3797, %v3791, %v3808
  %v3810 = vsel %vm3796, %v3807, %v3809
  %v3811 = vshll.u32 %v3771, 8
  %v3812 = vmul.u32.u64.compose %v3811, %v3810
  %v3813 = vextract.low.u32 %v3812
  %v3814 = vextract.high.u32 %v3812
  %v3815 = vmul.u32.u64.compose %v3811, %v3806
  %v3816 = vextract.low.u32 %v3815
  %v3817 = vextract.high.u32 %v3815
  %v3818 = vmul.u32 %v3811, %v3802
  %v3819 = vadd.s32 %v3814, %v3816
  %vm3820 = vc.u32 %v3814, %v3816
  %v3821 = vadd.s32 %v3817, 1
  %v3822 = vsel %vm3820, %v3821, %v3817
  %v3823 = vadd.s32 %v3818, %v3822
  %v3824 = vadd.s32 %v3823, 536870912
  %v3825 = vshrl.u32 %v3824, 30
  %v3826 = vshll.u32 %v3825, 30
  %v3827 = vsub.s32 %v3823, %v3826
  %vm3828 = vcmp.lt.s32.totalorder %v3827, 0
  %v3829 = vsub.s32 0, %v3827
  %v3830 = vsel %vm3828, %v3829, %v3827
  %v3831 = vclz %v3830
  %v3832 = vsub.s32 %v3831, 2
  %vm3833 = vcmp.gt.s32.totalorder 0, %v3832
  %v3834 = vsel %vm3833, 0, %v3832
  %v3835 = vsub.s32 32, %v3834
  %v3836 = vshll.u32 %v3827, %v3834
  %v3837 = vshrl.u32 %v3819, %v3835
  %v3838 = vor.u32 %v3836, %v3837
  %v3839 = vsub.s32 4294967266, %v3834
  %v3840 = vadd.s32 %v3839, 127
  %v3841 = vshll.u32 %v3840, 23
  %v3842 = vor.u32 4788187, %v3841
  %v3843 = vand.u32 2147483647, %v3842
  %v3845 = vcvt.s32.f32 %v3838
  %v3846 = vmul.f32 %v3845, %v3843
  %v3847 = vxor.u32 %v3846, 2147483648
  %v3848 = vsel %vm3765, %v3847, %v3846
  %v3849 = vsub.s32 4, %v3825
  %v3850 = vsel %vm3765, %v3849, %v3825
  %v3851 = vsel %vm3764, %v847, %v3848
  %v3852 = vsel %vm3764, 0, %v3850
  %v3853 = vcosq.f32.pop %v3851
  %v3854 = vsinq.f32.pop %v3851
  %vm3855 = vweird.f32 %v847
  %v3856 = vadd.s32 %v3852, 3
  %v3857 = vand.u32 %v3856, 3
  %vm3858 = vcmp.lt.s32.totalorder %v3857, 2
  %vm3859 = vcmp.eq.s32.totalorder %v3857, 0
  %v3860 = vxor.u32 %v3854, 2147483648
  %v3861 = vsel %vm3859, %v3853, %v3860
  %vm3862 = vcmp.eq.s32.totalorder %v3857, 2
  %v3863 = vxor.u32 %v3853, 2147483648
  %v3864 = vsel %vm3862, %v3863, %v3854
  %v3865 = vsel %vm3858, %v3861, %v3864
  %v3866 = vsel %vm3855, nan, %v3865
  %v3867 = vand.u32 2147483647, %v848
  %vm3868 = vcmp.le.f32.partialorder %v3867, 0.7853982
  %vm3869 = vcmp.lt.s32.totalorder %v848, 0
  %v3870 = vand.u32 %v848, 2139095040
  %v3871 = vshrl.u32 %v3870, 23
  %v3872 = vsub.s32 %v3871, 127
  %v3873 = vand.u32 2147483647, %v848
  %v3874 = vand.u32 %v3873, 8388607
  %v3875 = vor.u32 %v3874, 8388608
  %v3876 = vsub.s32 0, %v3875
  %v3877 = vadd.s32 %v3872, 1
  %vm3878 = vcmp.gt.s32.totalorder %v3877, 0
  %v3879 = vsel %vm3878, %v3877, 0
  %v3880 = vshrl.u32 %v3879, 5
  %v3881 = vand.u32 %v3879, 31
  %v3882 = vsub.s32 32, %v3881
  %v3883 = vshrl.u32 683565275, %v3882
  %v3884 = vshll.u32 683565275, %v3881
  %v3885 = vshrl.u32 2475754826, %v3882
  %v3886 = vor.u32 %v3884, %v3885
  %v3887 = vshll.u32 2475754826, %v3881
  %v3888 = vshrl.u32 2131351028, %v3882
  %v3889 = vor.u32 %v3887, %v3888
  %v3890 = vshll.u32 2131351028, %v3881
  %v3891 = vshrl.u32 2102212464, %v3882
  %v3892 = vor.u32 %v3890, %v3891
  %v3893 = vshll.u32 2102212464, %v3881
  %v3894 = vshrl.u32 920167782, %v3882
  %v3895 = vor.u32 %v3893, %v3894
  %v3896 = vshll.u32 920167782, %v3881
  %v3897 = vshrl.u32 1326507024, %v3882
  %v3898 = vor.u32 %v3896, %v3897
  %vm3899 = vcmp.lt.s32.totalorder %v3880, 1
  %vm3900 = vcmp.lt.s32.totalorder %v3880, 2
  %vm3901 = vcmp.lt.s32.totalorder %v3880, 3
  %vm3902 = vcmp.lt.s32.totalorder %v3880, 4
  %v3903 = vsel %vm3899, %v3883, %v3886
  %v3904 = vsel %vm3902, %v3892, 2102212464
  %v3905 = vsel %vm3901, %v3889, %v3904
  %v3906 = vsel %vm3900, %v3903, %v3905
  %v3907 = vsel %vm3899, %v3886, %v3889
  %v3908 = vsel %vm3902, %v3895, 920167782
  %v3909 = vsel %vm3901, %v3892, %v3908
  %v3910 = vsel %vm3900, %v3907, %v3909
  %v3911 = vsel %vm3899, %v3889, %v3892
  %v3912 = vsel %vm3902, %v3898, 1326507024
  %v3913 = vsel %vm3901, %v3895, %v3912
  %v3914 = vsel %vm3900, %v3911, %v3913
  %v3915 = vshll.u32 %v3875, 8
  %v3916 = vmul.u32.u64.compose %v3915, %v3914
  %v3917 = vextract.low.u32 %v3916
  %v3918 = vextract.high.u32 %v3916
  %v3919 = vmul.u32.u64.compose %v3915, %v3910
  %v3920 = vextract.low.u32 %v3919
  %v3921 = vextract.high.u32 %v3919
  %v3922 = vmul.u32 %v3915, %v3906
  %v3923 = vadd.s32 %v3918, %v3920
  %vm3924 = vc.u32 %v3918, %v3920
  %v3925 = vadd.s32 %v3921, 1
  %v3926 = vsel %vm3924, %v3925, %v3921
  %v3927 = vadd.s32 %v3922, %v3926
  %v3928 = vadd.s32 %v3927, 536870912
  %v3929 = vshrl.u32 %v3928, 30
  %v3930 = vshll.u32 %v3929, 30
  %v3931 = vsub.s32 %v3927, %v3930
  %vm3932 = vcmp.lt.s32.totalorder %v3931, 0
  %v3933 = vsub.s32 0, %v3931
  %v3934 = vsel %vm3932, %v3933, %v3931
  %v3935 = vclz %v3934
  %v3936 = vsub.s32 %v3935, 2
  %vm3937 = vcmp.gt.s32.totalorder 0, %v3936
  %v3938 = vsel %vm3937, 0, %v3936
  %v3939 = vsub.s32 32, %v3938
  %v3940 = vshll.u32 %v3931, %v3938
  %v3941 = vshrl.u32 %v3923, %v3939
  %v3942 = vor.u32 %v3940, %v3941
  %v3943 = vsub.s32 4294967266, %v3938
  %v3944 = vadd.s32 %v3943, 127
  %v3945 = vshll.u32 %v3944, 23
  %v3946 = vor.u32 4788187, %v3945
  %v3947 = vand.u32 2147483647, %v3946
  %v3949 = vcvt.s32.f32 %v3942
  %v3950 = vmul.f32 %v3949, %v3947
  %v3951 = vxor.u32 %v3950, 2147483648
  %v3952 = vsel %vm3869, %v3951, %v3950
  %v3953 = vsub.s32 4, %v3929
  %v3954 = vsel %vm3869, %v3953, %v3929
  %v3955 = vsel %vm3868, %v848, %v3952
  %v3956 = vsel %vm3868, 0, %v3954
  %v3957 = vcosq.f32.pop %v3955
  %v3958 = vsinq.f32.pop %v3955
  %vm3959 = vweird.f32 %v848
  %v3960 = vadd.s32 %v3956, 3
  %v3961 = vand.u32 %v3960, 3
  %vm3962 = vcmp.lt.s32.totalorder %v3961, 2
  %vm3963 = vcmp.eq.s32.totalorder %v3961, 0
  %v3964 = vxor.u32 %v3958, 2147483648
  %v3965 = vsel %vm3963, %v3957, %v3964
  %vm3966 = vcmp.eq.s32.totalorder %v3961, 2
  %v3967 = vxor.u32 %v3957, 2147483648
  %v3968 = vsel %vm3966, %v3967, %v3958
  %v3969 = vsel %vm3962, %v3965, %v3968
  %v3970 = vsel %vm3959, nan, %v3969
  %v3971 = vand.u32 2147483647, %v849
  %vm3972 = vcmp.le.f32.partialorder %v3971, 0.7853982
  %vm3973 = vcmp.lt.s32.totalorder %v849, 0
  %v3974 = vand.u32 %v849, 2139095040
  %v3975 = vshrl.u32 %v3974, 23
  %v3976 = vsub.s32 %v3975, 127
  %v3977 = vand.u32 2147483647, %v849
  %v3978 = vand.u32 %v3977, 8388607
  %v3979 = vor.u32 %v3978, 8388608
  %v3980 = vsub.s32 0, %v3979
  %v3981 = vadd.s32 %v3976, 1
  %vm3982 = vcmp.gt.s32.totalorder %v3981, 0
  %v3983 = vsel %vm3982, %v3981, 0
  %v3984 = vshrl.u32 %v3983, 5
  %v3985 = vand.u32 %v3983, 31
  %v3986 = vsub.s32 32, %v3985
  %v3987 = vshrl.u32 683565275, %v3986
  %v3988 = vshll.u32 683565275, %v3985
  %v3989 = vshrl.u32 2475754826, %v3986
  %v3990 = vor.u32 %v3988, %v3989
  %v3991 = vshll.u32 2475754826, %v3985
  %v3992 = vshrl.u32 2131351028, %v3986
  %v3993 = vor.u32 %v3991, %v3992
  %v3994 = vshll.u32 2131351028, %v3985
  %v3995 = vshrl.u32 2102212464, %v3986
  %v3996 = vor.u32 %v3994, %v3995
  %v3997 = vshll.u32 2102212464, %v3985
  %v3998 = vshrl.u32 920167782, %v3986
  %v3999 = vor.u32 %v3997, %v3998
  %v4000 = vshll.u32 920167782, %v3985
  %v4001 = vshrl.u32 1326507024, %v3986
  %v4002 = vor.u32 %v4000, %v4001
  %vm4003 = vcmp.lt.s32.totalorder %v3984, 1
  %vm4004 = vcmp.lt.s32.totalorder %v3984, 2
  %vm4005 = vcmp.lt.s32.totalorder %v3984, 3
  %vm4006 = vcmp.lt.s32.totalorder %v3984, 4
  %v4007 = vsel %vm4003, %v3987, %v3990
  %v4008 = vsel %vm4006, %v3996, 2102212464
  %v4009 = vsel %vm4005, %v3993, %v4008
  %v4010 = vsel %vm4004, %v4007, %v4009
  %v4011 = vsel %vm4003, %v3990, %v3993
  %v4012 = vsel %vm4006, %v3999, 920167782
  %v4013 = vsel %vm4005, %v3996, %v4012
  %v4014 = vsel %vm4004, %v4011, %v4013
  %v4015 = vsel %vm4003, %v3993, %v3996
  %v4016 = vsel %vm4006, %v4002, 1326507024
  %v4017 = vsel %vm4005, %v3999, %v4016
  %v4018 = vsel %vm4004, %v4015, %v4017
  %v4019 = vshll.u32 %v3979, 8
  %v4020 = vmul.u32.u64.compose %v4019, %v4018
  %v4021 = vextract.low.u32 %v4020
  %v4022 = vextract.high.u32 %v4020
  %v4023 = vmul.u32.u64.compose %v4019, %v4014
  %v4024 = vextract.low.u32 %v4023
  %v4025 = vextract.high.u32 %v4023
  %v4026 = vmul.u32 %v4019, %v4010
  %v4027 = vadd.s32 %v4022, %v4024
  %vm4028 = vc.u32 %v4022, %v4024
  %v4029 = vadd.s32 %v4025, 1
  %v4030 = vsel %vm4028, %v4029, %v4025
  %v4031 = vadd.s32 %v4026, %v4030
  %v4032 = vadd.s32 %v4031, 536870912
  %v4033 = vshrl.u32 %v4032, 30
  %v4034 = vshll.u32 %v4033, 30
  %v4035 = vsub.s32 %v4031, %v4034
  %vm4036 = vcmp.lt.s32.totalorder %v4035, 0
  %v4037 = vsub.s32 0, %v4035
  %v4038 = vsel %vm4036, %v4037, %v4035
  %v4039 = vclz %v4038
  %v4040 = vsub.s32 %v4039, 2
  %vm4041 = vcmp.gt.s32.totalorder 0, %v4040
  %v4042 = vsel %vm4041, 0, %v4040
  %v4043 = vsub.s32 32, %v4042
  %v4044 = vshll.u32 %v4035, %v4042
  %v4045 = vshrl.u32 %v4027, %v4043
  %v4046 = vor.u32 %v4044, %v4045
  %v4047 = vsub.s32 4294967266, %v4042
  %v4048 = vadd.s32 %v4047, 127
  %v4049 = vshll.u32 %v4048, 23
  %v4050 = vor.u32 4788187, %v4049
  %v4051 = vand.u32 2147483647, %v4050
  %v4053 = vcvt.s32.f32 %v4046
  %v4054 = vmul.f32 %v4053, %v4051
  %v4055 = vxor.u32 %v4054, 2147483648
  %v4056 = vsel %vm3973, %v4055, %v4054
  %v4057 = vsub.s32 4, %v4033
  %v4058 = vsel %vm3973, %v4057, %v4033
  %v4059 = vsel %vm3972, %v849, %v4056
  %v4060 = vsel %vm3972, 0, %v4058
  %v4061 = vcosq.f32.pop %v4059
  %v4062 = vsinq.f32.pop %v4059
  %vm4063 = vweird.f32 %v849
  %v4064 = vadd.s32 %v4060, 3
  %v4065 = vand.u32 %v4064, 3
  %vm4066 = vcmp.lt.s32.totalorder %v4065, 2
  %vm4067 = vcmp.eq.s32.totalorder %v4065, 0
  %v4068 = vxor.u32 %v4062, 2147483648
  %v4069 = vsel %vm4067, %v4061, %v4068
  %vm4070 = vcmp.eq.s32.totalorder %v4065, 2
  %v4071 = vxor.u32 %v4061, 2147483648
  %v4072 = vsel %vm4070, %v4071, %v4062
  %v4073 = vsel %vm4066, %v4069, %v4072
  %v4074 = vsel %vm4063, nan, %v4073
  %v4075 = vand.u32 2147483647, %v850
  %vm4076 = vcmp.le.f32.partialorder %v4075, 0.7853982
  %vm4077 = vcmp.lt.s32.totalorder %v850, 0
  %v4078 = vand.u32 %v850, 2139095040
  %v4079 = vshrl.u32 %v4078, 23
  %v4080 = vsub.s32 %v4079, 127
  %v4081 = vand.u32 2147483647, %v850
  %v4082 = vand.u32 %v4081, 8388607
  %v4083 = vor.u32 %v4082, 8388608
  %v4084 = vsub.s32 0, %v4083
  %v4085 = vadd.s32 %v4080, 1
  %vm4086 = vcmp.gt.s32.totalorder %v4085, 0
  %v4087 = vsel %vm4086, %v4085, 0
  %v4088 = vshrl.u32 %v4087, 5
  %v4089 = vand.u32 %v4087, 31
  %v4090 = vsub.s32 32, %v4089
  %v4091 = vshrl.u32 683565275, %v4090
  %v4092 = vshll.u32 683565275, %v4089
  %v4093 = vshrl.u32 2475754826, %v4090
  %v4094 = vor.u32 %v4092, %v4093
  %v4095 = vshll.u32 2475754826, %v4089
  %v4096 = vshrl.u32 2131351028, %v4090
  %v4097 = vor.u32 %v4095, %v4096
  %v4098 = vshll.u32 2131351028, %v4089
  %v4099 = vshrl.u32 2102212464, %v4090
  %v4100 = vor.u32 %v4098, %v4099
  %v4101 = vshll.u32 2102212464, %v4089
  %v4102 = vshrl.u32 920167782, %v4090
  %v4103 = vor.u32 %v4101, %v4102
  %v4104 = vshll.u32 920167782, %v4089
  %v4105 = vshrl.u32 1326507024, %v4090
  %v4106 = vor.u32 %v4104, %v4105
  %vm4107 = vcmp.lt.s32.totalorder %v4088, 1
  %vm4108 = vcmp.lt.s32.totalorder %v4088, 2
  %vm4109 = vcmp.lt.s32.totalorder %v4088, 3
  %vm4110 = vcmp.lt.s32.totalorder %v4088, 4
  %v4111 = vsel %vm4107, %v4091, %v4094
  %v4112 = vsel %vm4110, %v4100, 2102212464
  %v4113 = vsel %vm4109, %v4097, %v4112
  %v4114 = vsel %vm4108, %v4111, %v4113
  %v4115 = vsel %vm4107, %v4094, %v4097
  %v4116 = vsel %vm4110, %v4103, 920167782
  %v4117 = vsel %vm4109, %v4100, %v4116
  %v4118 = vsel %vm4108, %v4115, %v4117
  %v4119 = vsel %vm4107, %v4097, %v4100
  %v4120 = vsel %vm4110, %v4106, 1326507024
  %v4121 = vsel %vm4109, %v4103, %v4120
  %v4122 = vsel %vm4108, %v4119, %v4121
  %v4123 = vshll.u32 %v4083, 8
  %v4124 = vmul.u32.u64.compose %v4123, %v4122
  %v4125 = vextract.low.u32 %v4124
  %v4126 = vextract.high.u32 %v4124
  %v4127 = vmul.u32.u64.compose %v4123, %v4118
  %v4128 = vextract.low.u32 %v4127
  %v4129 = vextract.high.u32 %v4127
  %v4130 = vmul.u32 %v4123, %v4114
  %v4131 = vadd.s32 %v4126, %v4128
  %vm4132 = vc.u32 %v4126, %v4128
  %v4133 = vadd.s32 %v4129, 1
  %v4134 = vsel %vm4132, %v4133, %v4129
  %v4135 = vadd.s32 %v4130, %v4134
  %v4136 = vadd.s32 %v4135, 536870912
  %v4137 = vshrl.u32 %v4136, 30
  %v4138 = vshll.u32 %v4137, 30
  %v4139 = vsub.s32 %v4135, %v4138
  %vm4140 = vcmp.lt.s32.totalorder %v4139, 0
  %v4141 = vsub.s32 0, %v4139
  %v4142 = vsel %vm4140, %v4141, %v4139
  %v4143 = vclz %v4142
  %v4144 = vsub.s32 %v4143, 2
  %vm4145 = vcmp.gt.s32.totalorder 0, %v4144
  %v4146 = vsel %vm4145, 0, %v4144
  %v4147 = vsub.s32 32, %v4146
  %v4148 = vshll.u32 %v4139, %v4146
  %v4149 = vshrl.u32 %v4131, %v4147
  %v4150 = vor.u32 %v4148, %v4149
  %v4151 = vsub.s32 4294967266, %v4146
  %v4152 = vadd.s32 %v4151, 127
  %v4153 = vshll.u32 %v4152, 23
  %v4154 = vor.u32 4788187, %v4153
  %v4155 = vand.u32 2147483647, %v4154
  %v4157 = vcvt.s32.f32 %v4150
  %v4158 = vmul.f32 %v4157, %v4155
  %v4159 = vxor.u32 %v4158, 2147483648
  %v4160 = vsel %vm4077, %v4159, %v4158
  %v4161 = vsub.s32 4, %v4137
  %v4162 = vsel %vm4077, %v4161, %v4137
  %v4163 = vsel %vm4076, %v850, %v4160
  %v4164 = vsel %vm4076, 0, %v4162
  %v4165 = vcosq.f32.pop %v4163
  %v4166 = vsinq.f32.pop %v4163
  %vm4167 = vweird.f32 %v850
  %v4168 = vadd.s32 %v4164, 3
  %v4169 = vand.u32 %v4168, 3
  %vm4170 = vcmp.lt.s32.totalorder %v4169, 2
  %vm4171 = vcmp.eq.s32.totalorder %v4169, 0
  %v4172 = vxor.u32 %v4166, 2147483648
  %v4173 = vsel %vm4171, %v4165, %v4172
  %vm4174 = vcmp.eq.s32.totalorder %v4169, 2
  %v4175 = vxor.u32 %v4165, 2147483648
  %v4176 = vsel %vm4174, %v4175, %v4166
  %v4177 = vsel %vm4170, %v4173, %v4176
  %v4178 = vsel %vm4167, nan, %v4177
  %v4179 = vmul.f32 %v954, 1.3333334
  %v4180 = vmul.f32 %v1058, 1.3333334
  %v4181 = vmul.f32 %v1162, 1.3333334
  %v4182 = vmul.f32 %v1266, 1.3333334
  %v4183 = vmul.f32 %v1370, 1.3333334
  %v4184 = vmul.f32 %v1474, 1.3333334
  %v4185 = vmul.f32 %v1578, 1.3333334
  %v4186 = vmul.f32 %v1682, 1.3333334
  %v4187 = vmul.f32 %v1786, 1.3333334
  %v4188 = vmul.f32 %v1890, 1.3333334
  %v4189 = vmul.f32 %v1994, 1.3333334
  %v4190 = vmul.f32 %v2098, 1.3333334
  %v4191 = vmul.f32 %v2202, 1.3333334
  %v4192 = vmul.f32 %v2306, 1.3333334
  %v4193 = vmul.f32 %v2410, 1.3333334
  %v4194 = vmul.f32 %v2514, 1.3333334
  %v4195 = vmul.f32 %v2618, 1.3333334
  %v4196 = vmul.f32 %v2722, 1.3333334
  %v4197 = vmul.f32 %v2826, 1.3333334
  %v4198 = vmul.f32 %v2930, 1.3333334
  %v4199 = vmul.f32 %v3034, 1.3333334
  %v4200 = vmul.f32 %v3138, 1.3333334
  %v4201 = vmul.f32 %v3242, 1.3333334
  %v4202 = vmul.f32 %v3346, 1.3333334
  %v4203 = vmul.f32 %v3450, 1.3333334
  %v4204 = vmul.f32 %v3554, 1.3333334
  %v4205 = vmul.f32 %v3658, 1.3333334
  %v4206 = vmul.f32 %v3762, 1.3333334
  %v4207 = vmul.f32 %v3866, 1.3333334
  %v4208 = vmul.f32 %v3970, 1.3333334
  %v4209 = vmul.f32 %v4074, 1.3333334
  %v4210 = vmul.f32 %v4178, 1.3333334
  %v4211 = vmul.f32 %v4179, %v428
  %v4212 = vmul.f32 %v4180, %v430
  %v4213 = vmul.f32 %v4181, %v432
  %v4214 = vmul.f32 %v4182, %v434
  %v4215 = vmul.f32 %v4183, %v436
  %v4216 = vmul.f32 %v4184, %v438
  %v4217 = vmul.f32 %v4185, %v440
  %v4218 = vmul.f32 %v4186, %v442
  %v4219 = vmul.f32 %v4187, %v444
  %v4220 = vmul.f32 %v4188, %v446
  %v4221 = vmul.f32 %v4189, %v448
  %v4222 = vmul.f32 %v4190, %v450
  %v4223 = vmul.f32 %v4191, %v452
  %v4224 = vmul.f32 %v4192, %v454
  %v4225 = vmul.f32 %v4193, %v456
  %v4226 = vmul.f32 %v4194, %v458
  %v4227 = vmul.f32 %v4195, %v460
  %v4228 = vmul.f32 %v4196, %v462
  %v4229 = vmul.f32 %v4197, %v464
  %v4230 = vmul.f32 %v4198, %v466
  %v4231 = vmul.f32 %v4199, %v468
  %v4232 = vmul.f32 %v4200, %v470
  %v4233 = vmul.f32 %v4201, %v472
  %v4234 = vmul.f32 %v4202, %v474
  %v4235 = vmul.f32 %v4203, %v476
  %v4236 = vmul.f32 %v4204, %v478
  %v4237 = vmul.f32 %v4205, %v480
  %v4238 = vmul.f32 %v4206, %v482
  %v4239 = vmul.f32 %v4207, %v484
  %v4240 = vmul.f32 %v4208, %v486
  %v4241 = vmul.f32 %v4209, %v488
  %v4242 = vmul.f32 %v4210, %v490
  %v4243 = vrcp.pop 1.5
  %v4244 = vmul.f32 %v177, %v4243
  %v4245 = vmul.f32 %v184, %v4243
  %v4246 = vmul.f32 %v191, %v4243
  %v4247 = vmul.f32 %v198, %v4243
  %v4248 = vmul.f32 %v205, %v4243
  %v4249 = vmul.f32 %v212, %v4243
  %v4250 = vmul.f32 %v219, %v4243
  %v4251 = vmul.f32 %v226, %v4243
  %v4252 = vmul.f32 %v233, %v4243
  %v4253 = vmul.f32 %v240, %v4243
  %v4254 = vmul.f32 %v247, %v4243
  %v4255 = vmul.f32 %v254, %v4243
  %v4256 = vmul.f32 %v261, %v4243
  %v4257 = vmul.f32 %v268, %v4243
  %v4258 = vmul.f32 %v275, %v4243
  %v4259 = vmul.f32 %v282, %v4243
  %v4260 = vmul.f32 %v289, %v4243
  %v4261 = vmul.f32 %v296, %v4243
  %v4262 = vmul.f32 %v303, %v4243
  %v4263 = vmul.f32 %v310, %v4243
  %v4264 = vmul.f32 %v317, %v4243
  %v4265 = vmul.f32 %v324, %v4243
  %v4266 = vmul.f32 %v331, %v4243
  %v4267 = vmul.f32 %v338, %v4243
  %v4268 = vmul.f32 %v345, %v4243
  %v4269 = vmul.f32 %v352, %v4243
  %v4270 = vmul.f32 %v359, %v4243
  %v4271 = vmul.f32 %v366, %v4243
  %v4272 = vmul.f32 %v373, %v4243
  %v4273 = vmul.f32 %v380, %v4243
  %v4274 = vmul.f32 %v387, %v4243
  %v4275 = vmul.f32 %v394, %v4243
  %v4276 = vmul.f32 %v4244, %v4244
  %v4277 = vmul.f32 %v4245, %v4245
  %v4278 = vmul.f32 %v4246, %v4246
  %v4279 = vmul.f32 %v4247, %v4247
  %v4280 = vmul.f32 %v4248, %v4248
  %v4281 = vmul.f32 %v4249, %v4249
  %v4282 = vmul.f32 %v4250, %v4250
  %v4283 = vmul.f32 %v4251, %v4251
  %v4284 = vmul.f32 %v4252, %v4252
  %v4285 = vmul.f32 %v4253, %v4253
  %v4286 = vmul.f32 %v4254, %v4254
  %v4287 = vmul.f32 %v4255, %v4255
  %v4288 = vmul.f32 %v4256, %v4256
  %v4289 = vmul.f32 %v4257, %v4257
  %v4290 = vmul.f32 %v4258, %v4258
  %v4291 = vmul.f32 %v4259, %v4259
  %v4292 = vmul.f32 %v4260, %v4260
  %v4293 = vmul.f32 %v4261, %v4261
  %v4294 = vmul.f32 %v4262, %v4262
  %v4295 = vmul.f32 %v4263, %v4263
  %v4296 = vmul.f32 %v4264, %v4264
  %v4297 = vmul.f32 %v4265, %v4265
  %v4298 = vmul.f32 %v4266, %v4266
  %v4299 = vmul.f32 %v4267, %v4267
  %v4300 = vmul.f32 %v4268, %v4268
  %v4301 = vmul.f32 %v4269, %v4269
  %v4302 = vmul.f32 %v4270, %v4270
  %v4303 = vmul.f32 %v4271, %v4271
  %v4304 = vmul.f32 %v4272, %v4272
  %v4305 = vmul.f32 %v4273, %v4273
  %v4306 = vmul.f32 %v4274, %v4274
  %v4307 = vmul.f32 %v4275, %v4275
  %v4308 = vmul.f32 %v4276, %v4276
  %v4309 = vmul.f32 %v4277, %v4277
  %v4310 = vmul.f32 %v4278, %v4278
  %v4311 = vmul.f32 %v4279, %v4279
  %v4312 = vmul.f32 %v4280, %v4280
  %v4313 = vmul.f32 %v4281, %v4281
  %v4314 = vmul.f32 %v4282, %v4282
  %v4315 = vmul.f32 %v4283, %v4283
  %v4316 = vmul.f32 %v4284, %v4284
  %v4317 = vmul.f32 %v4285, %v4285
  %v4318 = vmul.f32 %v4286, %v4286
  %v4319 = vmul.f32 %v4287, %v4287
  %v4320 = vmul.f32 %v4288, %v4288
  %v4321 = vmul.f32 %v4289, %v4289
  %v4322 = vmul.f32 %v4290, %v4290
  %v4323 = vmul.f32 %v4291, %v4291
  %v4324 = vmul.f32 %v4292, %v4292
  %v4325 = vmul.f32 %v4293, %v4293
  %v4326 = vmul.f32 %v4294, %v4294
  %v4327 = vmul.f32 %v4295, %v4295
  %v4328 = vmul.f32 %v4296, %v4296
  %v4329 = vmul.f32 %v4297, %v4297
  %v4330 = vmul.f32 %v4298, %v4298
  %v4331 = vmul.f32 %v4299, %v4299
  %v4332 = vmul.f32 %v4300, %v4300
  %v4333 = vmul.f32 %v4301, %v4301
  %v4334 = vmul.f32 %v4302, %v4302
  %v4335 = vmul.f32 %v4303, %v4303
  %v4336 = vmul.f32 %v4304, %v4304
  %v4337 = vmul.f32 %v4305, %v4305
  %v4338 = vmul.f32 %v4306, %v4306
  %v4339 = vmul.f32 %v4307, %v4307
  %v4340 = vmul.f32 %v4276, %v4308
  %v4341 = vmul.f32 %v4277, %v4309
  %v4342 = vmul.f32 %v4278, %v4310
  %v4343 = vmul.f32 %v4279, %v4311
  %v4344 = vmul.f32 %v4280, %v4312
  %v4345 = vmul.f32 %v4281, %v4313
  %v4346 = vmul.f32 %v4282, %v4314
  %v4347 = vmul.f32 %v4283, %v4315
  %v4348 = vmul.f32 %v4284, %v4316
  %v4349 = vmul.f32 %v4285, %v4317
  %v4350 = vmul.f32 %v4286, %v4318
  %v4351 = vmul.f32 %v4287, %v4319
  %v4352 = vmul.f32 %v4288, %v4320
  %v4353 = vmul.f32 %v4289, %v4321
  %v4354 = vmul.f32 %v4290, %v4322
  %v4355 = vmul.f32 %v4291, %v4323
  %v4356 = vmul.f32 %v4292, %v4324
  %v4357 = vmul.f32 %v4293, %v4325
  %v4358 = vmul.f32 %v4294, %v4326
  %v4359 = vmul.f32 %v4295, %v4327
  %v4360 = vmul.f32 %v4296, %v4328
  %v4361 = vmul.f32 %v4297, %v4329
  %v4362 = vmul.f32 %v4298, %v4330
  %v4363 = vmul.f32 %v4299, %v4331
  %v4364 = vmul.f32 %v4300, %v4332
  %v4365 = vmul.f32 %v4301, %v4333
  %v4366 = vmul.f32 %v4302, %v4334
  %v4367 = vmul.f32 %v4303, %v4335
  %v4368 = vmul.f32 %v4304, %v4336
  %v4369 = vmul.f32 %v4305, %v4337
  %v4370 = vmul.f32 %v4306, %v4338
  %v4371 = vmul.f32 %v4307, %v4339
  %v4372 = vmul.f32 %v4340, 28.0
  %v4373 = vmul.f32 %v4341, 28.0
  %v4374 = vmul.f32 %v4342, 28.0
  %v4375 = vmul.f32 %v4343, 28.0
  %v4376 = vmul.f32 %v4344, 28.0
  %v4377 = vmul.f32 %v4345, 28.0
  %v4378 = vmul.f32 %v4346, 28.0
  %v4379 = vmul.f32 %v4347, 28.0
  %v4380 = vmul.f32 %v4348, 28.0
  %v4381 = vmul.f32 %v4349, 28.0
  %v4382 = vmul.f32 %v4350, 28.0
  %v4383 = vmul.f32 %v4351, 28.0
  %v4384 = vmul.f32 %v4352, 28.0
  %v4385 = vmul.f32 %v4353, 28.0
  %v4386 = vmul.f32 %v4354, 28.0
  %v4387 = vmul.f32 %v4355, 28.0
  %v4388 = vmul.f32 %v4356, 28.0
  %v4389 = vmul.f32 %v4357, 28.0
  %v4390 = vmul.f32 %v4358, 28.0
  %v4391 = vmul.f32 %v4359, 28.0
  %v4392 = vmul.f32 %v4360, 28.0
  %v4393 = vmul.f32 %v4361, 28.0
  %v4394 = vmul.f32 %v4362, 28.0
  %v4395 = vmul.f32 %v4363, 28.0
  %v4396 = vmul.f32 %v4364, 28.0
  %v4397 = vmul.f32 %v4365, 28.0
  %v4398 = vmul.f32 %v4366, 28.0
  %v4399 = vmul.f32 %v4367, 28.0
  %v4400 = vmul.f32 %v4368, 28.0
  %v4401 = vmul.f32 %v4369, 28.0
  %v4402 = vmul.f32 %v4370, 28.0
  %v4403 = vmul.f32 %v4371, 28.0
  %v4404 = vsub.f32 1.0, %v4372
  %v4405 = vsub.f32 1.0, %v4373
  %v4406 = vsub.f32 1.0, %v4374
  %v4407 = vsub.f32 1.0, %v4375
  %v4408 = vsub.f32 1.0, %v4376
  %v4409 = vsub.f32 1.0, %v4377
  %v4410 = vsub.f32 1.0, %v4378
  %v4411 = vsub.f32 1.0, %v4379
  %v4412 = vsub.f32 1.0, %v4380
  %v4413 = vsub.f32 1.0, %v4381
  %v4414 = vsub.f32 1.0, %v4382
  %v4415 = vsub.f32 1.0, %v4383
  %v4416 = vsub.f32 1.0, %v4384
  %v4417 = vsub.f32 1.0, %v4385
  %v4418 = vsub.f32 1.0, %v4386
  %v4419 = vsub.f32 1.0, %v4387
  %v4420 = vsub.f32 1.0, %v4388
  %v4421 = vsub.f32 1.0, %v4389
  %v4422 = vsub.f32 1.0, %v4390
  %v4423 = vsub.f32 1.0, %v4391
  %v4424 = vsub.f32 1.0, %v4392
  %v4425 = vsub.f32 1.0, %v4393
  %v4426 = vsub.f32 1.0, %v4394
  %v4427 = vsub.f32 1.0, %v4395
  %v4428 = vsub.f32 1.0, %v4396
  %v4429 = vsub.f32 1.0, %v4397
  %v4430 = vsub.f32 1.0, %v4398
  %v4431 = vsub.f32 1.0, %v4399
  %v4432 = vsub.f32 1.0, %v4400
  %v4433 = vsub.f32 1.0, %v4401
  %v4434 = vsub.f32 1.0, %v4402
  %v4435 = vsub.f32 1.0, %v4403
  %v4436 = vmul.f32 %v4244, %v4276
  %v4437 = vmul.f32 %v4245, %v4277
  %v4438 = vmul.f32 %v4246, %v4278
  %v4439 = vmul.f32 %v4247, %v4279
  %v4440 = vmul.f32 %v4248, %v4280
  %v4441 = vmul.f32 %v4249, %v4281
  %v4442 = vmul.f32 %v4250, %v4282
  %v4443 = vmul.f32 %v4251, %v4283
  %v4444 = vmul.f32 %v4252, %v4284
  %v4445 = vmul.f32 %v4253, %v4285
  %v4446 = vmul.f32 %v4254, %v4286
  %v4447 = vmul.f32 %v4255, %v4287
  %v4448 = vmul.f32 %v4256, %v4288
  %v4449 = vmul.f32 %v4257, %v4289
  %v4450 = vmul.f32 %v4258, %v4290
  %v4451 = vmul.f32 %v4259, %v4291
  %v4452 = vmul.f32 %v4260, %v4292
  %v4453 = vmul.f32 %v4261, %v4293
  %v4454 = vmul.f32 %v4262, %v4294
  %v4455 = vmul.f32 %v4263, %v4295
  %v4456 = vmul.f32 %v4264, %v4296
  %v4457 = vmul.f32 %v4265, %v4297
  %v4458 = vmul.f32 %v4266, %v4298
  %v4459 = vmul.f32 %v4267, %v4299
  %v4460 = vmul.f32 %v4268, %v4300
  %v4461 = vmul.f32 %v4269, %v4301
  %v4462 = vmul.f32 %v4270, %v4302
  %v4463 = vmul.f32 %v4271, %v4303
  %v4464 = vmul.f32 %v4272, %v4304
  %v4465 = vmul.f32 %v4273, %v4305
  %v4466 = vmul.f32 %v4274, %v4306
  %v4467 = vmul.f32 %v4275, %v4307
  %v4468 = vmul.f32 %v4436, %v4308
  %v4469 = vmul.f32 %v4437, %v4309
  %v4470 = vmul.f32 %v4438, %v4310
  %v4471 = vmul.f32 %v4439, %v4311
  %v4472 = vmul.f32 %v4440, %v4312
  %v4473 = vmul.f32 %v4441, %v4313
  %v4474 = vmul.f32 %v4442, %v4314
  %v4475 = vmul.f32 %v4443, %v4315
  %v4476 = vmul.f32 %v4444, %v4316
  %v4477 = vmul.f32 %v4445, %v4317
  %v4478 = vmul.f32 %v4446, %v4318
  %v4479 = vmul.f32 %v4447, %v4319
  %v4480 = vmul.f32 %v4448, %v4320
  %v4481 = vmul.f32 %v4449, %v4321
  %v4482 = vmul.f32 %v4450, %v4322
  %v4483 = vmul.f32 %v4451, %v4323
  %v4484 = vmul.f32 %v4452, %v4324
  %v4485 = vmul.f32 %v4453, %v4325
  %v4486 = vmul.f32 %v4454, %v4326
  %v4487 = vmul.f32 %v4455, %v4327
  %v4488 = vmul.f32 %v4456, %v4328
  %v4489 = vmul.f32 %v4457, %v4329
  %v4490 = vmul.f32 %v4458, %v4330
  %v4491 = vmul.f32 %v4459, %v4331
  %v4492 = vmul.f32 %v4460, %v4332
  %v4493 = vmul.f32 %v4461, %v4333
  %v4494 = vmul.f32 %v4462, %v4334
  %v4495 = vmul.f32 %v4463, %v4335
  %v4496 = vmul.f32 %v4464, %v4336
  %v4497 = vmul.f32 %v4465, %v4337
  %v4498 = vmul.f32 %v4466, %v4338
  %v4499 = vmul.f32 %v4467, %v4339
  %v4500 = vmul.f32 %v4468, 48.0
  %v4501 = vmul.f32 %v4469, 48.0
  %v4502 = vmul.f32 %v4470, 48.0
  %v4503 = vmul.f32 %v4471, 48.0
  %v4504 = vmul.f32 %v4472, 48.0
  %v4505 = vmul.f32 %v4473, 48.0
  %v4506 = vmul.f32 %v4474, 48.0
  %v4507 = vmul.f32 %v4475, 48.0
  %v4508 = vmul.f32 %v4476, 48.0
  %v4509 = vmul.f32 %v4477, 48.0
  %v4510 = vmul.f32 %v4478, 48.0
  %v4511 = vmul.f32 %v4479, 48.0
  %v4512 = vmul.f32 %v4480, 48.0
  %v4513 = vmul.f32 %v4481, 48.0
  %v4514 = vmul.f32 %v4482, 48.0
  %v4515 = vmul.f32 %v4483, 48.0
  %v4516 = vmul.f32 %v4484, 48.0
  %v4517 = vmul.f32 %v4485, 48.0
  %v4518 = vmul.f32 %v4486, 48.0
  %v4519 = vmul.f32 %v4487, 48.0
  %v4520 = vmul.f32 %v4488, 48.0
  %v4521 = vmul.f32 %v4489, 48.0
  %v4522 = vmul.f32 %v4490, 48.0
  %v4523 = vmul.f32 %v4491, 48.0
  %v4524 = vmul.f32 %v4492, 48.0
  %v4525 = vmul.f32 %v4493, 48.0
  %v4526 = vmul.f32 %v4494, 48.0
  %v4527 = vmul.f32 %v4495, 48.0
  %v4528 = vmul.f32 %v4496, 48.0
  %v4529 = vmul.f32 %v4497, 48.0
  %v4530 = vmul.f32 %v4498, 48.0
  %v4531 = vmul.f32 %v4499, 48.0
  %v4532 = vadd.f32 %v4404, %v4500
  %v4533 = vadd.f32 %v4405, %v4501
  %v4534 = vadd.f32 %v4406, %v4502
  %v4535 = vadd.f32 %v4407, %v4503
  %v4536 = vadd.f32 %v4408, %v4504
  %v4537 = vadd.f32 %v4409, %v4505
  %v4538 = vadd.f32 %v4410, %v4506
  %v4539 = vadd.f32 %v4411, %v4507
  %v4540 = vadd.f32 %v4412, %v4508
  %v4541 = vadd.f32 %v4413, %v4509
  %v4542 = vadd.f32 %v4414, %v4510
  %v4543 = vadd.f32 %v4415, %v4511
  %v4544 = vadd.f32 %v4416, %v4512
  %v4545 = vadd.f32 %v4417, %v4513
  %v4546 = vadd.f32 %v4418, %v4514
  %v4547 = vadd.f32 %v4419, %v4515
  %v4548 = vadd.f32 %v4420, %v4516
  %v4549 = vadd.f32 %v4421, %v4517
  %v4550 = vadd.f32 %v4422, %v4518
  %v4551 = vadd.f32 %v4423, %v4519
  %v4552 = vadd.f32 %v4424, %v4520
  %v4553 = vadd.f32 %v4425, %v4521
  %v4554 = vadd.f32 %v4426, %v4522
  %v4555 = vadd.f32 %v4427, %v4523
  %v4556 = vadd.f32 %v4428, %v4524
  %v4557 = vadd.f32 %v4429, %v4525
  %v4558 = vadd.f32 %v4430, %v4526
  %v4559 = vadd.f32 %v4431, %v4527
  %v4560 = vadd.f32 %v4432, %v4528
  %v4561 = vadd.f32 %v4433, %v4529
  %v4562 = vadd.f32 %v4434, %v4530
  %v4563 = vadd.f32 %v4435, %v4531
  %v4564 = vmul.f32 %v4308, %v4308
  %v4565 = vmul.f32 %v4309, %v4309
  %v4566 = vmul.f32 %v4310, %v4310
  %v4567 = vmul.f32 %v4311, %v4311
  %v4568 = vmul.f32 %v4312, %v4312
  %v4569 = vmul.f32 %v4313, %v4313
  %v4570 = vmul.f32 %v4314, %v4314
  %v4571 = vmul.f32 %v4315, %v4315
  %v4572 = vmul.f32 %v4316, %v4316
  %v4573 = vmul.f32 %v4317, %v4317
  %v4574 = vmul.f32 %v4318, %v4318
  %v4575 = vmul.f32 %v4319, %v4319
  %v4576 = vmul.f32 %v4320, %v4320
  %v4577 = vmul.f32 %v4321, %v4321
  %v4578 = vmul.f32 %v4322, %v4322
  %v4579 = vmul.f32 %v4323, %v4323
  %v4580 = vmul.f32 %v4324, %v4324
  %v4581 = vmul.f32 %v4325, %v4325
  %v4582 = vmul.f32 %v4326, %v4326
  %v4583 = vmul.f32 %v4327, %v4327
  %v4584 = vmul.f32 %v4328, %v4328
  %v4585 = vmul.f32 %v4329, %v4329
  %v4586 = vmul.f32 %v4330, %v4330
  %v4587 = vmul.f32 %v4331, %v4331
  %v4588 = vmul.f32 %v4332, %v4332
  %v4589 = vmul.f32 %v4333, %v4333
  %v4590 = vmul.f32 %v4334, %v4334
  %v4591 = vmul.f32 %v4335, %v4335
  %v4592 = vmul.f32 %v4336, %v4336
  %v4593 = vmul.f32 %v4337, %v4337
  %v4594 = vmul.f32 %v4338, %v4338
  %v4595 = vmul.f32 %v4339, %v4339
  %v4596 = vmul.f32 %v4564, 21.0
  %v4597 = vmul.f32 %v4565, 21.0
  %v4598 = vmul.f32 %v4566, 21.0
  %v4599 = vmul.f32 %v4567, 21.0
  %v4600 = vmul.f32 %v4568, 21.0
  %v4601 = vmul.f32 %v4569, 21.0
  %v4602 = vmul.f32 %v4570, 21.0
  %v4603 = vmul.f32 %v4571, 21.0
  %v4604 = vmul.f32 %v4572, 21.0
  %v4605 = vmul.f32 %v4573, 21.0
  %v4606 = vmul.f32 %v4574, 21.0
  %v4607 = vmul.f32 %v4575, 21.0
  %v4608 = vmul.f32 %v4576, 21.0
  %v4609 = vmul.f32 %v4577, 21.0
  %v4610 = vmul.f32 %v4578, 21.0
  %v4611 = vmul.f32 %v4579, 21.0
  %v4612 = vmul.f32 %v4580, 21.0
  %v4613 = vmul.f32 %v4581, 21.0
  %v4614 = vmul.f32 %v4582, 21.0
  %v4615 = vmul.f32 %v4583, 21.0
  %v4616 = vmul.f32 %v4584, 21.0
  %v4617 = vmul.f32 %v4585, 21.0
  %v4618 = vmul.f32 %v4586, 21.0
  %v4619 = vmul.f32 %v4587, 21.0
  %v4620 = vmul.f32 %v4588, 21.0
  %v4621 = vmul.f32 %v4589, 21.0
  %v4622 = vmul.f32 %v4590, 21.0
  %v4623 = vmul.f32 %v4591, 21.0
  %v4624 = vmul.f32 %v4592, 21.0
  %v4625 = vmul.f32 %v4593, 21.0
  %v4626 = vmul.f32 %v4594, 21.0
  %v4627 = vmul.f32 %v4595, 21.0
  %v4628 = vsub.f32 %v4532, %v4596
  %v4629 = vsub.f32 %v4533, %v4597
  %v4630 = vsub.f32 %v4534, %v4598
  %v4631 = vsub.f32 %v4535, %v4599
  %v4632 = vsub.f32 %v4536, %v4600
  %v4633 = vsub.f32 %v4537, %v4601
  %v4634 = vsub.f32 %v4538, %v4602
  %v4635 = vsub.f32 %v4539, %v4603
  %v4636 = vsub.f32 %v4540, %v4604
  %v4637 = vsub.f32 %v4541, %v4605
  %v4638 = vsub.f32 %v4542, %v4606
  %v4639 = vsub.f32 %v4543, %v4607
  %v4640 = vsub.f32 %v4544, %v4608
  %v4641 = vsub.f32 %v4545, %v4609
  %v4642 = vsub.f32 %v4546, %v4610
  %v4643 = vsub.f32 %v4547, %v4611
  %v4644 = vsub.f32 %v4548, %v4612
  %v4645 = vsub.f32 %v4549, %v4613
  %v4646 = vsub.f32 %v4550, %v4614
  %v4647 = vsub.f32 %v4551, %v4615
  %v4648 = vsub.f32 %v4552, %v4616
  %v4649 = vsub.f32 %v4553, %v4617
  %v4650 = vsub.f32 %v4554, %v4618
  %v4651 = vsub.f32 %v4555, %v4619
  %v4652 = vsub.f32 %v4556, %v4620
  %v4653 = vsub.f32 %v4557, %v4621
  %v4654 = vsub.f32 %v4558, %v4622
  %v4655 = vsub.f32 %v4559, %v4623
  %v4656 = vsub.f32 %v4560, %v4624
  %v4657 = vsub.f32 %v4561, %v4625
  %v4658 = vsub.f32 %v4562, %v4626
  %v4659 = vsub.f32 %v4563, %v4627
  %vm4660 = vcmp.lt.f32.partialorder %v4244, 1.0
  %vm4661 = vcmp.lt.f32.partialorder %v4245, 1.0
  %vm4662 = vcmp.lt.f32.partialorder %v4246, 1.0
  %vm4663 = vcmp.lt.f32.partialorder %v4247, 1.0
  %vm4664 = vcmp.lt.f32.partialorder %v4248, 1.0
  %vm4665 = vcmp.lt.f32.partialorder %v4249, 1.0
  %vm4666 = vcmp.lt.f32.partialorder %v4250, 1.0
  %vm4667 = vcmp.lt.f32.partialorder %v4251, 1.0
  %vm4668 = vcmp.lt.f32.partialorder %v4252, 1.0
  %vm4669 = vcmp.lt.f32.partialorder %v4253, 1.0
  %vm4670 = vcmp.lt.f32.partialorder %v4254, 1.0
  %vm4671 = vcmp.lt.f32.partialorder %v4255, 1.0
  %vm4672 = vcmp.lt.f32.partialorder %v4256, 1.0
  %vm4673 = vcmp.lt.f32.partialorder %v4257, 1.0
  %vm4674 = vcmp.lt.f32.partialorder %v4258, 1.0
  %vm4675 = vcmp.lt.f32.partialorder %v4259, 1.0
  %vm4676 = vcmp.lt.f32.partialorder %v4260, 1.0
  %vm4677 = vcmp.lt.f32.partialorder %v4261, 1.0
  %vm4678 = vcmp.lt.f32.partialorder %v4262, 1.0
  %vm4679 = vcmp.lt.f32.partialorder %v4263, 1.0
  %vm4680 = vcmp.lt.f32.partialorder %v4264, 1.0
  %vm4681 = vcmp.lt.f32.partialorder %v4265, 1.0
  %vm4682 = vcmp.lt.f32.partialorder %v4266, 1.0
  %vm4683 = vcmp.lt.f32.partialorder %v4267, 1.0
  %vm4684 = vcmp.lt.f32.partialorder %v4268, 1.0
  %vm4685 = vcmp.lt.f32.partialorder %v4269, 1.0
  %vm4686 = vcmp.lt.f32.partialorder %v4270, 1.0
  %vm4687 = vcmp.lt.f32.partialorder %v4271, 1.0
  %vm4688 = vcmp.lt.f32.partialorder %v4272, 1.0
  %vm4689 = vcmp.lt.f32.partialorder %v4273, 1.0
  %vm4690 = vcmp.lt.f32.partialorder %v4274, 1.0
  %vm4691 = vcmp.lt.f32.partialorder %v4275, 1.0
  %v4692 = vsel %vm4660, %v4628, 0.0
  %v4693 = vsel %vm4661, %v4629, 0.0
  %v4694 = vsel %vm4662, %v4630, 0.0
  %v4695 = vsel %vm4663, %v4631, 0.0
  %v4696 = vsel %vm4664, %v4632, 0.0
  %v4697 = vsel %vm4665, %v4633, 0.0
  %v4698 = vsel %vm4666, %v4634, 0.0
  %v4699 = vsel %vm4667, %v4635, 0.0
  %v4700 = vsel %vm4668, %v4636, 0.0
  %v4701 = vsel %vm4669, %v4637, 0.0
  %v4702 = vsel %vm4670, %v4638, 0.0
  %v4703 = vsel %vm4671, %v4639, 0.0
  %v4704 = vsel %vm4672, %v4640, 0.0
  %v4705 = vsel %vm4673, %v4641, 0.0
  %v4706 = vsel %vm4674, %v4642, 0.0
  %v4707 = vsel %vm4675, %v4643, 0.0
  %v4708 = vsel %vm4676, %v4644, 0.0
  %v4709 = vsel %vm4677, %v4645, 0.0
  %v4710 = vsel %vm4678, %v4646, 0.0
  %v4711 = vsel %vm4679, %v4647, 0.0
  %v4712 = vsel %vm4680, %v4648, 0.0
  %v4713 = vsel %vm4681, %v4649, 0.0
  %v4714 = vsel %vm4682, %v4650, 0.0
  %v4715 = vsel %vm4683, %v4651, 0.0
  %v4716 = vsel %vm4684, %v4652, 0.0
  %v4717 = vsel %vm4685, %v4653, 0.0
  %v4718 = vsel %vm4686, %v4654, 0.0
  %v4719 = vsel %vm4687, %v4655, 0.0
  %v4720 = vsel %vm4688, %v4656, 0.0
  %v4721 = vsel %vm4689, %v4657, 0.0
  %v4722 = vsel %vm4690, %v4658, 0.0
  %v4723 = vsel %vm4691, %v4659, 0.0
  %v4724 = vmul.f32 %v4211, %v4692
  %v4725 = vmul.f32 %v4212, %v4693
  %v4726 = vmul.f32 %v4213, %v4694
  %v4727 = vmul.f32 %v4214, %v4695
  %v4728 = vmul.f32 %v4215, %v4696
  %v4729 = vmul.f32 %v4216, %v4697
  %v4730 = vmul.f32 %v4217, %v4698
  %v4731 = vmul.f32 %v4218, %v4699
  %v4732 = vmul.f32 %v4219, %v4700
  %v4733 = vmul.f32 %v4220, %v4701
  %v4734 = vmul.f32 %v4221, %v4702
  %v4735 = vmul.f32 %v4222, %v4703
  %v4736 = vmul.f32 %v4223, %v4704
  %v4737 = vmul.f32 %v4224, %v4705
  %v4738 = vmul.f32 %v4225, %v4706
  %v4739 = vmul.f32 %v4226, %v4707
  %v4740 = vmul.f32 %v4227, %v4708
  %v4741 = vmul.f32 %v4228, %v4709
  %v4742 = vmul.f32 %v4229, %v4710
  %v4743 = vmul.f32 %v4230, %v4711
  %v4744 = vmul.f32 %v4231, %v4712
  %v4745 = vmul.f32 %v4232, %v4713
  %v4746 = vmul.f32 %v4233, %v4714
  %v4747 = vmul.f32 %v4234, %v4715
  %v4748 = vmul.f32 %v4235, %v4716
  %v4749 = vmul.f32 %v4236, %v4717
  %v4750 = vmul.f32 %v4237, %v4718
  %v4751 = vmul.f32 %v4238, %v4719
  %v4752 = vmul.f32 %v4239, %v4720
  %v4753 = vmul.f32 %v4240, %v4721
  %v4754 = vmul.f32 %v4241, %v4722
  %v4755 = vmul.f32 %v4242, %v4723
  %vm4756 = vcmask 64512
  %4757 = vst.msk [vmem:[%s2] sm:$0xff] %vm4756, %v4724
  %4758 = vst.msk [vmem:[%s2 + $0x8] sm:$0xff] %vm4756, %v4725
  %4759 = vst.msk [vmem:[%s2 + $0x10] sm:$0xff] %vm4756, %v4726
  %4760 = vst.msk [vmem:[%s2 + $0x18] sm:$0xff] %vm4756, %v4727
  %4761 = vst.msk [vmem:[%s2 + $0x20] sm:$0xff] %vm4756, %v4728
  %4762 = vst.msk [vmem:[%s2 + $0x28] sm:$0xff] %vm4756, %v4729
  %4763 = vst.msk [vmem:[%s2 + $0x30] sm:$0xff] %vm4756, %v4730
  %4764 = vst.msk [vmem:[%s2 + $0x38] sm:$0xff] %vm4756, %v4731
  %4765 = vst.msk [vmem:[%s2 + $0x40] sm:$0xff] %vm4756, %v4732
  %4766 = vst.msk [vmem:[%s2 + $0x48] sm:$0xff] %vm4756, %v4733
  %4767 = vst.msk [vmem:[%s2 + $0x50] sm:$0xff] %vm4756, %v4734
  %4768 = vst.msk [vmem:[%s2 + $0x58] sm:$0xff] %vm4756, %v4735
  %4769 = vst.msk [vmem:[%s2 + $0x60] sm:$0xff] %vm4756, %v4736
  %4770 = vst.msk [vmem:[%s2 + $0x68] sm:$0xff] %vm4756, %v4737
  %4771 = vst.msk [vmem:[%s2 + $0x70] sm:$0xff] %vm4756, %v4738
  %4772 = vst.msk [vmem:[%s2 + $0x78] sm:$0xff] %vm4756, %v4739
  %4773 = vst.msk [vmem:[%s2 + $0x80] sm:$0xff] %vm4756, %v4740
  %4774 = vst.msk [vmem:[%s2 + $0x88] sm:$0xff] %vm4756, %v4741
  %4775 = vst.msk [vmem:[%s2 + $0x90] sm:$0xff] %vm4756, %v4742
  %4776 = vst.msk [vmem:[%s2 + $0x98] sm:$0xff] %vm4756, %v4743
  %4777 = vst.msk [vmem:[%s2 + $0xa0] sm:$0xff] %vm4756, %v4744
  %4778 = vst.msk [vmem:[%s2 + $0xa8] sm:$0xff] %vm4756, %v4745
  %4779 = vst.msk [vmem:[%s2 + $0xb0] sm:$0xff] %vm4756, %v4746
  %4780 = vst.msk [vmem:[%s2 + $0xb8] sm:$0xff] %vm4756, %v4747
  %4781 = vst.msk [vmem:[%s2 + $0xc0] sm:$0xff] %vm4756, %v4748
  %4782 = vst.msk [vmem:[%s2 + $0xc8] sm:$0xff] %vm4756, %v4749
  %4783 = vst.msk [vmem:[%s2 + $0xd0] sm:$0xff] %vm4756, %v4750
  %4784 = vst.msk [vmem:[%s2 + $0xd8] sm:$0xff] %vm4756, %v4751
  %4785 = vst.msk [vmem:[%s2 + $0xe0] sm:$0xff] %vm4756, %v4752
  %4786 = vst.msk [vmem:[%s2 + $0xe8] sm:$0xff] %vm4756, %v4753
  %4787 = vst.msk [vmem:[%s2 + $0xf0] sm:$0xff] %vm4756, %v4754
  %4788 = vst.msk [vmem:[%s2 + $0xf8] sm:$0xff] %vm4756, %v4755
  // Predicated region
  $region6: #{tpu_custom_call.1} parent=0 // pred_check
    _
  $region7: #{tpu_custom_call.1} parent=0 // pred_check_branch
    %4790 = sbr.rel (0) target = $region9
  $region8: #{tpu_custom_call.1} parent=0 // pred_region
    _
  $region9: #{tpu_custom_call.1} parent=0 // pred_fallthru
    _
  // Predicated region
  $region10: #{tpu_custom_call.1} parent=0 // pred_check
    _
  $region11: #{tpu_custom_call.1} parent=0 // pred_check_branch
    %4792 = sbr.rel (0) target = $region13
  $region12: #{tpu_custom_call.1} parent=0 // pred_region
    _
  $region13: #{tpu_custom_call.1} parent=0 // pred_fallthru
    _
  // Predicated region
  $region14: #{tpu_custom_call.1} parent=0 // pred_check
    _
  $region15: #{tpu_custom_call.1} parent=0 // pred_check_branch
    %4794 = sbr.rel (0) target = $region17
  $region16: #{tpu_custom_call.1} parent=0 // pred_region
    _
  $region17: #{tpu_custom_call.1} parent=0 // pred_fallthru
    _
  // Predicated region
  $region18: #{tpu_custom_call.1} parent=0 // pred_check
    _
  $region19: #{tpu_custom_call.1} parent=0 // pred_check_branch
    %4796 = sbr.rel (0) target = $region21
  $region20: #{tpu_custom_call.1} parent=0 // pred_region
    _
  $region21: #{tpu_custom_call.1} parent=0 // pred_fallthru
    _

</llo_original>
